<compile_context>
chip_gen: v5e
topology: v5e:2x2
jax: 0.10.0
libtpu: 0.0.40
codegen_flags: <defaults>
</compile_context>

<pallas_src>
import jax
import jax.numpy as jnp
from jax import lax
from jax.experimental import pallas as pl
from jax.experimental.pallas import tpu as pltpu


def _im2col_conv(pad_ref, patch_ref, w_ref, s_ref, b_ref, src_hw_c):
    """One conv3x3 (SAME) + folded BN + ReLU.

    pad_ref:   (H+2, W+2, Ci) VMEM scratch, halo-padded activation
    patch_ref: (9*Ci, H*W)    VMEM scratch, im2col patch matrix
    w_ref:     (C, 9*Ci)      im2col weights (tap-major, then ci)
    s_ref/b_ref: (C, 1)       folded BN scale / bias
    src_hw_c:  (H, W, Ci)     input activation (value)
    returns:   (C, H*W)       lane-dense activation
    """
    H = pad_ref.shape[0] - 2
    W = pad_ref.shape[1] - 2
    Ci = pad_ref.shape[2]
    HW = H * W

    # Zero only the 1-pixel halo border (cheap); the interior is fully
    # overwritten below.  Done every step so "parallel" batch sharding is safe.
    zrow = jnp.zeros((1, W + 2, Ci), jnp.float32)
    zcol = jnp.zeros((H + 2, 1, Ci), jnp.float32)
    pad_ref[0:1, :, :] = zrow
    pad_ref[H + 1:H + 2, :, :] = zrow
    pad_ref[:, 0:1, :] = zcol
    pad_ref[:, W + 1:W + 2, :] = zcol
    pad_ref[1:H + 1, 1:W + 1, :] = src_hw_c

    # im2col: 9 shifted windows (static ref-view slices, leading/sublane
    # offsets only), each transposed to (Ci, HW) and packed along the
    # contraction axis of the patch matrix with sublane-offset stores.
    for dy in range(3):
        for dx in range(3):
            t = dy * 3 + dx
            tap = pad_ref[dy:dy + H, dx:dx + W, :].reshape(HW, Ci)
            patch_ref[t * Ci:(t + 1) * Ci, :] = jnp.transpose(tap, (1, 0))

    # Single MXU matmul per conv: (C, 9*Ci) @ (9*Ci, HW) -> (C, HW).
    acc = jnp.dot(w_ref[...], patch_ref[...],
                  preferred_element_type=jnp.float32)
    # Folded BN + ReLU on the lane-dense (C, HW) activation.
    return jnp.maximum(acc * s_ref[...] + b_ref[...], 0.0)


def double_conv_kernel(x_ref, w1_ref, s1_ref, b1_ref, w2_ref, s2_ref, b2_ref,
                       o_ref, pad1_ref, pad2_ref, p1_ref, p2_ref):
    # x_ref:    (1, Cin, H*W)  one NCHW image, spatial flattened (free reshape)
    # w1_ref:   (C, 9*Cin)     im2col conv1 weights
    # w2_ref:   (C, 9*C)       im2col conv2 weights
    # s*/b*:    (C, 1)         folded BN scale / bias (conv bias included)
    # o_ref:    (1, C, H*W)    lane-dense NCHW output
    # pad*_ref: VMEM halo-padded activations; p*_ref: VMEM im2col patches
    Cin = x_ref.shape[1]
    C = o_ref.shape[1]
    H = pad1_ref.shape[0] - 2
    W = pad1_ref.shape[1] - 2
    HW = H * W

    # Layout conversion happens in VMEM (no extra HBM transpose pass).
    x_hw_c = jnp.transpose(x_ref[0], (1, 0)).reshape(H, W, Cin)
    y1 = _im2col_conv(pad1_ref, p1_ref, w1_ref, s1_ref, b1_ref, x_hw_c)

    y1_hw_c = jnp.transpose(y1, (1, 0)).reshape(H, W, C)
    y2 = _im2col_conv(pad2_ref, p2_ref, w2_ref, s2_ref, b2_ref, y1_hw_c)

    o_ref[...] = y2.reshape(1, C, HW).astype(o_ref.dtype)


def double_conv(x_nchw, w1_mat, s1, b1, w2_mat, s2, b2):
    """x_nchw: (N, Cin, H, W); w*_mat: (C, 9*Cin)/(C, 9*C); s*/b*: (C, 1)."""
    N, Cin, H, W = x_nchw.shape
    C = w1_mat.shape[0]
    HW = H * W
    x_flat = x_nchw.reshape(N, Cin, HW)        # free reshape, stays NCHW

    out = pl.pallas_call(
        double_conv_kernel,
        out_shape=jax.ShapeDtypeStruct((N, C, HW), jnp.float32),
        grid=(N,),
        in_specs=[
            pl.BlockSpec((1, Cin, HW), lambda n: (n, 0, 0)),
            pl.BlockSpec((C, 9 * Cin), lambda n: (0, 0)),
            pl.BlockSpec((C, 1),       lambda n: (0, 0)),
            pl.BlockSpec((C, 1),       lambda n: (0, 0)),
            pl.BlockSpec((C, 9 * C),   lambda n: (0, 0)),
            pl.BlockSpec((C, 1),       lambda n: (0, 0)),
            pl.BlockSpec((C, 1),       lambda n: (0, 0)),
        ],
        out_specs=pl.BlockSpec((1, C, HW), lambda n: (n, 0, 0)),
        scratch_shapes=[
            pltpu.VMEM((H + 2, W + 2, Cin), jnp.float32),   # padded input
            pltpu.VMEM((H + 2, W + 2, C), jnp.float32),     # padded conv1 act
            pltpu.VMEM((9 * Cin, HW), jnp.float32),         # im2col patch 1
            pltpu.VMEM((9 * C, HW), jnp.float32),           # im2col patch 2
        ],
        compiler_params=pltpu.CompilerParams(
            dimension_semantics=("parallel",)),   # v7x: 2 TCs split the batch
    )(x_flat, w1_mat, s1, b1, w2_mat, s2, b2)

    return out.reshape(N, C, H, W)               # free reshape -> NCHW


def _fold_bn(conv_w_oihw, conv_b, gamma, beta, mean, var, eps=1e-5):
    """Fold conv bias + eval-mode BN into im2col weight / per-channel scale,bias.

    Returns (w_mat (C, 9*Cin), scale (C, 1), bias (C, 1)); w_mat columns are
    ordered (dy, dx, cin) to match the kernel's patch-matrix row order."""
    C, Cin = conv_w_oihw.shape[0], conv_w_oihw.shape[1]
    w_mat = jnp.transpose(conv_w_oihw, (0, 2, 3, 1)).reshape(C, 9 * Cin)
    scale = gamma / jnp.sqrt(var + eps)
    bias = beta + scale * (conv_b - mean)
    return (w_mat.astype(jnp.float32),
            scale[:, None].astype(jnp.float32),
            bias[:, None].astype(jnp.float32))


def _ref_forward(x, w1, b1, g1, be1, m1, v1, w2, b2, g2, be2, m2, v2, eps=1e-5):
    """Plain-JAX NCHW reference mirroring the PyTorch module (eval-mode BN)."""
    dn = ('NCHW', 'OIHW', 'NCHW')

    def conv_bn_relu(y, w, b, g, be, m, v):
        y = lax.conv_general_dilated(y, w, (1, 1), 'SAME', dimension_numbers=dn)
        y = y + b[None, :, None, None]
        y = (y - m[None, :, None, None]) * g[None, :, None, None] / jnp.sqrt(
            v[None, :, None, None] + eps) + be[None, :, None, None]
        return jnp.maximum(y, 0.0)

    return conv_bn_relu(conv_bn_relu(x, w1, b1, g1, be1, m1, v1),
                        w2, b2, g2, be2, m2, v2)


if __name__ == "__main__":
    key = jax.random.PRNGKey(0)
    N, in_c, out_c, Hs, Ws = 2, 4, 8, 16, 16

    ks = jax.random.split(key, 11)
    x = jax.random.normal(ks[0], (N, in_c, Hs, Ws), jnp.float32)

    # Conv1 + BN1 parameters (PyTorch shapes: weight OIHW, bias (C,))
    w1_oihw = jax.random.normal(ks[1], (out_c, in_c, 3, 3), jnp.float32) * 0.1
    b1_conv = jax.random.normal(ks[2], (out_c,), jnp.float32) * 0.1
    g1 = 1.0 + 0.1 * jax.random.normal(ks[3], (out_c,), jnp.float32)
    be1 = 0.1 * jax.random.normal(ks[4], (out_c,), jnp.float32)
    m1 = 0.1 * jax.random.normal(ks[5], (out_c,), jnp.float32)
    v1 = jnp.abs(1.0 + 0.1 * jax.random.normal(ks[6], (out_c,), jnp.float32))

    # Conv2 + BN2 parameters
    w2_oihw = jax.random.normal(ks[7], (out_c, out_c, 3, 3), jnp.float32) * 0.1
    b2_conv = jax.random.normal(ks[8], (out_c,), jnp.float32) * 0.1
    g2 = 1.0 + 0.1 * jax.random.normal(ks[9], (out_c,), jnp.float32)
    be2 = 0.1 * jax.random.normal(ks[10], (out_c,), jnp.float32)
    m2 = jnp.zeros((out_c,), jnp.float32)
    v2 = jnp.ones((out_c,), jnp.float32)

    w1m, s1, bb1 = _fold_bn(w1_oihw, b1_conv, g1, be1, m1, v1)
    w2m, s2, bb2 = _fold_bn(w2_oihw, b2_conv, g2, be2, m2, v2)

    out = double_conv(x, w1m, s1, bb1, w2m, s2, bb2)
    out = jax.block_until_ready(out)

    ref = _ref_forward(x, w1_oihw, b1_conv, g1, be1, m1, v1,
                       w2_oihw, b2_conv, g2, be2, m2, v2)
    assert out.shape == (N, out_c, Hs, Ws), out.shape
    err = float(jnp.max(jnp.abs(out - ref)))
    assert jnp.allclose(out, ref, atol=1e-4, rtol=1e-4), f"mismatch: {err}"

    print("KERNEL_OK")
</pallas_src>

<mosaic_0001>
module attributes {stable_mosaic.version = 11 : i64} {
  func.func @double_conv_kernel(%arg0: i32, %arg1: memref<1x4x256xf32, #tpu.memory_space<vmem>>, %arg2: memref<8x36xf32, #tpu.memory_space<vmem>>, %arg3: memref<8x1xf32, #tpu.memory_space<vmem>>, %arg4: memref<8x1xf32, #tpu.memory_space<vmem>>, %arg5: memref<8x72xf32, #tpu.memory_space<vmem>>, %arg6: memref<8x1xf32, #tpu.memory_space<vmem>>, %arg7: memref<8x1xf32, #tpu.memory_space<vmem>>, %arg8: memref<1x8x256xf32, #tpu.memory_space<vmem>>, %arg9: memref<18x18x4xf32, #tpu.memory_space<vmem>>, %arg10: memref<18x18x8xf32, #tpu.memory_space<vmem>>, %arg11: memref<36x256xf32, #tpu.memory_space<vmem>>, %arg12: memref<72x256xf32, #tpu.memory_space<vmem>>) attributes {dimension_semantics = [#tpu.dimension_semantics<parallel>], iteration_bounds = array<i64: 2>, scalar_prefetch = 0 : i64, scratch_operands = 4 : i64, tpu.core_type = #tpu.core_type<tc>, window_params = [{transform_indices = @transform_0, window_bounds = array<i64: 1, 4, 256>}, {pipeline_mode = #tpu.pipeline_mode<synchronous>, transform_indices = @transform_1, window_bounds = array<i64: 8, 36>}, {pipeline_mode = #tpu.pipeline_mode<synchronous>, transform_indices = @transform_2, window_bounds = array<i64: 8, 1>}, {pipeline_mode = #tpu.pipeline_mode<synchronous>, transform_indices = @transform_3, window_bounds = array<i64: 8, 1>}, {pipeline_mode = #tpu.pipeline_mode<synchronous>, transform_indices = @transform_4, window_bounds = array<i64: 8, 72>}, {pipeline_mode = #tpu.pipeline_mode<synchronous>, transform_indices = @transform_5, window_bounds = array<i64: 8, 1>}, {pipeline_mode = #tpu.pipeline_mode<synchronous>, transform_indices = @transform_6, window_bounds = array<i64: 8, 1>}, {transform_indices = @transform_7, window_bounds = array<i64: 1, 8, 256>}]} {
    %c0 = arith.constant 0 : index
    %c0_0 = arith.constant 0 : index
    %c0_1 = arith.constant 0 : index
    %0 = vector.load %arg1[%c0, %c0_0, %c0_1] : memref<1x4x256xf32, #tpu.memory_space<vmem>>, vector<1x4x256xf32>
    %1 = vector.shape_cast %0 : vector<1x4x256xf32> to vector<4x256xf32>
    %2 = tpu.transpose %1, [1, 0] : vector<4x256xf32> -> vector<256x4xf32>
    %3 = vector.shape_cast %2 : vector<256x4xf32> to vector<16x16x4xf32>
    %cst = arith.constant 0.000000e+00 : f32
    %4 = vector.broadcast %cst : f32 to vector<1x18x4xf32>
    %cst_2 = arith.constant 0.000000e+00 : f32
    %5 = vector.broadcast %cst_2 : f32 to vector<18x1x4xf32>
    %c0_3 = arith.constant 0 : index
    %c0_4 = arith.constant 0 : index
    %c0_5 = arith.constant 0 : index
    %6 = vector.load %arg9[%c0_3, %c0_4, %c0_5] : memref<18x18x4xf32, #tpu.memory_space<vmem>>, vector<1x18x4xf32>
    tpu.vector_store %arg9[%c0_3, %c0_4, %c0_5], %4 {strides = array<i32>} : memref<18x18x4xf32, #tpu.memory_space<vmem>>, vector<1x18x4xf32>,
    %c17 = arith.constant 17 : index
    %c0_6 = arith.constant 0 : index
    %c0_7 = arith.constant 0 : index
    %7 = vector.load %arg9[%c17, %c0_6, %c0_7] : memref<18x18x4xf32, #tpu.memory_space<vmem>>, vector<1x18x4xf32>
    tpu.vector_store %arg9[%c17, %c0_6, %c0_7], %4 {strides = array<i32>} : memref<18x18x4xf32, #tpu.memory_space<vmem>>, vector<1x18x4xf32>,
    %c0_8 = arith.constant 0 : index
    %c0_9 = arith.constant 0 : index
    %c0_10 = arith.constant 0 : index
    %8 = vector.load %arg9[%c0_8, %c0_9, %c0_10] : memref<18x18x4xf32, #tpu.memory_space<vmem>>, vector<18x1x4xf32>
    tpu.vector_store %arg9[%c0_8, %c0_9, %c0_10], %5 {strides = array<i32>} : memref<18x18x4xf32, #tpu.memory_space<vmem>>, vector<18x1x4xf32>,
    %c0_11 = arith.constant 0 : index
    %c17_12 = arith.constant 17 : index
    %c0_13 = arith.constant 0 : index
    %9 = vector.load %arg9[%c0_11, %c17_12, %c0_13] : memref<18x18x4xf32, #tpu.memory_space<vmem>>, vector<18x1x4xf32>
    tpu.vector_store %arg9[%c0_11, %c17_12, %c0_13], %5 {strides = array<i32>} : memref<18x18x4xf32, #tpu.memory_space<vmem>>, vector<18x1x4xf32>,
    %c1 = arith.constant 1 : index
    %c1_14 = arith.constant 1 : index
    %c0_15 = arith.constant 0 : index
    %10 = vector.load %arg9[%c1, %c1_14, %c0_15] : memref<18x18x4xf32, #tpu.memory_space<vmem>>, vector<16x16x4xf32>
    tpu.vector_store %arg9[%c1, %c1_14, %c0_15], %3 {strides = array<i32>} : memref<18x18x4xf32, #tpu.memory_space<vmem>>, vector<16x16x4xf32>,
    %c0_16 = arith.constant 0 : index
    %c0_17 = arith.constant 0 : index
    %c0_18 = arith.constant 0 : index
    %11 = vector.load %arg9[%c0_16, %c0_17, %c0_18] : memref<18x18x4xf32, #tpu.memory_space<vmem>>, vector<16x16x4xf32>
    %12 = vector.shape_cast %11 : vector<16x16x4xf32> to vector<256x4xf32>
    %13 = tpu.transpose %12, [1, 0] : vector<256x4xf32> -> vector<4x256xf32>
    %c0_19 = arith.constant 0 : index
    %c0_20 = arith.constant 0 : index
    %14 = vector.load %arg11[%c0_19, %c0_20] : memref<36x256xf32, #tpu.memory_space<vmem>>, vector<4x256xf32>
    tpu.vector_store %arg11[%c0_19, %c0_20], %13 {strides = array<i32>} : memref<36x256xf32, #tpu.memory_space<vmem>>, vector<4x256xf32>,
    %c0_21 = arith.constant 0 : index
    %c1_22 = arith.constant 1 : index
    %c0_23 = arith.constant 0 : index
    %15 = vector.load %arg9[%c0_21, %c1_22, %c0_23] : memref<18x18x4xf32, #tpu.memory_space<vmem>>, vector<16x16x4xf32>
    %16 = vector.shape_cast %15 : vector<16x16x4xf32> to vector<256x4xf32>
    %17 = tpu.transpose %16, [1, 0] : vector<256x4xf32> -> vector<4x256xf32>
    %c4 = arith.constant 4 : index
    %c0_24 = arith.constant 0 : index
    %18 = vector.load %arg11[%c4, %c0_24] : memref<36x256xf32, #tpu.memory_space<vmem>>, vector<4x256xf32>
    tpu.vector_store %arg11[%c4, %c0_24], %17 {strides = array<i32>} : memref<36x256xf32, #tpu.memory_space<vmem>>, vector<4x256xf32>,
    %c0_25 = arith.constant 0 : index
    %c2 = arith.constant 2 : index
    %c0_26 = arith.constant 0 : index
    %19 = vector.load %arg9[%c0_25, %c2, %c0_26] : memref<18x18x4xf32, #tpu.memory_space<vmem>>, vector<16x16x4xf32>
    %20 = vector.shape_cast %19 : vector<16x16x4xf32> to vector<256x4xf32>
    %21 = tpu.transpose %20, [1, 0] : vector<256x4xf32> -> vector<4x256xf32>
    %c8 = arith.constant 8 : index
    %c0_27 = arith.constant 0 : index
    %22 = vector.load %arg11[%c8, %c0_27] : memref<36x256xf32, #tpu.memory_space<vmem>>, vector<4x256xf32>
    tpu.vector_store %arg11[%c8, %c0_27], %21 {strides = array<i32>} : memref<36x256xf32, #tpu.memory_space<vmem>>, vector<4x256xf32>,
    %c1_28 = arith.constant 1 : index
    %c0_29 = arith.constant 0 : index
    %c0_30 = arith.constant 0 : index
    %23 = vector.load %arg9[%c1_28, %c0_29, %c0_30] : memref<18x18x4xf32, #tpu.memory_space<vmem>>, vector<16x16x4xf32>
    %24 = vector.shape_cast %23 : vector<16x16x4xf32> to vector<256x4xf32>
    %25 = tpu.transpose %24, [1, 0] : vector<256x4xf32> -> vector<4x256xf32>
    %c12 = arith.constant 12 : index
    %c0_31 = arith.constant 0 : index
    %26 = vector.load %arg11[%c12, %c0_31] : memref<36x256xf32, #tpu.memory_space<vmem>>, vector<4x256xf32>
    tpu.vector_store %arg11[%c12, %c0_31], %25 {strides = array<i32>} : memref<36x256xf32, #tpu.memory_space<vmem>>, vector<4x256xf32>,
    %c1_32 = arith.constant 1 : index
    %c1_33 = arith.constant 1 : index
    %c0_34 = arith.constant 0 : index
    %27 = vector.load %arg9[%c1_32, %c1_33, %c0_34] : memref<18x18x4xf32, #tpu.memory_space<vmem>>, vector<16x16x4xf32>
    %28 = vector.shape_cast %27 : vector<16x16x4xf32> to vector<256x4xf32>
    %29 = tpu.transpose %28, [1, 0] : vector<256x4xf32> -> vector<4x256xf32>
    %c16 = arith.constant 16 : index
    %c0_35 = arith.constant 0 : index
    %30 = vector.load %arg11[%c16, %c0_35] : memref<36x256xf32, #tpu.memory_space<vmem>>, vector<4x256xf32>
    tpu.vector_store %arg11[%c16, %c0_35], %29 {strides = array<i32>} : memref<36x256xf32, #tpu.memory_space<vmem>>, vector<4x256xf32>,
    %c1_36 = arith.constant 1 : index
    %c2_37 = arith.constant 2 : index
    %c0_38 = arith.constant 0 : index
    %31 = vector.load %arg9[%c1_36, %c2_37, %c0_38] : memref<18x18x4xf32, #tpu.memory_space<vmem>>, vector<16x16x4xf32>
    %32 = vector.shape_cast %31 : vector<16x16x4xf32> to vector<256x4xf32>
    %33 = tpu.transpose %32, [1, 0] : vector<256x4xf32> -> vector<4x256xf32>
    %c20 = arith.constant 20 : index
    %c0_39 = arith.constant 0 : index
    %34 = vector.load %arg11[%c20, %c0_39] : memref<36x256xf32, #tpu.memory_space<vmem>>, vector<4x256xf32>
    tpu.vector_store %arg11[%c20, %c0_39], %33 {strides = array<i32>} : memref<36x256xf32, #tpu.memory_space<vmem>>, vector<4x256xf32>,
    %c2_40 = arith.constant 2 : index
    %c0_41 = arith.constant 0 : index
    %c0_42 = arith.constant 0 : index
    %35 = vector.load %arg9[%c2_40, %c0_41, %c0_42] : memref<18x18x4xf32, #tpu.memory_space<vmem>>, vector<16x16x4xf32>
    %36 = vector.shape_cast %35 : vector<16x16x4xf32> to vector<256x4xf32>
    %37 = tpu.transpose %36, [1, 0] : vector<256x4xf32> -> vector<4x256xf32>
    %c24 = arith.constant 24 : index
    %c0_43 = arith.constant 0 : index
    %38 = vector.load %arg11[%c24, %c0_43] : memref<36x256xf32, #tpu.memory_space<vmem>>, vector<4x256xf32>
    tpu.vector_store %arg11[%c24, %c0_43], %37 {strides = array<i32>} : memref<36x256xf32, #tpu.memory_space<vmem>>, vector<4x256xf32>,
    %c2_44 = arith.constant 2 : index
    %c1_45 = arith.constant 1 : index
    %c0_46 = arith.constant 0 : index
    %39 = vector.load %arg9[%c2_44, %c1_45, %c0_46] : memref<18x18x4xf32, #tpu.memory_space<vmem>>, vector<16x16x4xf32>
    %40 = vector.shape_cast %39 : vector<16x16x4xf32> to vector<256x4xf32>
    %41 = tpu.transpose %40, [1, 0] : vector<256x4xf32> -> vector<4x256xf32>
    %c28 = arith.constant 28 : index
    %c0_47 = arith.constant 0 : index
    %42 = vector.load %arg11[%c28, %c0_47] : memref<36x256xf32, #tpu.memory_space<vmem>>, vector<4x256xf32>
    tpu.vector_store %arg11[%c28, %c0_47], %41 {strides = array<i32>} : memref<36x256xf32, #tpu.memory_space<vmem>>, vector<4x256xf32>,
    %c2_48 = arith.constant 2 : index
    %c2_49 = arith.constant 2 : index
    %c0_50 = arith.constant 0 : index
    %43 = vector.load %arg9[%c2_48, %c2_49, %c0_50] : memref<18x18x4xf32, #tpu.memory_space<vmem>>, vector<16x16x4xf32>
    %44 = vector.shape_cast %43 : vector<16x16x4xf32> to vector<256x4xf32>
    %45 = tpu.transpose %44, [1, 0] : vector<256x4xf32> -> vector<4x256xf32>
    %c32 = arith.constant 32 : index
    %c0_51 = arith.constant 0 : index
    %46 = vector.load %arg11[%c32, %c0_51] : memref<36x256xf32, #tpu.memory_space<vmem>>, vector<4x256xf32>
    tpu.vector_store %arg11[%c32, %c0_51], %45 {strides = array<i32>} : memref<36x256xf32, #tpu.memory_space<vmem>>, vector<4x256xf32>,
    %c0_52 = arith.constant 0 : index
    %c0_53 = arith.constant 0 : index
    %47 = vector.load %arg2[%c0_52, %c0_53] : memref<8x36xf32, #tpu.memory_space<vmem>>, vector<8x36xf32>
    %c0_54 = arith.constant 0 : index
    %c0_55 = arith.constant 0 : index
    %48 = vector.load %arg11[%c0_54, %c0_55] : memref<36x256xf32, #tpu.memory_space<vmem>>, vector<36x256xf32>
    %cst_56 = arith.constant dense<0.000000e+00> : vector<8x256xf32>
    %49 = tpu.matmul %47, %48, %cst_56 {dimension_numbers = #tpu.dot_dimension_numbers<[1], [0], [0], [1], [0, 0, 1, 1], [], []>} : vector<8x36xf32>, vector<36x256xf32>, vector<8x256xf32> -> vector<8x256xf32>
    %c0_57 = arith.constant 0 : index
    %c0_58 = arith.constant 0 : index
    %50 = vector.load %arg3[%c0_57, %c0_58] : memref<8x1xf32, #tpu.memory_space<vmem>>, vector<8x1xf32>
    %51 = vector.broadcast %50 : vector<8x1xf32> to vector<8x256xf32>
    %52 = arith.mulf %49, %51 : vector<8x256xf32>
    %c0_59 = arith.constant 0 : index
    %c0_60 = arith.constant 0 : index
    %53 = vector.load %arg4[%c0_59, %c0_60] : memref<8x1xf32, #tpu.memory_space<vmem>>, vector<8x1xf32>
    %54 = vector.broadcast %53 : vector<8x1xf32> to vector<8x256xf32>
    %55 = arith.addf %52, %54 : vector<8x256xf32>
    %cst_61 = arith.constant 0.000000e+00 : f32
    %56 = vector.broadcast %cst_61 : f32 to vector<8x256xf32>
    %57 = arith.maximumf %55, %56 : vector<8x256xf32>
    %58 = tpu.transpose %57, [1, 0] : vector<8x256xf32> -> vector<256x8xf32>
    %59 = vector.shape_cast %58 : vector<256x8xf32> to vector<16x16x8xf32>
    %cst_62 = arith.constant 0.000000e+00 : f32
    %60 = vector.broadcast %cst_62 : f32 to vector<1x18x8xf32>
    %cst_63 = arith.constant 0.000000e+00 : f32
    %61 = vector.broadcast %cst_63 : f32 to vector<18x1x8xf32>
    %c0_64 = arith.constant 0 : index
    %c0_65 = arith.constant 0 : index
    %c0_66 = arith.constant 0 : index
    %62 = vector.load %arg10[%c0_64, %c0_65, %c0_66] : memref<18x18x8xf32, #tpu.memory_space<vmem>>, vector<1x18x8xf32>
    tpu.vector_store %arg10[%c0_64, %c0_65, %c0_66], %60 {strides = array<i32>} : memref<18x18x8xf32, #tpu.memory_space<vmem>>, vector<1x18x8xf32>,
    %c17_67 = arith.constant 17 : index
    %c0_68 = arith.constant 0 : index
    %c0_69 = arith.constant 0 : index
    %63 = vector.load %arg10[%c17_67, %c0_68, %c0_69] : memref<18x18x8xf32, #tpu.memory_space<vmem>>, vector<1x18x8xf32>
    tpu.vector_store %arg10[%c17_67, %c0_68, %c0_69], %60 {strides = array<i32>} : memref<18x18x8xf32, #tpu.memory_space<vmem>>, vector<1x18x8xf32>,
    %c0_70 = arith.constant 0 : index
    %c0_71 = arith.constant 0 : index
    %c0_72 = arith.constant 0 : index
    %64 = vector.load %arg10[%c0_70, %c0_71, %c0_72] : memref<18x18x8xf32, #tpu.memory_space<vmem>>, vector<18x1x8xf32>
    tpu.vector_store %arg10[%c0_70, %c0_71, %c0_72], %61 {strides = array<i32>} : memref<18x18x8xf32, #tpu.memory_space<vmem>>, vector<18x1x8xf32>,
    %c0_73 = arith.constant 0 : index
    %c17_74 = arith.constant 17 : index
    %c0_75 = arith.constant 0 : index
    %65 = vector.load %arg10[%c0_73, %c17_74, %c0_75] : memref<18x18x8xf32, #tpu.memory_space<vmem>>, vector<18x1x8xf32>
    tpu.vector_store %arg10[%c0_73, %c17_74, %c0_75], %61 {strides = array<i32>} : memref<18x18x8xf32, #tpu.memory_space<vmem>>, vector<18x1x8xf32>,
    %c1_76 = arith.constant 1 : index
    %c1_77 = arith.constant 1 : index
    %c0_78 = arith.constant 0 : index
    %66 = vector.load %arg10[%c1_76, %c1_77, %c0_78] : memref<18x18x8xf32, #tpu.memory_space<vmem>>, vector<16x16x8xf32>
    tpu.vector_store %arg10[%c1_76, %c1_77, %c0_78], %59 {strides = array<i32>} : memref<18x18x8xf32, #tpu.memory_space<vmem>>, vector<16x16x8xf32>,
    %c0_79 = arith.constant 0 : index
    %c0_80 = arith.constant 0 : index
    %c0_81 = arith.constant 0 : index
    %67 = vector.load %arg10[%c0_79, %c0_80, %c0_81] : memref<18x18x8xf32, #tpu.memory_space<vmem>>, vector<16x16x8xf32>
    %68 = vector.shape_cast %67 : vector<16x16x8xf32> to vector<256x8xf32>
    %69 = tpu.transpose %68, [1, 0] : vector<256x8xf32> -> vector<8x256xf32>
    %c0_82 = arith.constant 0 : index
    %c0_83 = arith.constant 0 : index
    %70 = vector.load %arg12[%c0_82, %c0_83] : memref<72x256xf32, #tpu.memory_space<vmem>>, vector<8x256xf32>
    tpu.vector_store %arg12[%c0_82, %c0_83], %69 {strides = array<i32>} : memref<72x256xf32, #tpu.memory_space<vmem>>, vector<8x256xf32>,
    %c0_84 = arith.constant 0 : index
    %c1_85 = arith.constant 1 : index
    %c0_86 = arith.constant 0 : index
    %71 = vector.load %arg10[%c0_84, %c1_85, %c0_86] : memref<18x18x8xf32, #tpu.memory_space<vmem>>, vector<16x16x8xf32>
    %72 = vector.shape_cast %71 : vector<16x16x8xf32> to vector<256x8xf32>
    %73 = tpu.transpose %72, [1, 0] : vector<256x8xf32> -> vector<8x256xf32>
    %c8_87 = arith.constant 8 : index
    %c0_88 = arith.constant 0 : index
    %74 = vector.load %arg12[%c8_87, %c0_88] : memref<72x256xf32, #tpu.memory_space<vmem>>, vector<8x256xf32>
    tpu.vector_store %arg12[%c8_87, %c0_88], %73 {strides = array<i32>} : memref<72x256xf32, #tpu.memory_space<vmem>>, vector<8x256xf32>,
    %c0_89 = arith.constant 0 : index
    %c2_90 = arith.constant 2 : index
    %c0_91 = arith.constant 0 : index
    %75 = vector.load %arg10[%c0_89, %c2_90, %c0_91] : memref<18x18x8xf32, #tpu.memory_space<vmem>>, vector<16x16x8xf32>
    %76 = vector.shape_cast %75 : vector<16x16x8xf32> to vector<256x8xf32>
    %77 = tpu.transpose %76, [1, 0] : vector<256x8xf32> -> vector<8x256xf32>
    %c16_92 = arith.constant 16 : index
    %c0_93 = arith.constant 0 : index
    %78 = vector.load %arg12[%c16_92, %c0_93] : memref<72x256xf32, #tpu.memory_space<vmem>>, vector<8x256xf32>
    tpu.vector_store %arg12[%c16_92, %c0_93], %77 {strides = array<i32>} : memref<72x256xf32, #tpu.memory_space<vmem>>, vector<8x256xf32>,
    %c1_94 = arith.constant 1 : index
    %c0_95 = arith.constant 0 : index
    %c0_96 = arith.constant 0 : index
    %79 = vector.load %arg10[%c1_94, %c0_95, %c0_96] : memref<18x18x8xf32, #tpu.memory_space<vmem>>, vector<16x16x8xf32>
    %80 = vector.shape_cast %79 : vector<16x16x8xf32> to vector<256x8xf32>
    %81 = tpu.transpose %80, [1, 0] : vector<256x8xf32> -> vector<8x256xf32>
    %c24_97 = arith.constant 24 : index
    %c0_98 = arith.constant 0 : index
    %82 = vector.load %arg12[%c24_97, %c0_98] : memref<72x256xf32, #tpu.memory_space<vmem>>, vector<8x256xf32>
    tpu.vector_store %arg12[%c24_97, %c0_98], %81 {strides = array<i32>} : memref<72x256xf32, #tpu.memory_space<vmem>>, vector<8x256xf32>,
    %c1_99 = arith.constant 1 : index
    %c1_100 = arith.constant 1 : index
    %c0_101 = arith.constant 0 : index
    %83 = vector.load %arg10[%c1_99, %c1_100, %c0_101] : memref<18x18x8xf32, #tpu.memory_space<vmem>>, vector<16x16x8xf32>
    %84 = vector.shape_cast %83 : vector<16x16x8xf32> to vector<256x8xf32>
    %85 = tpu.transpose %84, [1, 0] : vector<256x8xf32> -> vector<8x256xf32>
    %c32_102 = arith.constant 32 : index
    %c0_103 = arith.constant 0 : index
    %86 = vector.load %arg12[%c32_102, %c0_103] : memref<72x256xf32, #tpu.memory_space<vmem>>, vector<8x256xf32>
    tpu.vector_store %arg12[%c32_102, %c0_103], %85 {strides = array<i32>} : memref<72x256xf32, #tpu.memory_space<vmem>>, vector<8x256xf32>,
    %c1_104 = arith.constant 1 : index
    %c2_105 = arith.constant 2 : index
    %c0_106 = arith.constant 0 : index
    %87 = vector.load %arg10[%c1_104, %c2_105, %c0_106] : memref<18x18x8xf32, #tpu.memory_space<vmem>>, vector<16x16x8xf32>
    %88 = vector.shape_cast %87 : vector<16x16x8xf32> to vector<256x8xf32>
    %89 = tpu.transpose %88, [1, 0] : vector<256x8xf32> -> vector<8x256xf32>
    %c40 = arith.constant 40 : index
    %c0_107 = arith.constant 0 : index
    %90 = vector.load %arg12[%c40, %c0_107] : memref<72x256xf32, #tpu.memory_space<vmem>>, vector<8x256xf32>
    tpu.vector_store %arg12[%c40, %c0_107], %89 {strides = array<i32>} : memref<72x256xf32, #tpu.memory_space<vmem>>, vector<8x256xf32>,
    %c2_108 = arith.constant 2 : index
    %c0_109 = arith.constant 0 : index
    %c0_110 = arith.constant 0 : index
    %91 = vector.load %arg10[%c2_108, %c0_109, %c0_110] : memref<18x18x8xf32, #tpu.memory_space<vmem>>, vector<16x16x8xf32>
    %92 = vector.shape_cast %91 : vector<16x16x8xf32> to vector<256x8xf32>
    %93 = tpu.transpose %92, [1, 0] : vector<256x8xf32> -> vector<8x256xf32>
    %c48 = arith.constant 48 : index
    %c0_111 = arith.constant 0 : index
    %94 = vector.load %arg12[%c48, %c0_111] : memref<72x256xf32, #tpu.memory_space<vmem>>, vector<8x256xf32>
    tpu.vector_store %arg12[%c48, %c0_111], %93 {strides = array<i32>} : memref<72x256xf32, #tpu.memory_space<vmem>>, vector<8x256xf32>,
    %c2_112 = arith.constant 2 : index
    %c1_113 = arith.constant 1 : index
    %c0_114 = arith.constant 0 : index
    %95 = vector.load %arg10[%c2_112, %c1_113, %c0_114] : memref<18x18x8xf32, #tpu.memory_space<vmem>>, vector<16x16x8xf32>
    %96 = vector.shape_cast %95 : vector<16x16x8xf32> to vector<256x8xf32>
    %97 = tpu.transpose %96, [1, 0] : vector<256x8xf32> -> vector<8x256xf32>
    %c56 = arith.constant 56 : index
    %c0_115 = arith.constant 0 : index
    %98 = vector.load %arg12[%c56, %c0_115] : memref<72x256xf32, #tpu.memory_space<vmem>>, vector<8x256xf32>
    tpu.vector_store %arg12[%c56, %c0_115], %97 {strides = array<i32>} : memref<72x256xf32, #tpu.memory_space<vmem>>, vector<8x256xf32>,
    %c2_116 = arith.constant 2 : index
    %c2_117 = arith.constant 2 : index
    %c0_118 = arith.constant 0 : index
    %99 = vector.load %arg10[%c2_116, %c2_117, %c0_118] : memref<18x18x8xf32, #tpu.memory_space<vmem>>, vector<16x16x8xf32>
    %100 = vector.shape_cast %99 : vector<16x16x8xf32> to vector<256x8xf32>
    %101 = tpu.transpose %100, [1, 0] : vector<256x8xf32> -> vector<8x256xf32>
    %c64 = arith.constant 64 : index
    %c0_119 = arith.constant 0 : index
    %102 = vector.load %arg12[%c64, %c0_119] : memref<72x256xf32, #tpu.memory_space<vmem>>, vector<8x256xf32>
    tpu.vector_store %arg12[%c64, %c0_119], %101 {strides = array<i32>} : memref<72x256xf32, #tpu.memory_space<vmem>>, vector<8x256xf32>,
    %c0_120 = arith.constant 0 : index
    %c0_121 = arith.constant 0 : index
    %103 = vector.load %arg5[%c0_120, %c0_121] : memref<8x72xf32, #tpu.memory_space<vmem>>, vector<8x72xf32>
    %c0_122 = arith.constant 0 : index
    %c0_123 = arith.constant 0 : index
    %104 = vector.load %arg12[%c0_122, %c0_123] : memref<72x256xf32, #tpu.memory_space<vmem>>, vector<72x256xf32>
    %cst_124 = arith.constant dense<0.000000e+00> : vector<8x256xf32>
    %105 = tpu.matmul %103, %104, %cst_124 {dimension_numbers = #tpu.dot_dimension_numbers<[1], [0], [0], [1], [0, 0, 1, 1], [], []>} : vector<8x72xf32>, vector<72x256xf32>, vector<8x256xf32> -> vector<8x256xf32>
    %c0_125 = arith.constant 0 : index
    %c0_126 = arith.constant 0 : index
    %106 = vector.load %arg6[%c0_125, %c0_126] : memref<8x1xf32, #tpu.memory_space<vmem>>, vector<8x1xf32>
    %107 = vector.broadcast %106 : vector<8x1xf32> to vector<8x256xf32>
    %108 = arith.mulf %105, %107 : vector<8x256xf32>
    %c0_127 = arith.constant 0 : index
    %c0_128 = arith.constant 0 : index
    %109 = vector.load %arg7[%c0_127, %c0_128] : memref<8x1xf32, #tpu.memory_space<vmem>>, vector<8x1xf32>
    %110 = vector.broadcast %109 : vector<8x1xf32> to vector<8x256xf32>
    %111 = arith.addf %108, %110 : vector<8x256xf32>
    %cst_129 = arith.constant 0.000000e+00 : f32
    %112 = vector.broadcast %cst_129 : f32 to vector<8x256xf32>
    %113 = arith.maximumf %111, %112 : vector<8x256xf32>
    %114 = vector.shape_cast %113 : vector<8x256xf32> to vector<1x8x256xf32>
    %c0_130 = arith.constant 0 : index
    %c0_131 = arith.constant 0 : index
    %c0_132 = arith.constant 0 : index
    %115 = vector.load %arg8[%c0_130, %c0_131, %c0_132] : memref<1x8x256xf32, #tpu.memory_space<vmem>>, vector<1x8x256xf32>
    tpu.vector_store %arg8[%c0_130, %c0_131, %c0_132], %114 {strides = array<i32>} : memref<1x8x256xf32, #tpu.memory_space<vmem>>, vector<1x8x256xf32>,
    return
  }
  func.func @transform_0(%arg0: i32) -> (i32, i32, i32) {
    %c0_i32 = arith.constant 0 : i32
    %c0_i32_0 = arith.constant 0 : i32
    %c0_i32_1 = arith.constant 0 : i32
    return %arg0, %c0_i32, %c0_i32_0 : i32, i32, i32
  }
  func.func @transform_1(%arg0: i32) -> (i32, i32) {
    %c0_i32 = arith.constant 0 : i32
    %c0_i32_0 = arith.constant 0 : i32
    %c0_i32_1 = arith.constant 0 : i32
    return %c0_i32, %c0_i32_0 : i32, i32
  }
  func.func @transform_2(%arg0: i32) -> (i32, i32) {
    %c0_i32 = arith.constant 0 : i32
    %c0_i32_0 = arith.constant 0 : i32
    %c0_i32_1 = arith.constant 0 : i32
    return %c0_i32, %c0_i32_0 : i32, i32
  }
  func.func @transform_3(%arg0: i32) -> (i32, i32) {
    %c0_i32 = arith.constant 0 : i32
    %c0_i32_0 = arith.constant 0 : i32
    %c0_i32_1 = arith.constant 0 : i32
    return %c0_i32, %c0_i32_0 : i32, i32
  }
  func.func @transform_4(%arg0: i32) -> (i32, i32) {
    %c0_i32 = arith.constant 0 : i32
    %c0_i32_0 = arith.constant 0 : i32
    %c0_i32_1 = arith.constant 0 : i32
    return %c0_i32, %c0_i32_0 : i32, i32
  }
  func.func @transform_5(%arg0: i32) -> (i32, i32) {
    %c0_i32 = arith.constant 0 : i32
    %c0_i32_0 = arith.constant 0 : i32
    %c0_i32_1 = arith.constant 0 : i32
    return %c0_i32, %c0_i32_0 : i32, i32
  }
  func.func @transform_6(%arg0: i32) -> (i32, i32) {
    %c0_i32 = arith.constant 0 : i32
    %c0_i32_0 = arith.constant 0 : i32
    %c0_i32_1 = arith.constant 0 : i32
    return %c0_i32, %c0_i32_0 : i32, i32
  }
  func.func @transform_7(%arg0: i32) -> (i32, i32, i32) {
    %c0_i32 = arith.constant 0 : i32
    %c0_i32_0 = arith.constant 0 : i32
    %c0_i32_1 = arith.constant 0 : i32
    return %arg0, %c0_i32, %c0_i32_0 : i32, i32, i32
  }
}

</mosaic_0001>

<llo_original>
// kernel: tpu_custom_call.1
$region0: #{tpu_custom_call.1}
  #allocation0 [shape = 'u32[]', space=smem, size = 0x4, offset = 0x4, fixed_abs, tag = 'smem constant byte address 0x4 - core index']
  #allocation1 [shape = 'u32[72,128]{1,0:T(1,128)}', space=vmem, size = 0x9000, scoped, tag = 'internal scratch']
  #allocation2 [shape = 'f32[18,18,4]{2,1,0:T(8,128)}', space=vmem, size = 0x36000, scoped, tag = 'scratch operand']
  #allocation3 [shape = 'f32[18,18,8]{2,1,0:T(8,128)}', space=vmem, size = 0x36000, scoped, tag = 'scratch operand']
  #allocation4 [shape = 'f32[36,256]{1,0:T(8,128)}', space=vmem, size = 0xa000, scoped, tag = 'scratch operand']
  #allocation5 [shape = 'f32[72,256]{1,0:T(8,128)}', space=vmem, size = 0x12000, scoped, tag = 'scratch operand']
  %s0 = inlined_call_operand.vmem [shape: f32[2,4,256], index: 0, kind: input, shape index: {}]
  %s1 = inlined_call_operand.vmem [shape: f32[8,36], index: 1, kind: input, shape index: {}]
  %s2 = inlined_call_operand.vmem [shape: f32[8,1], index: 2, kind: input, shape index: {}]
  %s3 = inlined_call_operand.vmem [shape: f32[8,1], index: 3, kind: input, shape index: {}]
  %s4 = inlined_call_operand.vmem [shape: f32[8,72], index: 4, kind: input, shape index: {}]
  %s5 = inlined_call_operand.vmem [shape: f32[8,1], index: 5, kind: input, shape index: {}]
  %s6 = inlined_call_operand.vmem [shape: f32[8,1], index: 6, kind: input, shape index: {}]
  %s7 = inlined_call_operand.hbm [shape: f32[2,8,256], index: 7, kind: output, shape index: {}]
  %s8 = sld [smem:[#allocation0]]
  $region61: #{tpu_custom_call.1} parent=0
    _
  %s10 = ssub.s32 1, %s8
  %s11 = scalar_select 0, %s10, %s8
  $region1: #{tpu_custom_call.1} parent=0
    #allocation6 [shape = 'u8[16384]{0}', space=vmem, size = 0x4000, scoped, tag = 'output window, operand 0']
    #allocation7 [shape = 's32[2]{0}', space=sflag, size = 0x8, scoped, tag = 'scoped memory for tpu_custom_call.1']
    %12 = vsyncpa [#allocation7], 0
    %s13 = scalar_lea.sflag [#allocation7], 1
    %14 = vsyncpa %s13, 0
    loop: start=0, step=1, limit=4
    $region2: #{tpu_custom_call.1} parent=1 // loop_pre_header
      _
    $region3: #{tpu_custom_call.1} parent=1 // loop_header
      %s16 = sphi 0, %s20
      %p17 = scmp.ge.s32.totalorder %s16, 4
      %s26 = sphi 0, %s28
      %s29 = sphi 0, %s26
      %s30 = sphi 0, %s29
      %s46 = sphi 0, %s30
      %s50 = sphi 0, %s50
      %s52 = sphi 0, %s50
      %s53 = sphi 0, %s52
      %s67 = sphi 0, %s53
      %s71 = sphi 0, %s71
      %s73 = sphi 0, %s71
      %s74 = sphi 0, %s73
      %s88 = sphi 0, %s74
      %s92 = sphi 0, %s92
      %s94 = sphi 0, %s92
      %s95 = sphi 0, %s94
      %s109 = sphi 0, %s95
      %s113 = sphi 0, %s113
      %s115 = sphi 0, %s113
      %s116 = sphi 0, %s115
      %s130 = sphi 0, %s116
      %s134 = sphi 0, %s134
      %s136 = sphi 0, %s134
      %s137 = sphi 0, %s136
      %s151 = sphi 0, %s137
      %s155 = sphi 0, %s155
      %s157 = sphi 0, %s155
      %s158 = sphi 0, %s157
      %s172 = sphi 0, %s158
      %s178 = sphi 0, %s180
      %s181 = sphi 0, %s178
      %s182 = sphi 0, %s181
      %s198 = sphi 0, %s182
    $region4: #{tpu_custom_call.1} parent=1 // loop_header_branch
      %19 = sbr.rel (%p17) target = $region8
    $region5: #{tpu_custom_call.1} parent=1 // loop_body
      %s21 = ssub.s32 %s16, 1
      %s22 = ssub.s32 %s16, 2
      %s23 = sadd.s32 %s16, 1
      %s24 = ssub.s32 %s16, %s23
      %p25 = scmp.eq.s32.totalorder %s24, 0
      %s27 = sadd.s32 %s26, 1
      %s28 = scalar_select %p25, %s26, %s27
      %p31 = pneg %p25
      %p32 = scmp.eq.s32.totalorder %s16, 1
      %p33 = por %p31, %p32
      %p34 = scmp.ne.s32.totalorder %s26, %s29
      %p35 = scmp.eq.s32.totalorder %s16, 0
      %p36 = por %p34, %p35
      %p37 = scmp.ne.s32.totalorder %s26, %s29
      %p38 = scmp.eq.s32.totalorder %s21, 1
      %p39 = por %p37, %p38
      %p40 = scmp.ne.s32.totalorder %s29, %s30
      %p41 = scmp.eq.s32.totalorder %s21, 0
      %p42 = por %p40, %p41
      %p43 = scmp.ne.s32.totalorder %s29, %s30
      %p44 = scmp.eq.s32.totalorder %s22, 1
      %p45 = por %p43, %p44
      %p47 = scmp.ne.s32.totalorder %s30, %s46
      %p48 = scmp.eq.s32.totalorder %s22, 0
      %p49 = por %p47, %p48
      %s51 = sadd.s32 %s50, 1
      %p54 = scmp.eq.s32.totalorder %s16, 1
      %p55 = scmp.ne.s32.totalorder %s50, %s52
      %p56 = scmp.eq.s32.totalorder %s16, 0
      %p57 = por %p55, %p56
      %p58 = scmp.ne.s32.totalorder %s50, %s52
      %p59 = scmp.eq.s32.totalorder %s21, 1
      %p60 = por %p58, %p59
      %p61 = scmp.ne.s32.totalorder %s52, %s53
      %p62 = scmp.eq.s32.totalorder %s21, 0
      %p63 = por %p61, %p62
      %p64 = scmp.ne.s32.totalorder %s52, %s53
      %p65 = scmp.eq.s32.totalorder %s22, 1
      %p66 = por %p64, %p65
      %p68 = scmp.ne.s32.totalorder %s53, %s67
      %p69 = scmp.eq.s32.totalorder %s22, 0
      %p70 = por %p68, %p69
      %s72 = sadd.s32 %s71, 1
      %p75 = scmp.eq.s32.totalorder %s16, 1
      %p76 = scmp.ne.s32.totalorder %s71, %s73
      %p77 = scmp.eq.s32.totalorder %s16, 0
      %p78 = por %p76, %p77
      %p79 = scmp.ne.s32.totalorder %s71, %s73
      %p80 = scmp.eq.s32.totalorder %s21, 1
      %p81 = por %p79, %p80
      %p82 = scmp.ne.s32.totalorder %s73, %s74
      %p83 = scmp.eq.s32.totalorder %s21, 0
      %p84 = por %p82, %p83
      %p85 = scmp.ne.s32.totalorder %s73, %s74
      %p86 = scmp.eq.s32.totalorder %s22, 1
      %p87 = por %p85, %p86
      %p89 = scmp.ne.s32.totalorder %s74, %s88
      %p90 = scmp.eq.s32.totalorder %s22, 0
      %p91 = por %p89, %p90
      %s93 = sadd.s32 %s92, 1
      %p96 = scmp.eq.s32.totalorder %s16, 1
      %p97 = scmp.ne.s32.totalorder %s92, %s94
      %p98 = scmp.eq.s32.totalorder %s16, 0
      %p99 = por %p97, %p98
      %p100 = scmp.ne.s32.totalorder %s92, %s94
      %p101 = scmp.eq.s32.totalorder %s21, 1
      %p102 = por %p100, %p101
      %p103 = scmp.ne.s32.totalorder %s94, %s95
      %p104 = scmp.eq.s32.totalorder %s21, 0
      %p105 = por %p103, %p104
      %p106 = scmp.ne.s32.totalorder %s94, %s95
      %p107 = scmp.eq.s32.totalorder %s22, 1
      %p108 = por %p106, %p107
      %p110 = scmp.ne.s32.totalorder %s95, %s109
      %p111 = scmp.eq.s32.totalorder %s22, 0
      %p112 = por %p110, %p111
      %s114 = sadd.s32 %s113, 1
      %p117 = scmp.eq.s32.totalorder %s16, 1
      %p118 = scmp.ne.s32.totalorder %s113, %s115
      %p119 = scmp.eq.s32.totalorder %s16, 0
      %p120 = por %p118, %p119
      %p121 = scmp.ne.s32.totalorder %s113, %s115
      %p122 = scmp.eq.s32.totalorder %s21, 1
      %p123 = por %p121, %p122
      %p124 = scmp.ne.s32.totalorder %s115, %s116
      %p125 = scmp.eq.s32.totalorder %s21, 0
      %p126 = por %p124, %p125
      %p127 = scmp.ne.s32.totalorder %s115, %s116
      %p128 = scmp.eq.s32.totalorder %s22, 1
      %p129 = por %p127, %p128
      %p131 = scmp.ne.s32.totalorder %s116, %s130
      %p132 = scmp.eq.s32.totalorder %s22, 0
      %p133 = por %p131, %p132
      %s135 = sadd.s32 %s134, 1
      %p138 = scmp.eq.s32.totalorder %s16, 1
      %p139 = scmp.ne.s32.totalorder %s134, %s136
      %p140 = scmp.eq.s32.totalorder %s16, 0
      %p141 = por %p139, %p140
      %p142 = scmp.ne.s32.totalorder %s134, %s136
      %p143 = scmp.eq.s32.totalorder %s21, 1
      %p144 = por %p142, %p143
      %p145 = scmp.ne.s32.totalorder %s136, %s137
      %p146 = scmp.eq.s32.totalorder %s21, 0
      %p147 = por %p145, %p146
      %p148 = scmp.ne.s32.totalorder %s136, %s137
      %p149 = scmp.eq.s32.totalorder %s22, 1
      %p150 = por %p148, %p149
      %p152 = scmp.ne.s32.totalorder %s137, %s151
      %p153 = scmp.eq.s32.totalorder %s22, 0
      %p154 = por %p152, %p153
      %s156 = sadd.s32 %s155, 1
      %p159 = scmp.eq.s32.totalorder %s16, 1
      %p160 = scmp.ne.s32.totalorder %s155, %s157
      %p161 = scmp.eq.s32.totalorder %s16, 0
      %p162 = por %p160, %p161
      %p163 = scmp.ne.s32.totalorder %s155, %s157
      %p164 = scmp.eq.s32.totalorder %s21, 1
      %p165 = por %p163, %p164
      %p166 = scmp.ne.s32.totalorder %s157, %s158
      %p167 = scmp.eq.s32.totalorder %s21, 0
      %p168 = por %p166, %p167
      %p169 = scmp.ne.s32.totalorder %s157, %s158
      %p170 = scmp.eq.s32.totalorder %s22, 1
      %p171 = por %p169, %p170
      %p173 = scmp.ne.s32.totalorder %s158, %s172
      %p174 = scmp.eq.s32.totalorder %s22, 0
      %p175 = por %p173, %p174
      %s176 = ssub.s32 %s16, %s23
      %p177 = scmp.eq.s32.totalorder %s176, 0
      %s179 = sadd.s32 %s178, 1
      %s180 = scalar_select %p177, %s178, %s179
      %p183 = pneg %p177
      %p184 = scmp.eq.s32.totalorder %s16, 1
      %p185 = por %p183, %p184
      %p186 = scmp.ne.s32.totalorder %s178, %s181
      %p187 = scmp.eq.s32.totalorder %s16, 0
      %p188 = por %p186, %p187
      %p189 = scmp.ne.s32.totalorder %s178, %s181
      %p190 = scmp.eq.s32.totalorder %s21, 1
      %p191 = por %p189, %p190
      %p192 = scmp.ne.s32.totalorder %s181, %s182
      %p193 = scmp.eq.s32.totalorder %s21, 0
      %p194 = por %p192, %p193
      %p195 = scmp.ne.s32.totalorder %s181, %s182
      %p196 = scmp.eq.s32.totalorder %s22, 1
      %p197 = por %p195, %p196
      %p199 = scmp.ne.s32.totalorder %s182, %s198
      %p200 = scmp.eq.s32.totalorder %s22, 0
      %p201 = por %p199, %p200
      %p202 = scmp.le.s32.totalorder 1, %s16
      %p203 = scmp.lt.s32.totalorder %s16, 3
      %p204 = pnand %p202, %p203
      %p205 = pneg %p204
      // Predicated region
      $region9: #{tpu_custom_call.1} parent=5 // pred_check
        _
      $region10: #{tpu_custom_call.1} parent=5 // pred_check_branch
        %207 = sbr.rel (%p204) target = $region12
      $region11: #{tpu_custom_call.1} parent=5 // pred_region
        %s208 = ssub.s32 %s16, 1
        // Predicated region
        $region13: #{tpu_custom_call.1} parent=11 // pred_check
          %p209 = pneg %p63
        $region14: #{tpu_custom_call.1} parent=11 // pred_check_branch
          %211 = sbr.rel (%p209) target = $region16
        $region15: #{tpu_custom_call.1} parent=11 // pred_region
          _
        $region16: #{tpu_custom_call.1} parent=11 // pred_fallthru
          _
        // Predicated region
        $region17: #{tpu_custom_call.1} parent=11 // pred_check
          %p212 = pneg %p84
        $region18: #{tpu_custom_call.1} parent=11 // pred_check_branch
          %214 = sbr.rel (%p212) target = $region20
        $region19: #{tpu_custom_call.1} parent=11 // pred_region
          _
        $region20: #{tpu_custom_call.1} parent=11 // pred_fallthru
          _
        // Predicated region
        $region21: #{tpu_custom_call.1} parent=11 // pred_check
          %p215 = pneg %p105
        $region22: #{tpu_custom_call.1} parent=11 // pred_check_branch
          %217 = sbr.rel (%p215) target = $region24
        $region23: #{tpu_custom_call.1} parent=11 // pred_region
          _
        $region24: #{tpu_custom_call.1} parent=11 // pred_fallthru
          _
        // Predicated region
        $region25: #{tpu_custom_call.1} parent=11 // pred_check
          %p218 = pneg %p126
        $region26: #{tpu_custom_call.1} parent=11 // pred_check_branch
          %220 = sbr.rel (%p218) target = $region28
        $region27: #{tpu_custom_call.1} parent=11 // pred_region
          _
        $region28: #{tpu_custom_call.1} parent=11 // pred_fallthru
          _
        // Predicated region
        $region29: #{tpu_custom_call.1} parent=11 // pred_check
          %p221 = pneg %p147
        $region30: #{tpu_custom_call.1} parent=11 // pred_check_branch
          %223 = sbr.rel (%p221) target = $region32
        $region31: #{tpu_custom_call.1} parent=11 // pred_region
          _
        $region32: #{tpu_custom_call.1} parent=11 // pred_fallthru
          _
        // Predicated region
        $region33: #{tpu_custom_call.1} parent=11 // pred_check
          %p224 = pneg %p168
        $region34: #{tpu_custom_call.1} parent=11 // pred_check_branch
          %226 = sbr.rel (%p224) target = $region36
        $region35: #{tpu_custom_call.1} parent=11 // pred_region
          _
        $region36: #{tpu_custom_call.1} parent=11 // pred_fallthru
          _
      $region12: #{tpu_custom_call.1} parent=5 // pred_fallthru
        _
      %p227 = scmp.lt.s32.totalorder %s16, 2
      // Predicated region
      $region37: #{tpu_custom_call.1} parent=5 // pred_check
        %p228 = pneg %p227
      $region38: #{tpu_custom_call.1} parent=5 // pred_check_branch
        %230 = sbr.rel (%p228) target = $region40
      $region39: #{tpu_custom_call.1} parent=5 // pred_region
        // Predicated region
        $region41: #{tpu_custom_call.1} parent=39 // pred_check
          %p231 = pneg %p36
        $region42: #{tpu_custom_call.1} parent=39 // pred_check_branch
          %233 = sbr.rel (%p231) target = $region44
        $region43: #{tpu_custom_call.1} parent=39 // pred_region
          %p234 = scmp.lt.s32.totalorder %s16, 1
          %s235 = scalar_select %p234, %s16, 1
          %s236 = smul.addr %s235, 2
          %s237 = smul.addr %s236, 4
          %s238 = scalar_lea.vmem %s0, %s237
        $region44: #{tpu_custom_call.1} parent=39 // pred_fallthru
          _
      $region40: #{tpu_custom_call.1} parent=5 // pred_fallthru
        _
      %p239 = scmp.le.s32.totalorder 1, %s16
      %p240 = scmp.lt.s32.totalorder %s16, 3
      %p241 = pnand %p239, %p240
      %p242 = pneg %p241
      // Predicated region
      $region45: #{tpu_custom_call.1} parent=5 // pred_check
        _
      $region46: #{tpu_custom_call.1} parent=5 // pred_check_branch
        %244 = sbr.rel (%p241) target = $region48
      $region47: #{tpu_custom_call.1} parent=5 // pred_region
        %s245 = ssub.s32 %s16, 1
        %p246 = scmp.lt.s32.totalorder %s21, 1
        %s247 = scalar_select %p246, %s21, 1
        %s248 = smul.addr %s247, 2
        %s249 = smul.addr %s248, 4
        %s250 = scalar_lea.vmem %s0, %s249
        %p251 = pneg %p42
        %p252 = pneg %p39
        %p253 = pneg %p63
        %p254 = pneg %p60
        %p255 = pneg %p84
        %p256 = pneg %p81
        %p257 = pneg %p105
        %p258 = pneg %p102
        %p259 = pneg %p126
        %p260 = pneg %p123
        %p261 = pneg %p147
        %p262 = pneg %p144
        %p263 = pneg %p168
        %p264 = pneg %p165
        %p265 = pneg %p194
        %p266 = pneg %p191
        %s267 = sand.u32 %s181, 1
        %s268 = scalar_lea.sflag [#allocation7], %s267
        %s269 = sand.u32 %s181, 1
        %s270 = smul.addr %s269, 16
        %s271 = scalar_lea.vmem [#allocation6], %s270
        %p272 = scmp.lt.s32.totalorder %s21, 1
        %s273 = scalar_select %p272, %s21, 1
        %s274 = smul.addr %s273, 2
        %s275 = smul.addr %s274, 4
        %s276 = scalar_lea.vmem %s0, %s275
        %v277 = vld [vmem:[%s276] sm:$0xff]
        %279 = vst [vmem:[#allocation1] ss:$2 sm:$0xff] %v277
        %v280 = vld.sshfl [vmem:[#allocation1] sm:$0xff pattern:$0x75316420]
        %v281 = vld.sshfl [vmem:[#allocation1 + $0x8] sm:$0xff pattern:$0x75316420]
        %284 = vxpose.xlu0.b32.start [1/16] %v280, 128
        %285 = vxpose.xlu0.b32.cont [2/16] 0.0, 128
        %286 = vxpose.xlu0.b32.cont [3/16] 0.0, 128
        %287 = vxpose.xlu0.b32.cont [4/16] 0.0, 128
        %288 = vxpose.xlu0.b32.cont [5/16] 0.0, 128
        %289 = vxpose.xlu0.b32.cont [6/16] 0.0, 128
        %290 = vxpose.xlu0.b32.cont [7/16] 0.0, 128
        %291 = vxpose.xlu0.b32.cont [8/16] 0.0, 128
        %292 = vxpose.xlu0.b32.cont [9/16] 0.0, 128
        %293 = vxpose.xlu0.b32.cont [10/16] 0.0, 128
        %294 = vxpose.xlu0.b32.cont [11/16] 0.0, 128
        %295 = vxpose.xlu0.b32.cont [12/16] 0.0, 128
        %296 = vxpose.xlu0.b32.cont [13/16] 0.0, 128
        %297 = vxpose.xlu0.b32.cont [14/16] 0.0, 128
        %298 = vxpose.xlu0.b32.cont [15/16] 0.0, 128
        %299 = vxpose.xlu0.b32.end [16/16] 0.0, 128
        %v300 = vpop.trf.xlu0
        %v301 = vpop.trf.xlu0
        %v302 = vpop.trf.xlu0
        %v303 = vpop.trf.xlu0
        %v304 = vpop.trf.xlu0
        %v305 = vpop.trf.xlu0
        %v306 = vpop.trf.xlu0
        %v307 = vpop.trf.xlu0
        %v308 = vpop.trf.xlu0
        %v309 = vpop.trf.xlu0
        %v310 = vpop.trf.xlu0
        %v311 = vpop.trf.xlu0
        %v312 = vpop.trf.xlu0
        %v313 = vpop.trf.xlu0
        %v314 = vpop.trf.xlu0
        %v315 = vpop.trf.xlu0
        %316 = vxpose.xlu0.b32.start [1/16] %v281, 128
        %317 = vxpose.xlu0.b32.cont [2/16] 0.0, 128
        %318 = vxpose.xlu0.b32.cont [3/16] 0.0, 128
        %319 = vxpose.xlu0.b32.cont [4/16] 0.0, 128
        %320 = vxpose.xlu0.b32.cont [5/16] 0.0, 128
        %321 = vxpose.xlu0.b32.cont [6/16] 0.0, 128
        %322 = vxpose.xlu0.b32.cont [7/16] 0.0, 128
        %323 = vxpose.xlu0.b32.cont [8/16] 0.0, 128
        %324 = vxpose.xlu0.b32.cont [9/16] 0.0, 128
        %325 = vxpose.xlu0.b32.cont [10/16] 0.0, 128
        %326 = vxpose.xlu0.b32.cont [11/16] 0.0, 128
        %327 = vxpose.xlu0.b32.cont [12/16] 0.0, 128
        %328 = vxpose.xlu0.b32.cont [13/16] 0.0, 128
        %329 = vxpose.xlu0.b32.cont [14/16] 0.0, 128
        %330 = vxpose.xlu0.b32.cont [15/16] 0.0, 128
        %331 = vxpose.xlu0.b32.end [16/16] 0.0, 128
        %v332 = vpop.trf.xlu0
        %v333 = vpop.trf.xlu0
        %v334 = vpop.trf.xlu0
        %v335 = vpop.trf.xlu0
        %v336 = vpop.trf.xlu0
        %v337 = vpop.trf.xlu0
        %v338 = vpop.trf.xlu0
        %v339 = vpop.trf.xlu0
        %v340 = vpop.trf.xlu0
        %v341 = vpop.trf.xlu0
        %v342 = vpop.trf.xlu0
        %v343 = vpop.trf.xlu0
        %v344 = vpop.trf.xlu0
        %v345 = vpop.trf.xlu0
        %v346 = vpop.trf.xlu0
        %v347 = vpop.trf.xlu0
        %vm348 = vcmask 31744
        %349 = vst.msk [vmem:[#allocation2] sm:$0xff] %vm348, 0.0
        %350 = vst.msk [vmem:[#allocation2 + $0x8] sm:$0xff] %vm348, 0.0
        %vm351 = vcmask 25600
        %352 = vst.msk [vmem:[#allocation2 + $0x10] sm:$0x3] %vm351, 0.0
        %s353 = scalar_lea.vmem [#allocation2], 408
        %354 = vst.msk [vmem:[%s353] sm:$0xff] %vm348, 0.0
        %355 = vst.msk [vmem:[%s353 + $0x8] sm:$0xff] %vm348, 0.0
        %356 = vst.msk [vmem:[%s353 + $0x10] sm:$0x3] %vm351, 0.0
        %vm357 = vcmask 24576
        %358 = vst.msk [vmem:[#allocation2] sm:$0x1] %vm357, 0.0
        %359 = vst.msk [vmem:[#allocation2 + $0x18] sm:$0x1] %vm357, 0.0
        %360 = vst.msk [vmem:[#allocation2 + $0x30] sm:$0x1] %vm357, 0.0
        %361 = vst.msk [vmem:[#allocation2 + $0x48] sm:$0x1] %vm357, 0.0
        %362 = vst.msk [vmem:[#allocation2 + $0x60] sm:$0x1] %vm357, 0.0
        %363 = vst.msk [vmem:[#allocation2 + $0x78] sm:$0x1] %vm357, 0.0
        %364 = vst.msk [vmem:[#allocation2 + $0x90] sm:$0x1] %vm357, 0.0
        %365 = vst.msk [vmem:[#allocation2 + $0xa8] sm:$0x1] %vm357, 0.0
        %366 = vst.msk [vmem:[#allocation2 + $0xc0] sm:$0x1] %vm357, 0.0
        %367 = vst.msk [vmem:[#allocation2 + $0xd8] sm:$0x1] %vm357, 0.0
        %368 = vst.msk [vmem:[#allocation2 + $0xf0] sm:$0x1] %vm357, 0.0
        %369 = vst.msk [vmem:[#allocation2 + $0x108] sm:$0x1] %vm357, 0.0
        %370 = vst.msk [vmem:[#allocation2 + $0x120] sm:$0x1] %vm357, 0.0
        %371 = vst.msk [vmem:[#allocation2 + $0x138] sm:$0x1] %vm357, 0.0
        %372 = vst.msk [vmem:[#allocation2 + $0x150] sm:$0x1] %vm357, 0.0
        %373 = vst.msk [vmem:[#allocation2 + $0x168] sm:$0x1] %vm357, 0.0
        %374 = vst.msk [vmem:[#allocation2 + $0x180] sm:$0x1] %vm357, 0.0
        %375 = vst.msk [vmem:[#allocation2 + $0x198] sm:$0x1] %vm357, 0.0
        %376 = vst.msk [vmem:[#allocation2 + $0x11] sm:$0x1] %vm357, 0.0
        %377 = vst.msk [vmem:[#allocation2 + $0x29] sm:$0x1] %vm357, 0.0
        %378 = vst.msk [vmem:[#allocation2 + $0x41] sm:$0x1] %vm357, 0.0
        %379 = vst.msk [vmem:[#allocation2 + $0x59] sm:$0x1] %vm357, 0.0
        %380 = vst.msk [vmem:[#allocation2 + $0x71] sm:$0x1] %vm357, 0.0
        %381 = vst.msk [vmem:[#allocation2 + $0x89] sm:$0x1] %vm357, 0.0
        %382 = vst.msk [vmem:[#allocation2 + $0xa1] sm:$0x1] %vm357, 0.0
        %383 = vst.msk [vmem:[#allocation2 + $0xb9] sm:$0x1] %vm357, 0.0
        %384 = vst.msk [vmem:[#allocation2 + $0xd1] sm:$0x1] %vm357, 0.0
        %385 = vst.msk [vmem:[#allocation2 + $0xe9] sm:$0x1] %vm357, 0.0
        %386 = vst.msk [vmem:[#allocation2 + $0x101] sm:$0x1] %vm357, 0.0
        %387 = vst.msk [vmem:[#allocation2 + $0x119] sm:$0x1] %vm357, 0.0
        %388 = vst.msk [vmem:[#allocation2 + $0x131] sm:$0x1] %vm357, 0.0
        %389 = vst.msk [vmem:[#allocation2 + $0x149] sm:$0x1] %vm357, 0.0
        %390 = vst.msk [vmem:[#allocation2 + $0x161] sm:$0x1] %vm357, 0.0
        %391 = vst.msk [vmem:[#allocation2 + $0x179] sm:$0x1] %vm357, 0.0
        %392 = vst.msk [vmem:[#allocation2 + $0x191] sm:$0x1] %vm357, 0.0
        %393 = vst.msk [vmem:[#allocation2 + $0x1a9] sm:$0x1] %vm357, 0.0
        %s394 = scalar_lea.vmem [#allocation2], 24
        %395 = vst.msk [vmem:[%s394 + $0x1] sm:$0xff] %vm348, %v300
        %396 = vst.msk [vmem:[%s394 + $0x9] sm:$0xff] %vm348, %v301
        %397 = vst.msk [vmem:[%s394 + $0x19] sm:$0xff] %vm348, %v302
        %398 = vst.msk [vmem:[%s394 + $0x21] sm:$0xff] %vm348, %v303
        %399 = vst.msk [vmem:[%s394 + $0x31] sm:$0xff] %vm348, %v304
        %400 = vst.msk [vmem:[%s394 + $0x39] sm:$0xff] %vm348, %v305
        %401 = vst.msk [vmem:[%s394 + $0x49] sm:$0xff] %vm348, %v306
        %402 = vst.msk [vmem:[%s394 + $0x51] sm:$0xff] %vm348, %v307
        %403 = vst.msk [vmem:[%s394 + $0x61] sm:$0xff] %vm348, %v308
        %404 = vst.msk [vmem:[%s394 + $0x69] sm:$0xff] %vm348, %v309
        %405 = vst.msk [vmem:[%s394 + $0x79] sm:$0xff] %vm348, %v310
        %406 = vst.msk [vmem:[%s394 + $0x81] sm:$0xff] %vm348, %v311
        %407 = vst.msk [vmem:[%s394 + $0x91] sm:$0xff] %vm348, %v312
        %408 = vst.msk [vmem:[%s394 + $0x99] sm:$0xff] %vm348, %v313
        %409 = vst.msk [vmem:[%s394 + $0xa9] sm:$0xff] %vm348, %v314
        %410 = vst.msk [vmem:[%s394 + $0xb1] sm:$0xff] %vm348, %v315
        %411 = vst.msk [vmem:[%s394 + $0xc1] sm:$0xff] %vm348, %v332
        %412 = vst.msk [vmem:[%s394 + $0xc9] sm:$0xff] %vm348, %v333
        %413 = vst.msk [vmem:[%s394 + $0xd9] sm:$0xff] %vm348, %v334
        %414 = vst.msk [vmem:[%s394 + $0xe1] sm:$0xff] %vm348, %v335
        %415 = vst.msk [vmem:[%s394 + $0xf1] sm:$0xff] %vm348, %v336
        %416 = vst.msk [vmem:[%s394 + $0xf9] sm:$0xff] %vm348, %v337
        %417 = vst.msk [vmem:[%s394 + $0x109] sm:$0xff] %vm348, %v338
        %418 = vst.msk [vmem:[%s394 + $0x111] sm:$0xff] %vm348, %v339
        %419 = vst.msk [vmem:[%s394 + $0x121] sm:$0xff] %vm348, %v340
        %420 = vst.msk [vmem:[%s394 + $0x129] sm:$0xff] %vm348, %v341
        %421 = vst.msk [vmem:[%s394 + $0x139] sm:$0xff] %vm348, %v342
        %422 = vst.msk [vmem:[%s394 + $0x141] sm:$0xff] %vm348, %v343
        %423 = vst.msk [vmem:[%s394 + $0x151] sm:$0xff] %vm348, %v344
        %424 = vst.msk [vmem:[%s394 + $0x159] sm:$0xff] %vm348, %v345
        %425 = vst.msk [vmem:[%s394 + $0x169] sm:$0xff] %vm348, %v346
        %426 = vst.msk [vmem:[%s394 + $0x171] sm:$0xff] %vm348, %v347
        %v427 = vld [vmem:[#allocation2] sm:$0xff]
        %v428 = vld [vmem:[#allocation2 + $0x8] sm:$0xff]
        %v429 = vld [vmem:[#allocation2 + $0x18] sm:$0xff]
        %v430 = vld [vmem:[#allocation2 + $0x20] sm:$0xff]
        %v431 = vld [vmem:[#allocation2 + $0x30] sm:$0xff]
        %v432 = vld [vmem:[#allocation2 + $0x38] sm:$0xff]
        %v433 = vld [vmem:[#allocation2 + $0x48] sm:$0xff]
        %v434 = vld [vmem:[#allocation2 + $0x50] sm:$0xff]
        %v435 = vld [vmem:[#allocation2 + $0x60] sm:$0xff]
        %v436 = vld [vmem:[#allocation2 + $0x68] sm:$0xff]
        %v437 = vld [vmem:[#allocation2 + $0x78] sm:$0xff]
        %v438 = vld [vmem:[#allocation2 + $0x80] sm:$0xff]
        %v439 = vld [vmem:[#allocation2 + $0x90] sm:$0xff]
        %v440 = vld [vmem:[#allocation2 + $0x98] sm:$0xff]
        %v441 = vld [vmem:[#allocation2 + $0xa8] sm:$0xff]
        %v442 = vld [vmem:[#allocation2 + $0xb0] sm:$0xff]
        %v443 = vld [vmem:[#allocation2 + $0xc0] sm:$0xff]
        %v444 = vld [vmem:[#allocation2 + $0xc8] sm:$0xff]
        %v445 = vld [vmem:[#allocation2 + $0xd8] sm:$0xff]
        %v446 = vld [vmem:[#allocation2 + $0xe0] sm:$0xff]
        %v447 = vld [vmem:[#allocation2 + $0xf0] sm:$0xff]
        %v448 = vld [vmem:[#allocation2 + $0xf8] sm:$0xff]
        %v449 = vld [vmem:[#allocation2 + $0x108] sm:$0xff]
        %v450 = vld [vmem:[#allocation2 + $0x110] sm:$0xff]
        %v451 = vld [vmem:[#allocation2 + $0x120] sm:$0xff]
        %v452 = vld [vmem:[#allocation2 + $0x128] sm:$0xff]
        %v453 = vld [vmem:[#allocation2 + $0x138] sm:$0xff]
        %v454 = vld [vmem:[#allocation2 + $0x140] sm:$0xff]
        %v455 = vld [vmem:[#allocation2 + $0x150] sm:$0xff]
        %v456 = vld [vmem:[#allocation2 + $0x158] sm:$0xff]
        %v457 = vld [vmem:[#allocation2 + $0x168] sm:$0xff]
        %v458 = vld [vmem:[#allocation2 + $0x170] sm:$0xff]
        %459 = vxpose.xlu0.b32.start [1/16] %v427, 128
        %460 = vxpose.xlu0.b32.cont [2/16] %v428, 128
        %461 = vxpose.xlu0.b32.cont [3/16] %v429, 128
        %462 = vxpose.xlu0.b32.cont [4/16] %v430, 128
        %463 = vxpose.xlu0.b32.cont [5/16] %v431, 128
        %464 = vxpose.xlu0.b32.cont [6/16] %v432, 128
        %465 = vxpose.xlu0.b32.cont [7/16] %v433, 128
        %466 = vxpose.xlu0.b32.cont [8/16] %v434, 128
        %467 = vxpose.xlu0.b32.cont [9/16] %v435, 128
        %468 = vxpose.xlu0.b32.cont [10/16] %v436, 128
        %469 = vxpose.xlu0.b32.cont [11/16] %v437, 128
        %470 = vxpose.xlu0.b32.cont [12/16] %v438, 128
        %471 = vxpose.xlu0.b32.cont [13/16] %v439, 128
        %472 = vxpose.xlu0.b32.cont [14/16] %v440, 128
        %473 = vxpose.xlu0.b32.cont [15/16] %v441, 128
        %474 = vxpose.xlu0.b32.end [16/16] %v442, 128
        %v475 = vpop.trf.xlu0
        %v476 = vpop.trf.xlu0
        %v477 = vpop.trf.xlu0
        %v478 = vpop.trf.xlu0
        %v479 = vpop.trf.xlu0
        %v480 = vpop.trf.xlu0
        %v481 = vpop.trf.xlu0
        %v482 = vpop.trf.xlu0
        %v483 = vpop.trf.xlu0
        %v484 = vpop.trf.xlu0
        %v485 = vpop.trf.xlu0
        %v486 = vpop.trf.xlu0
        %v487 = vpop.trf.xlu0
        %v488 = vpop.trf.xlu0
        %v489 = vpop.trf.xlu0
        %v490 = vpop.trf.xlu0
        %491 = vxpose.xlu0.b32.start [1/16] %v443, 128
        %492 = vxpose.xlu0.b32.cont [2/16] %v444, 128
        %493 = vxpose.xlu0.b32.cont [3/16] %v445, 128
        %494 = vxpose.xlu0.b32.cont [4/16] %v446, 128
        %495 = vxpose.xlu0.b32.cont [5/16] %v447, 128
        %496 = vxpose.xlu0.b32.cont [6/16] %v448, 128
        %497 = vxpose.xlu0.b32.cont [7/16] %v449, 128
        %498 = vxpose.xlu0.b32.cont [8/16] %v450, 128
        %499 = vxpose.xlu0.b32.cont [9/16] %v451, 128
        %500 = vxpose.xlu0.b32.cont [10/16] %v452, 128
        %501 = vxpose.xlu0.b32.cont [11/16] %v453, 128
        %502 = vxpose.xlu0.b32.cont [12/16] %v454, 128
        %503 = vxpose.xlu0.b32.cont [13/16] %v455, 128
        %504 = vxpose.xlu0.b32.cont [14/16] %v456, 128
        %505 = vxpose.xlu0.b32.cont [15/16] %v457, 128
        %506 = vxpose.xlu0.b32.end [16/16] %v458, 128
        %v507 = vpop.trf.xlu0
        %v508 = vpop.trf.xlu0
        %v509 = vpop.trf.xlu0
        %v510 = vpop.trf.xlu0
        %v511 = vpop.trf.xlu0
        %v512 = vpop.trf.xlu0
        %v513 = vpop.trf.xlu0
        %v514 = vpop.trf.xlu0
        %v515 = vpop.trf.xlu0
        %v516 = vpop.trf.xlu0
        %v517 = vpop.trf.xlu0
        %v518 = vpop.trf.xlu0
        %v519 = vpop.trf.xlu0
        %v520 = vpop.trf.xlu0
        %v521 = vpop.trf.xlu0
        %v522 = vpop.trf.xlu0
        %523 = vst [vmem:[#allocation4] sm:$0xf] %v475
        %524 = vst [vmem:[#allocation4 + $0x8] sm:$0xf] %v507
        %v525 = vld [vmem:[#allocation2 + $0x1] sm:$0xff]
        %v526 = vld [vmem:[#allocation2 + $0x9] sm:$0xff]
        %v527 = vld [vmem:[#allocation2 + $0x19] sm:$0xff]
        %v528 = vld [vmem:[#allocation2 + $0x21] sm:$0xff]
        %v529 = vld [vmem:[#allocation2 + $0x31] sm:$0xff]
        %v530 = vld [vmem:[#allocation2 + $0x39] sm:$0xff]
        %v531 = vld [vmem:[#allocation2 + $0x49] sm:$0xff]
        %v532 = vld [vmem:[#allocation2 + $0x51] sm:$0xff]
        %v533 = vld [vmem:[#allocation2 + $0x61] sm:$0xff]
        %v534 = vld [vmem:[#allocation2 + $0x69] sm:$0xff]
        %v535 = vld [vmem:[#allocation2 + $0x79] sm:$0xff]
        %v536 = vld [vmem:[#allocation2 + $0x81] sm:$0xff]
        %v537 = vld [vmem:[#allocation2 + $0x91] sm:$0xff]
        %v538 = vld [vmem:[#allocation2 + $0x99] sm:$0xff]
        %v539 = vld [vmem:[#allocation2 + $0xa9] sm:$0xff]
        %v540 = vld [vmem:[#allocation2 + $0xb1] sm:$0xff]
        %v541 = vld [vmem:[#allocation2 + $0xc1] sm:$0xff]
        %v542 = vld [vmem:[#allocation2 + $0xc9] sm:$0xff]
        %v543 = vld [vmem:[#allocation2 + $0xd9] sm:$0xff]
        %v544 = vld [vmem:[#allocation2 + $0xe1] sm:$0xff]
        %v545 = vld [vmem:[#allocation2 + $0xf1] sm:$0xff]
        %v546 = vld [vmem:[#allocation2 + $0xf9] sm:$0xff]
        %v547 = vld [vmem:[#allocation2 + $0x109] sm:$0xff]
        %v548 = vld [vmem:[#allocation2 + $0x111] sm:$0xff]
        %v549 = vld [vmem:[#allocation2 + $0x121] sm:$0xff]
        %v550 = vld [vmem:[#allocation2 + $0x129] sm:$0xff]
        %v551 = vld [vmem:[#allocation2 + $0x139] sm:$0xff]
        %v552 = vld [vmem:[#allocation2 + $0x141] sm:$0xff]
        %v553 = vld [vmem:[#allocation2 + $0x151] sm:$0xff]
        %v554 = vld [vmem:[#allocation2 + $0x159] sm:$0xff]
        %v555 = vld [vmem:[#allocation2 + $0x169] sm:$0xff]
        %v556 = vld [vmem:[#allocation2 + $0x171] sm:$0xff]
        %557 = vxpose.xlu0.b32.start [1/16] %v525, 128
        %558 = vxpose.xlu0.b32.cont [2/16] %v526, 128
        %559 = vxpose.xlu0.b32.cont [3/16] %v527, 128
        %560 = vxpose.xlu0.b32.cont [4/16] %v528, 128
        %561 = vxpose.xlu0.b32.cont [5/16] %v529, 128
        %562 = vxpose.xlu0.b32.cont [6/16] %v530, 128
        %563 = vxpose.xlu0.b32.cont [7/16] %v531, 128
        %564 = vxpose.xlu0.b32.cont [8/16] %v532, 128
        %565 = vxpose.xlu0.b32.cont [9/16] %v533, 128
        %566 = vxpose.xlu0.b32.cont [10/16] %v534, 128
        %567 = vxpose.xlu0.b32.cont [11/16] %v535, 128
        %568 = vxpose.xlu0.b32.cont [12/16] %v536, 128
        %569 = vxpose.xlu0.b32.cont [13/16] %v537, 128
        %570 = vxpose.xlu0.b32.cont [14/16] %v538, 128
        %571 = vxpose.xlu0.b32.cont [15/16] %v539, 128
        %572 = vxpose.xlu0.b32.end [16/16] %v540, 128
        %v573 = vpop.trf.xlu0
        %v574 = vpop.trf.xlu0
        %v575 = vpop.trf.xlu0
        %v576 = vpop.trf.xlu0
        %v577 = vpop.trf.xlu0
        %v578 = vpop.trf.xlu0
        %v579 = vpop.trf.xlu0
        %v580 = vpop.trf.xlu0
        %v581 = vpop.trf.xlu0
        %v582 = vpop.trf.xlu0
        %v583 = vpop.trf.xlu0
        %v584 = vpop.trf.xlu0
        %v585 = vpop.trf.xlu0
        %v586 = vpop.trf.xlu0
        %v587 = vpop.trf.xlu0
        %v588 = vpop.trf.xlu0
        %589 = vxpose.xlu0.b32.start [1/16] %v541, 128
        %590 = vxpose.xlu0.b32.cont [2/16] %v542, 128
        %591 = vxpose.xlu0.b32.cont [3/16] %v543, 128
        %592 = vxpose.xlu0.b32.cont [4/16] %v544, 128
        %593 = vxpose.xlu0.b32.cont [5/16] %v545, 128
        %594 = vxpose.xlu0.b32.cont [6/16] %v546, 128
        %595 = vxpose.xlu0.b32.cont [7/16] %v547, 128
        %596 = vxpose.xlu0.b32.cont [8/16] %v548, 128
        %597 = vxpose.xlu0.b32.cont [9/16] %v549, 128
        %598 = vxpose.xlu0.b32.cont [10/16] %v550, 128
        %599 = vxpose.xlu0.b32.cont [11/16] %v551, 128
        %600 = vxpose.xlu0.b32.cont [12/16] %v552, 128
        %601 = vxpose.xlu0.b32.cont [13/16] %v553, 128
        %602 = vxpose.xlu0.b32.cont [14/16] %v554, 128
        %603 = vxpose.xlu0.b32.cont [15/16] %v555, 128
        %604 = vxpose.xlu0.b32.end [16/16] %v556, 128
        %v605 = vpop.trf.xlu0
        %v606 = vpop.trf.xlu0
        %v607 = vpop.trf.xlu0
        %v608 = vpop.trf.xlu0
        %v609 = vpop.trf.xlu0
        %v610 = vpop.trf.xlu0
        %v611 = vpop.trf.xlu0
        %v612 = vpop.trf.xlu0
        %v613 = vpop.trf.xlu0
        %v614 = vpop.trf.xlu0
        %v615 = vpop.trf.xlu0
        %v616 = vpop.trf.xlu0
        %v617 = vpop.trf.xlu0
        %v618 = vpop.trf.xlu0
        %v619 = vpop.trf.xlu0
        %v620 = vpop.trf.xlu0
        %v623 = vrot.slane %v573, 4
        %v624 = vrot.slane %v605, 4
        %627 = vst [vmem:[#allocation4] sm:$0xf0] %v623
        %628 = vst [vmem:[#allocation4 + $0x8] sm:$0xf0] %v624
        %v629 = vld [vmem:[#allocation2 + $0x2] sm:$0xff]
        %v630 = vld [vmem:[#allocation2 + $0xa] sm:$0xff]
        %v631 = vld [vmem:[#allocation2 + $0x1a] sm:$0xff]
        %v632 = vld [vmem:[#allocation2 + $0x22] sm:$0xff]
        %v633 = vld [vmem:[#allocation2 + $0x32] sm:$0xff]
        %v634 = vld [vmem:[#allocation2 + $0x3a] sm:$0xff]
        %v635 = vld [vmem:[#allocation2 + $0x4a] sm:$0xff]
        %v636 = vld [vmem:[#allocation2 + $0x52] sm:$0xff]
        %v637 = vld [vmem:[#allocation2 + $0x62] sm:$0xff]
        %v638 = vld [vmem:[#allocation2 + $0x6a] sm:$0xff]
        %v639 = vld [vmem:[#allocation2 + $0x7a] sm:$0xff]
        %v640 = vld [vmem:[#allocation2 + $0x82] sm:$0xff]
        %v641 = vld [vmem:[#allocation2 + $0x92] sm:$0xff]
        %v642 = vld [vmem:[#allocation2 + $0x9a] sm:$0xff]
        %v643 = vld [vmem:[#allocation2 + $0xaa] sm:$0xff]
        %v644 = vld [vmem:[#allocation2 + $0xb2] sm:$0xff]
        %v645 = vld [vmem:[#allocation2 + $0xc2] sm:$0xff]
        %v646 = vld [vmem:[#allocation2 + $0xca] sm:$0xff]
        %v647 = vld [vmem:[#allocation2 + $0xda] sm:$0xff]
        %v648 = vld [vmem:[#allocation2 + $0xe2] sm:$0xff]
        %v649 = vld [vmem:[#allocation2 + $0xf2] sm:$0xff]
        %v650 = vld [vmem:[#allocation2 + $0xfa] sm:$0xff]
        %v651 = vld [vmem:[#allocation2 + $0x10a] sm:$0xff]
        %v652 = vld [vmem:[#allocation2 + $0x112] sm:$0xff]
        %v653 = vld [vmem:[#allocation2 + $0x122] sm:$0xff]
        %v654 = vld [vmem:[#allocation2 + $0x12a] sm:$0xff]
        %v655 = vld [vmem:[#allocation2 + $0x13a] sm:$0xff]
        %v656 = vld [vmem:[#allocation2 + $0x142] sm:$0xff]
        %v657 = vld [vmem:[#allocation2 + $0x152] sm:$0xff]
        %v658 = vld [vmem:[#allocation2 + $0x15a] sm:$0xff]
        %v659 = vld [vmem:[#allocation2 + $0x16a] sm:$0xff]
        %v660 = vld [vmem:[#allocation2 + $0x172] sm:$0xff]
        %661 = vxpose.xlu0.b32.start [1/16] %v629, 128
        %662 = vxpose.xlu0.b32.cont [2/16] %v630, 128
        %663 = vxpose.xlu0.b32.cont [3/16] %v631, 128
        %664 = vxpose.xlu0.b32.cont [4/16] %v632, 128
        %665 = vxpose.xlu0.b32.cont [5/16] %v633, 128
        %666 = vxpose.xlu0.b32.cont [6/16] %v634, 128
        %667 = vxpose.xlu0.b32.cont [7/16] %v635, 128
        %668 = vxpose.xlu0.b32.cont [8/16] %v636, 128
        %669 = vxpose.xlu0.b32.cont [9/16] %v637, 128
        %670 = vxpose.xlu0.b32.cont [10/16] %v638, 128
        %671 = vxpose.xlu0.b32.cont [11/16] %v639, 128
        %672 = vxpose.xlu0.b32.cont [12/16] %v640, 128
        %673 = vxpose.xlu0.b32.cont [13/16] %v641, 128
        %674 = vxpose.xlu0.b32.cont [14/16] %v642, 128
        %675 = vxpose.xlu0.b32.cont [15/16] %v643, 128
        %676 = vxpose.xlu0.b32.end [16/16] %v644, 128
        %v677 = vpop.trf.xlu0
        %v678 = vpop.trf.xlu0
        %v679 = vpop.trf.xlu0
        %v680 = vpop.trf.xlu0
        %v681 = vpop.trf.xlu0
        %v682 = vpop.trf.xlu0
        %v683 = vpop.trf.xlu0
        %v684 = vpop.trf.xlu0
        %v685 = vpop.trf.xlu0
        %v686 = vpop.trf.xlu0
        %v687 = vpop.trf.xlu0
        %v688 = vpop.trf.xlu0
        %v689 = vpop.trf.xlu0
        %v690 = vpop.trf.xlu0
        %v691 = vpop.trf.xlu0
        %v692 = vpop.trf.xlu0
        %693 = vxpose.xlu0.b32.start [1/16] %v645, 128
        %694 = vxpose.xlu0.b32.cont [2/16] %v646, 128
        %695 = vxpose.xlu0.b32.cont [3/16] %v647, 128
        %696 = vxpose.xlu0.b32.cont [4/16] %v648, 128
        %697 = vxpose.xlu0.b32.cont [5/16] %v649, 128
        %698 = vxpose.xlu0.b32.cont [6/16] %v650, 128
        %699 = vxpose.xlu0.b32.cont [7/16] %v651, 128
        %700 = vxpose.xlu0.b32.cont [8/16] %v652, 128
        %701 = vxpose.xlu0.b32.cont [9/16] %v653, 128
        %702 = vxpose.xlu0.b32.cont [10/16] %v654, 128
        %703 = vxpose.xlu0.b32.cont [11/16] %v655, 128
        %704 = vxpose.xlu0.b32.cont [12/16] %v656, 128
        %705 = vxpose.xlu0.b32.cont [13/16] %v657, 128
        %706 = vxpose.xlu0.b32.cont [14/16] %v658, 128
        %707 = vxpose.xlu0.b32.cont [15/16] %v659, 128
        %708 = vxpose.xlu0.b32.end [16/16] %v660, 128
        %v709 = vpop.trf.xlu0
        %v710 = vpop.trf.xlu0
        %v711 = vpop.trf.xlu0
        %v712 = vpop.trf.xlu0
        %v713 = vpop.trf.xlu0
        %v714 = vpop.trf.xlu0
        %v715 = vpop.trf.xlu0
        %v716 = vpop.trf.xlu0
        %v717 = vpop.trf.xlu0
        %v718 = vpop.trf.xlu0
        %v719 = vpop.trf.xlu0
        %v720 = vpop.trf.xlu0
        %v721 = vpop.trf.xlu0
        %v722 = vpop.trf.xlu0
        %v723 = vpop.trf.xlu0
        %v724 = vpop.trf.xlu0
        %725 = vst [vmem:[#allocation4 + $0x10] sm:$0xf] %v677
        %726 = vst [vmem:[#allocation4 + $0x18] sm:$0xf] %v709
        %v727 = vld [vmem:[%s394] sm:$0xff]
        %v728 = vld [vmem:[%s394 + $0x8] sm:$0xff]
        %v729 = vld [vmem:[%s394 + $0x18] sm:$0xff]
        %v730 = vld [vmem:[%s394 + $0x20] sm:$0xff]
        %v731 = vld [vmem:[%s394 + $0x30] sm:$0xff]
        %v732 = vld [vmem:[%s394 + $0x38] sm:$0xff]
        %v733 = vld [vmem:[%s394 + $0x48] sm:$0xff]
        %v734 = vld [vmem:[%s394 + $0x50] sm:$0xff]
        %v735 = vld [vmem:[%s394 + $0x60] sm:$0xff]
        %v736 = vld [vmem:[%s394 + $0x68] sm:$0xff]
        %v737 = vld [vmem:[%s394 + $0x78] sm:$0xff]
        %v738 = vld [vmem:[%s394 + $0x80] sm:$0xff]
        %v739 = vld [vmem:[%s394 + $0x90] sm:$0xff]
        %v740 = vld [vmem:[%s394 + $0x98] sm:$0xff]
        %v741 = vld [vmem:[%s394 + $0xa8] sm:$0xff]
        %v742 = vld [vmem:[%s394 + $0xb0] sm:$0xff]
        %v743 = vld [vmem:[%s394 + $0xc0] sm:$0xff]
        %v744 = vld [vmem:[%s394 + $0xc8] sm:$0xff]
        %v745 = vld [vmem:[%s394 + $0xd8] sm:$0xff]
        %v746 = vld [vmem:[%s394 + $0xe0] sm:$0xff]
        %v747 = vld [vmem:[%s394 + $0xf0] sm:$0xff]
        %v748 = vld [vmem:[%s394 + $0xf8] sm:$0xff]
        %v749 = vld [vmem:[%s394 + $0x108] sm:$0xff]
        %v750 = vld [vmem:[%s394 + $0x110] sm:$0xff]
        %v751 = vld [vmem:[%s394 + $0x120] sm:$0xff]
        %v752 = vld [vmem:[%s394 + $0x128] sm:$0xff]
        %v753 = vld [vmem:[%s394 + $0x138] sm:$0xff]
        %v754 = vld [vmem:[%s394 + $0x140] sm:$0xff]
        %v755 = vld [vmem:[%s394 + $0x150] sm:$0xff]
        %v756 = vld [vmem:[%s394 + $0x158] sm:$0xff]
        %v757 = vld [vmem:[%s394 + $0x168] sm:$0xff]
        %v758 = vld [vmem:[%s394 + $0x170] sm:$0xff]
        %759 = vxpose.xlu0.b32.start [1/16] %v727, 128
        %760 = vxpose.xlu0.b32.cont [2/16] %v728, 128
        %761 = vxpose.xlu0.b32.cont [3/16] %v729, 128
        %762 = vxpose.xlu0.b32.cont [4/16] %v730, 128
        %763 = vxpose.xlu0.b32.cont [5/16] %v731, 128
        %764 = vxpose.xlu0.b32.cont [6/16] %v732, 128
        %765 = vxpose.xlu0.b32.cont [7/16] %v733, 128
        %766 = vxpose.xlu0.b32.cont [8/16] %v734, 128
        %767 = vxpose.xlu0.b32.cont [9/16] %v735, 128
        %768 = vxpose.xlu0.b32.cont [10/16] %v736, 128
        %769 = vxpose.xlu0.b32.cont [11/16] %v737, 128
        %770 = vxpose.xlu0.b32.cont [12/16] %v738, 128
        %771 = vxpose.xlu0.b32.cont [13/16] %v739, 128
        %772 = vxpose.xlu0.b32.cont [14/16] %v740, 128
        %773 = vxpose.xlu0.b32.cont [15/16] %v741, 128
        %774 = vxpose.xlu0.b32.end [16/16] %v742, 128
        %v775 = vpop.trf.xlu0
        %v776 = vpop.trf.xlu0
        %v777 = vpop.trf.xlu0
        %v778 = vpop.trf.xlu0
        %v779 = vpop.trf.xlu0
        %v780 = vpop.trf.xlu0
        %v781 = vpop.trf.xlu0
        %v782 = vpop.trf.xlu0
        %v783 = vpop.trf.xlu0
        %v784 = vpop.trf.xlu0
        %v785 = vpop.trf.xlu0
        %v786 = vpop.trf.xlu0
        %v787 = vpop.trf.xlu0
        %v788 = vpop.trf.xlu0
        %v789 = vpop.trf.xlu0
        %v790 = vpop.trf.xlu0
        %791 = vxpose.xlu0.b32.start [1/16] %v743, 128
        %792 = vxpose.xlu0.b32.cont [2/16] %v744, 128
        %793 = vxpose.xlu0.b32.cont [3/16] %v745, 128
        %794 = vxpose.xlu0.b32.cont [4/16] %v746, 128
        %795 = vxpose.xlu0.b32.cont [5/16] %v747, 128
        %796 = vxpose.xlu0.b32.cont [6/16] %v748, 128
        %797 = vxpose.xlu0.b32.cont [7/16] %v749, 128
        %798 = vxpose.xlu0.b32.cont [8/16] %v750, 128
        %799 = vxpose.xlu0.b32.cont [9/16] %v751, 128
        %800 = vxpose.xlu0.b32.cont [10/16] %v752, 128
        %801 = vxpose.xlu0.b32.cont [11/16] %v753, 128
        %802 = vxpose.xlu0.b32.cont [12/16] %v754, 128
        %803 = vxpose.xlu0.b32.cont [13/16] %v755, 128
        %804 = vxpose.xlu0.b32.cont [14/16] %v756, 128
        %805 = vxpose.xlu0.b32.cont [15/16] %v757, 128
        %806 = vxpose.xlu0.b32.end [16/16] %v758, 128
        %v807 = vpop.trf.xlu0
        %v808 = vpop.trf.xlu0
        %v809 = vpop.trf.xlu0
        %v810 = vpop.trf.xlu0
        %v811 = vpop.trf.xlu0
        %v812 = vpop.trf.xlu0
        %v813 = vpop.trf.xlu0
        %v814 = vpop.trf.xlu0
        %v815 = vpop.trf.xlu0
        %v816 = vpop.trf.xlu0
        %v817 = vpop.trf.xlu0
        %v818 = vpop.trf.xlu0
        %v819 = vpop.trf.xlu0
        %v820 = vpop.trf.xlu0
        %v821 = vpop.trf.xlu0
        %v822 = vpop.trf.xlu0
        %v825 = vrot.slane %v775, 4
        %v826 = vrot.slane %v807, 4
        %829 = vst [vmem:[#allocation4 + $0x10] sm:$0xf0] %v825
        %830 = vst [vmem:[#allocation4 + $0x18] sm:$0xf0] %v826
        %v831 = vld [vmem:[%s394 + $0x1] sm:$0xff]
        %v832 = vld [vmem:[%s394 + $0x9] sm:$0xff]
        %v833 = vld [vmem:[%s394 + $0x19] sm:$0xff]
        %v834 = vld [vmem:[%s394 + $0x21] sm:$0xff]
        %v835 = vld [vmem:[%s394 + $0x31] sm:$0xff]
        %v836 = vld [vmem:[%s394 + $0x39] sm:$0xff]
        %v837 = vld [vmem:[%s394 + $0x49] sm:$0xff]
        %v838 = vld [vmem:[%s394 + $0x51] sm:$0xff]
        %v839 = vld [vmem:[%s394 + $0x61] sm:$0xff]
        %v840 = vld [vmem:[%s394 + $0x69] sm:$0xff]
        %v841 = vld [vmem:[%s394 + $0x79] sm:$0xff]
        %v842 = vld [vmem:[%s394 + $0x81] sm:$0xff]
        %v843 = vld [vmem:[%s394 + $0x91] sm:$0xff]
        %v844 = vld [vmem:[%s394 + $0x99] sm:$0xff]
        %v845 = vld [vmem:[%s394 + $0xa9] sm:$0xff]
        %v846 = vld [vmem:[%s394 + $0xb1] sm:$0xff]
        %v847 = vld [vmem:[%s394 + $0xc1] sm:$0xff]
        %v848 = vld [vmem:[%s394 + $0xc9] sm:$0xff]
        %v849 = vld [vmem:[%s394 + $0xd9] sm:$0xff]
        %v850 = vld [vmem:[%s394 + $0xe1] sm:$0xff]
        %v851 = vld [vmem:[%s394 + $0xf1] sm:$0xff]
        %v852 = vld [vmem:[%s394 + $0xf9] sm:$0xff]
        %v853 = vld [vmem:[%s394 + $0x109] sm:$0xff]
        %v854 = vld [vmem:[%s394 + $0x111] sm:$0xff]
        %v855 = vld [vmem:[%s394 + $0x121] sm:$0xff]
        %v856 = vld [vmem:[%s394 + $0x129] sm:$0xff]
        %v857 = vld [vmem:[%s394 + $0x139] sm:$0xff]
        %v858 = vld [vmem:[%s394 + $0x141] sm:$0xff]
        %v859 = vld [vmem:[%s394 + $0x151] sm:$0xff]
        %v860 = vld [vmem:[%s394 + $0x159] sm:$0xff]
        %v861 = vld [vmem:[%s394 + $0x169] sm:$0xff]
        %v862 = vld [vmem:[%s394 + $0x171] sm:$0xff]
        %863 = vxpose.xlu0.b32.start [1/16] %v831, 128
        %864 = vxpose.xlu0.b32.cont [2/16] %v832, 128
        %865 = vxpose.xlu0.b32.cont [3/16] %v833, 128
        %866 = vxpose.xlu0.b32.cont [4/16] %v834, 128
        %867 = vxpose.xlu0.b32.cont [5/16] %v835, 128
        %868 = vxpose.xlu0.b32.cont [6/16] %v836, 128
        %869 = vxpose.xlu0.b32.cont [7/16] %v837, 128
        %870 = vxpose.xlu0.b32.cont [8/16] %v838, 128
        %871 = vxpose.xlu0.b32.cont [9/16] %v839, 128
        %872 = vxpose.xlu0.b32.cont [10/16] %v840, 128
        %873 = vxpose.xlu0.b32.cont [11/16] %v841, 128
        %874 = vxpose.xlu0.b32.cont [12/16] %v842, 128
        %875 = vxpose.xlu0.b32.cont [13/16] %v843, 128
        %876 = vxpose.xlu0.b32.cont [14/16] %v844, 128
        %877 = vxpose.xlu0.b32.cont [15/16] %v845, 128
        %878 = vxpose.xlu0.b32.end [16/16] %v846, 128
        %v879 = vpop.trf.xlu0
        %v880 = vpop.trf.xlu0
        %v881 = vpop.trf.xlu0
        %v882 = vpop.trf.xlu0
        %v883 = vpop.trf.xlu0
        %v884 = vpop.trf.xlu0
        %v885 = vpop.trf.xlu0
        %v886 = vpop.trf.xlu0
        %v887 = vpop.trf.xlu0
        %v888 = vpop.trf.xlu0
        %v889 = vpop.trf.xlu0
        %v890 = vpop.trf.xlu0
        %v891 = vpop.trf.xlu0
        %v892 = vpop.trf.xlu0
        %v893 = vpop.trf.xlu0
        %v894 = vpop.trf.xlu0
        %895 = vxpose.xlu0.b32.start [1/16] %v847, 128
        %896 = vxpose.xlu0.b32.cont [2/16] %v848, 128
        %897 = vxpose.xlu0.b32.cont [3/16] %v849, 128
        %898 = vxpose.xlu0.b32.cont [4/16] %v850, 128
        %899 = vxpose.xlu0.b32.cont [5/16] %v851, 128
        %900 = vxpose.xlu0.b32.cont [6/16] %v852, 128
        %901 = vxpose.xlu0.b32.cont [7/16] %v853, 128
        %902 = vxpose.xlu0.b32.cont [8/16] %v854, 128
        %903 = vxpose.xlu0.b32.cont [9/16] %v855, 128
        %904 = vxpose.xlu0.b32.cont [10/16] %v856, 128
        %905 = vxpose.xlu0.b32.cont [11/16] %v857, 128
        %906 = vxpose.xlu0.b32.cont [12/16] %v858, 128
        %907 = vxpose.xlu0.b32.cont [13/16] %v859, 128
        %908 = vxpose.xlu0.b32.cont [14/16] %v860, 128
        %909 = vxpose.xlu0.b32.cont [15/16] %v861, 128
        %910 = vxpose.xlu0.b32.end [16/16] %v862, 128
        %v911 = vpop.trf.xlu0
        %v912 = vpop.trf.xlu0
        %v913 = vpop.trf.xlu0
        %v914 = vpop.trf.xlu0
        %v915 = vpop.trf.xlu0
        %v916 = vpop.trf.xlu0
        %v917 = vpop.trf.xlu0
        %v918 = vpop.trf.xlu0
        %v919 = vpop.trf.xlu0
        %v920 = vpop.trf.xlu0
        %v921 = vpop.trf.xlu0
        %v922 = vpop.trf.xlu0
        %v923 = vpop.trf.xlu0
        %v924 = vpop.trf.xlu0
        %v925 = vpop.trf.xlu0
        %v926 = vpop.trf.xlu0
        %927 = vst [vmem:[#allocation4 + $0x20] sm:$0xf] %v879
        %928 = vst [vmem:[#allocation4 + $0x28] sm:$0xf] %v911
        %v929 = vld [vmem:[%s394 + $0x2] sm:$0xff]
        %v930 = vld [vmem:[%s394 + $0xa] sm:$0xff]
        %v931 = vld [vmem:[%s394 + $0x1a] sm:$0xff]
        %v932 = vld [vmem:[%s394 + $0x22] sm:$0xff]
        %v933 = vld [vmem:[%s394 + $0x32] sm:$0xff]
        %v934 = vld [vmem:[%s394 + $0x3a] sm:$0xff]
        %v935 = vld [vmem:[%s394 + $0x4a] sm:$0xff]
        %v936 = vld [vmem:[%s394 + $0x52] sm:$0xff]
        %v937 = vld [vmem:[%s394 + $0x62] sm:$0xff]
        %v938 = vld [vmem:[%s394 + $0x6a] sm:$0xff]
        %v939 = vld [vmem:[%s394 + $0x7a] sm:$0xff]
        %v940 = vld [vmem:[%s394 + $0x82] sm:$0xff]
        %v941 = vld [vmem:[%s394 + $0x92] sm:$0xff]
        %v942 = vld [vmem:[%s394 + $0x9a] sm:$0xff]
        %v943 = vld [vmem:[%s394 + $0xaa] sm:$0xff]
        %v944 = vld [vmem:[%s394 + $0xb2] sm:$0xff]
        %v945 = vld [vmem:[%s394 + $0xc2] sm:$0xff]
        %v946 = vld [vmem:[%s394 + $0xca] sm:$0xff]
        %v947 = vld [vmem:[%s394 + $0xda] sm:$0xff]
        %v948 = vld [vmem:[%s394 + $0xe2] sm:$0xff]
        %v949 = vld [vmem:[%s394 + $0xf2] sm:$0xff]
        %v950 = vld [vmem:[%s394 + $0xfa] sm:$0xff]
        %v951 = vld [vmem:[%s394 + $0x10a] sm:$0xff]
        %v952 = vld [vmem:[%s394 + $0x112] sm:$0xff]
        %v953 = vld [vmem:[%s394 + $0x122] sm:$0xff]
        %v954 = vld [vmem:[%s394 + $0x12a] sm:$0xff]
        %v955 = vld [vmem:[%s394 + $0x13a] sm:$0xff]
        %v956 = vld [vmem:[%s394 + $0x142] sm:$0xff]
        %v957 = vld [vmem:[%s394 + $0x152] sm:$0xff]
        %v958 = vld [vmem:[%s394 + $0x15a] sm:$0xff]
        %v959 = vld [vmem:[%s394 + $0x16a] sm:$0xff]
        %v960 = vld [vmem:[%s394 + $0x172] sm:$0xff]
        %961 = vxpose.xlu0.b32.start [1/16] %v929, 128
        %962 = vxpose.xlu0.b32.cont [2/16] %v930, 128
        %963 = vxpose.xlu0.b32.cont [3/16] %v931, 128
        %964 = vxpose.xlu0.b32.cont [4/16] %v932, 128
        %965 = vxpose.xlu0.b32.cont [5/16] %v933, 128
        %966 = vxpose.xlu0.b32.cont [6/16] %v934, 128
        %967 = vxpose.xlu0.b32.cont [7/16] %v935, 128
        %968 = vxpose.xlu0.b32.cont [8/16] %v936, 128
        %969 = vxpose.xlu0.b32.cont [9/16] %v937, 128
        %970 = vxpose.xlu0.b32.cont [10/16] %v938, 128
        %971 = vxpose.xlu0.b32.cont [11/16] %v939, 128
        %972 = vxpose.xlu0.b32.cont [12/16] %v940, 128
        %973 = vxpose.xlu0.b32.cont [13/16] %v941, 128
        %974 = vxpose.xlu0.b32.cont [14/16] %v942, 128
        %975 = vxpose.xlu0.b32.cont [15/16] %v943, 128
        %976 = vxpose.xlu0.b32.end [16/16] %v944, 128
        %v977 = vpop.trf.xlu0
        %v978 = vpop.trf.xlu0
        %v979 = vpop.trf.xlu0
        %v980 = vpop.trf.xlu0
        %v981 = vpop.trf.xlu0
        %v982 = vpop.trf.xlu0
        %v983 = vpop.trf.xlu0
        %v984 = vpop.trf.xlu0
        %v985 = vpop.trf.xlu0
        %v986 = vpop.trf.xlu0
        %v987 = vpop.trf.xlu0
        %v988 = vpop.trf.xlu0
        %v989 = vpop.trf.xlu0
        %v990 = vpop.trf.xlu0
        %v991 = vpop.trf.xlu0
        %v992 = vpop.trf.xlu0
        %993 = vxpose.xlu0.b32.start [1/16] %v945, 128
        %994 = vxpose.xlu0.b32.cont [2/16] %v946, 128
        %995 = vxpose.xlu0.b32.cont [3/16] %v947, 128
        %996 = vxpose.xlu0.b32.cont [4/16] %v948, 128
        %997 = vxpose.xlu0.b32.cont [5/16] %v949, 128
        %998 = vxpose.xlu0.b32.cont [6/16] %v950, 128
        %999 = vxpose.xlu0.b32.cont [7/16] %v951, 128
        %1000 = vxpose.xlu0.b32.cont [8/16] %v952, 128
        %1001 = vxpose.xlu0.b32.cont [9/16] %v953, 128
        %1002 = vxpose.xlu0.b32.cont [10/16] %v954, 128
        %1003 = vxpose.xlu0.b32.cont [11/16] %v955, 128
        %1004 = vxpose.xlu0.b32.cont [12/16] %v956, 128
        %1005 = vxpose.xlu0.b32.cont [13/16] %v957, 128
        %1006 = vxpose.xlu0.b32.cont [14/16] %v958, 128
        %1007 = vxpose.xlu0.b32.cont [15/16] %v959, 128
        %1008 = vxpose.xlu0.b32.end [16/16] %v960, 128
        %v1009 = vpop.trf.xlu0
        %v1010 = vpop.trf.xlu0
        %v1011 = vpop.trf.xlu0
        %v1012 = vpop.trf.xlu0
        %v1013 = vpop.trf.xlu0
        %v1014 = vpop.trf.xlu0
        %v1015 = vpop.trf.xlu0
        %v1016 = vpop.trf.xlu0
        %v1017 = vpop.trf.xlu0
        %v1018 = vpop.trf.xlu0
        %v1019 = vpop.trf.xlu0
        %v1020 = vpop.trf.xlu0
        %v1021 = vpop.trf.xlu0
        %v1022 = vpop.trf.xlu0
        %v1023 = vpop.trf.xlu0
        %v1024 = vpop.trf.xlu0
        %v1027 = vrot.slane %v977, 4
        %v1028 = vrot.slane %v1009, 4
        %1031 = vst [vmem:[#allocation4 + $0x20] sm:$0xf0] %v1027
        %1032 = vst [vmem:[#allocation4 + $0x28] sm:$0xf0] %v1028
        %s1033 = scalar_lea.vmem [#allocation2], 48
        %v1034 = vld [vmem:[%s1033] sm:$0xff]
        %v1035 = vld [vmem:[%s1033 + $0x8] sm:$0xff]
        %v1036 = vld [vmem:[%s1033 + $0x18] sm:$0xff]
        %v1037 = vld [vmem:[%s1033 + $0x20] sm:$0xff]
        %v1038 = vld [vmem:[%s1033 + $0x30] sm:$0xff]
        %v1039 = vld [vmem:[%s1033 + $0x38] sm:$0xff]
        %v1040 = vld [vmem:[%s1033 + $0x48] sm:$0xff]
        %v1041 = vld [vmem:[%s1033 + $0x50] sm:$0xff]
        %v1042 = vld [vmem:[%s1033 + $0x60] sm:$0xff]
        %v1043 = vld [vmem:[%s1033 + $0x68] sm:$0xff]
        %v1044 = vld [vmem:[%s1033 + $0x78] sm:$0xff]
        %v1045 = vld [vmem:[%s1033 + $0x80] sm:$0xff]
        %v1046 = vld [vmem:[%s1033 + $0x90] sm:$0xff]
        %v1047 = vld [vmem:[%s1033 + $0x98] sm:$0xff]
        %v1048 = vld [vmem:[%s1033 + $0xa8] sm:$0xff]
        %v1049 = vld [vmem:[%s1033 + $0xb0] sm:$0xff]
        %v1050 = vld [vmem:[%s1033 + $0xc0] sm:$0xff]
        %v1051 = vld [vmem:[%s1033 + $0xc8] sm:$0xff]
        %v1052 = vld [vmem:[%s1033 + $0xd8] sm:$0xff]
        %v1053 = vld [vmem:[%s1033 + $0xe0] sm:$0xff]
        %v1054 = vld [vmem:[%s1033 + $0xf0] sm:$0xff]
        %v1055 = vld [vmem:[%s1033 + $0xf8] sm:$0xff]
        %v1056 = vld [vmem:[%s1033 + $0x108] sm:$0xff]
        %v1057 = vld [vmem:[%s1033 + $0x110] sm:$0xff]
        %v1058 = vld [vmem:[%s1033 + $0x120] sm:$0xff]
        %v1059 = vld [vmem:[%s1033 + $0x128] sm:$0xff]
        %v1060 = vld [vmem:[%s1033 + $0x138] sm:$0xff]
        %v1061 = vld [vmem:[%s1033 + $0x140] sm:$0xff]
        %v1062 = vld [vmem:[%s1033 + $0x150] sm:$0xff]
        %v1063 = vld [vmem:[%s1033 + $0x158] sm:$0xff]
        %v1064 = vld [vmem:[%s1033 + $0x168] sm:$0xff]
        %v1065 = vld [vmem:[%s1033 + $0x170] sm:$0xff]
        %1066 = vxpose.xlu0.b32.start [1/16] %v1034, 128
        %1067 = vxpose.xlu0.b32.cont [2/16] %v1035, 128
        %1068 = vxpose.xlu0.b32.cont [3/16] %v1036, 128
        %1069 = vxpose.xlu0.b32.cont [4/16] %v1037, 128
        %1070 = vxpose.xlu0.b32.cont [5/16] %v1038, 128
        %1071 = vxpose.xlu0.b32.cont [6/16] %v1039, 128
        %1072 = vxpose.xlu0.b32.cont [7/16] %v1040, 128
        %1073 = vxpose.xlu0.b32.cont [8/16] %v1041, 128
        %1074 = vxpose.xlu0.b32.cont [9/16] %v1042, 128
        %1075 = vxpose.xlu0.b32.cont [10/16] %v1043, 128
        %1076 = vxpose.xlu0.b32.cont [11/16] %v1044, 128
        %1077 = vxpose.xlu0.b32.cont [12/16] %v1045, 128
        %1078 = vxpose.xlu0.b32.cont [13/16] %v1046, 128
        %1079 = vxpose.xlu0.b32.cont [14/16] %v1047, 128
        %1080 = vxpose.xlu0.b32.cont [15/16] %v1048, 128
        %1081 = vxpose.xlu0.b32.end [16/16] %v1049, 128
        %v1082 = vpop.trf.xlu0
        %v1083 = vpop.trf.xlu0
        %v1084 = vpop.trf.xlu0
        %v1085 = vpop.trf.xlu0
        %v1086 = vpop.trf.xlu0
        %v1087 = vpop.trf.xlu0
        %v1088 = vpop.trf.xlu0
        %v1089 = vpop.trf.xlu0
        %v1090 = vpop.trf.xlu0
        %v1091 = vpop.trf.xlu0
        %v1092 = vpop.trf.xlu0
        %v1093 = vpop.trf.xlu0
        %v1094 = vpop.trf.xlu0
        %v1095 = vpop.trf.xlu0
        %v1096 = vpop.trf.xlu0
        %v1097 = vpop.trf.xlu0
        %1098 = vxpose.xlu0.b32.start [1/16] %v1050, 128
        %1099 = vxpose.xlu0.b32.cont [2/16] %v1051, 128
        %1100 = vxpose.xlu0.b32.cont [3/16] %v1052, 128
        %1101 = vxpose.xlu0.b32.cont [4/16] %v1053, 128
        %1102 = vxpose.xlu0.b32.cont [5/16] %v1054, 128
        %1103 = vxpose.xlu0.b32.cont [6/16] %v1055, 128
        %1104 = vxpose.xlu0.b32.cont [7/16] %v1056, 128
        %1105 = vxpose.xlu0.b32.cont [8/16] %v1057, 128
        %1106 = vxpose.xlu0.b32.cont [9/16] %v1058, 128
        %1107 = vxpose.xlu0.b32.cont [10/16] %v1059, 128
        %1108 = vxpose.xlu0.b32.cont [11/16] %v1060, 128
        %1109 = vxpose.xlu0.b32.cont [12/16] %v1061, 128
        %1110 = vxpose.xlu0.b32.cont [13/16] %v1062, 128
        %1111 = vxpose.xlu0.b32.cont [14/16] %v1063, 128
        %1112 = vxpose.xlu0.b32.cont [15/16] %v1064, 128
        %1113 = vxpose.xlu0.b32.end [16/16] %v1065, 128
        %v1114 = vpop.trf.xlu0
        %v1115 = vpop.trf.xlu0
        %v1116 = vpop.trf.xlu0
        %v1117 = vpop.trf.xlu0
        %v1118 = vpop.trf.xlu0
        %v1119 = vpop.trf.xlu0
        %v1120 = vpop.trf.xlu0
        %v1121 = vpop.trf.xlu0
        %v1122 = vpop.trf.xlu0
        %v1123 = vpop.trf.xlu0
        %v1124 = vpop.trf.xlu0
        %v1125 = vpop.trf.xlu0
        %v1126 = vpop.trf.xlu0
        %v1127 = vpop.trf.xlu0
        %v1128 = vpop.trf.xlu0
        %v1129 = vpop.trf.xlu0
        %1130 = vst [vmem:[#allocation4 + $0x30] sm:$0xf] %v1082
        %1131 = vst [vmem:[#allocation4 + $0x38] sm:$0xf] %v1114
        %v1132 = vld [vmem:[%s1033 + $0x1] sm:$0xff]
        %v1133 = vld [vmem:[%s1033 + $0x9] sm:$0xff]
        %v1134 = vld [vmem:[%s1033 + $0x19] sm:$0xff]
        %v1135 = vld [vmem:[%s1033 + $0x21] sm:$0xff]
        %v1136 = vld [vmem:[%s1033 + $0x31] sm:$0xff]
        %v1137 = vld [vmem:[%s1033 + $0x39] sm:$0xff]
        %v1138 = vld [vmem:[%s1033 + $0x49] sm:$0xff]
        %v1139 = vld [vmem:[%s1033 + $0x51] sm:$0xff]
        %v1140 = vld [vmem:[%s1033 + $0x61] sm:$0xff]
        %v1141 = vld [vmem:[%s1033 + $0x69] sm:$0xff]
        %v1142 = vld [vmem:[%s1033 + $0x79] sm:$0xff]
        %v1143 = vld [vmem:[%s1033 + $0x81] sm:$0xff]
        %v1144 = vld [vmem:[%s1033 + $0x91] sm:$0xff]
        %v1145 = vld [vmem:[%s1033 + $0x99] sm:$0xff]
        %v1146 = vld [vmem:[%s1033 + $0xa9] sm:$0xff]
        %v1147 = vld [vmem:[%s1033 + $0xb1] sm:$0xff]
        %v1148 = vld [vmem:[%s1033 + $0xc1] sm:$0xff]
        %v1149 = vld [vmem:[%s1033 + $0xc9] sm:$0xff]
        %v1150 = vld [vmem:[%s1033 + $0xd9] sm:$0xff]
        %v1151 = vld [vmem:[%s1033 + $0xe1] sm:$0xff]
        %v1152 = vld [vmem:[%s1033 + $0xf1] sm:$0xff]
        %v1153 = vld [vmem:[%s1033 + $0xf9] sm:$0xff]
        %v1154 = vld [vmem:[%s1033 + $0x109] sm:$0xff]
        %v1155 = vld [vmem:[%s1033 + $0x111] sm:$0xff]
        %v1156 = vld [vmem:[%s1033 + $0x121] sm:$0xff]
        %v1157 = vld [vmem:[%s1033 + $0x129] sm:$0xff]
        %v1158 = vld [vmem:[%s1033 + $0x139] sm:$0xff]
        %v1159 = vld [vmem:[%s1033 + $0x141] sm:$0xff]
        %v1160 = vld [vmem:[%s1033 + $0x151] sm:$0xff]
        %v1161 = vld [vmem:[%s1033 + $0x159] sm:$0xff]
        %v1162 = vld [vmem:[%s1033 + $0x169] sm:$0xff]
        %v1163 = vld [vmem:[%s1033 + $0x171] sm:$0xff]
        %1164 = vxpose.xlu0.b32.start [1/16] %v1132, 128
        %1165 = vxpose.xlu0.b32.cont [2/16] %v1133, 128
        %1166 = vxpose.xlu0.b32.cont [3/16] %v1134, 128
        %1167 = vxpose.xlu0.b32.cont [4/16] %v1135, 128
        %1168 = vxpose.xlu0.b32.cont [5/16] %v1136, 128
        %1169 = vxpose.xlu0.b32.cont [6/16] %v1137, 128
        %1170 = vxpose.xlu0.b32.cont [7/16] %v1138, 128
        %1171 = vxpose.xlu0.b32.cont [8/16] %v1139, 128
        %1172 = vxpose.xlu0.b32.cont [9/16] %v1140, 128
        %1173 = vxpose.xlu0.b32.cont [10/16] %v1141, 128
        %1174 = vxpose.xlu0.b32.cont [11/16] %v1142, 128
        %1175 = vxpose.xlu0.b32.cont [12/16] %v1143, 128
        %1176 = vxpose.xlu0.b32.cont [13/16] %v1144, 128
        %1177 = vxpose.xlu0.b32.cont [14/16] %v1145, 128
        %1178 = vxpose.xlu0.b32.cont [15/16] %v1146, 128
        %1179 = vxpose.xlu0.b32.end [16/16] %v1147, 128
        %v1180 = vpop.trf.xlu0
        %v1181 = vpop.trf.xlu0
        %v1182 = vpop.trf.xlu0
        %v1183 = vpop.trf.xlu0
        %v1184 = vpop.trf.xlu0
        %v1185 = vpop.trf.xlu0
        %v1186 = vpop.trf.xlu0
        %v1187 = vpop.trf.xlu0
        %v1188 = vpop.trf.xlu0
        %v1189 = vpop.trf.xlu0
        %v1190 = vpop.trf.xlu0
        %v1191 = vpop.trf.xlu0
        %v1192 = vpop.trf.xlu0
        %v1193 = vpop.trf.xlu0
        %v1194 = vpop.trf.xlu0
        %v1195 = vpop.trf.xlu0
        %1196 = vxpose.xlu0.b32.start [1/16] %v1148, 128
        %1197 = vxpose.xlu0.b32.cont [2/16] %v1149, 128
        %1198 = vxpose.xlu0.b32.cont [3/16] %v1150, 128
        %1199 = vxpose.xlu0.b32.cont [4/16] %v1151, 128
        %1200 = vxpose.xlu0.b32.cont [5/16] %v1152, 128
        %1201 = vxpose.xlu0.b32.cont [6/16] %v1153, 128
        %1202 = vxpose.xlu0.b32.cont [7/16] %v1154, 128
        %1203 = vxpose.xlu0.b32.cont [8/16] %v1155, 128
        %1204 = vxpose.xlu0.b32.cont [9/16] %v1156, 128
        %1205 = vxpose.xlu0.b32.cont [10/16] %v1157, 128
        %1206 = vxpose.xlu0.b32.cont [11/16] %v1158, 128
        %1207 = vxpose.xlu0.b32.cont [12/16] %v1159, 128
        %1208 = vxpose.xlu0.b32.cont [13/16] %v1160, 128
        %1209 = vxpose.xlu0.b32.cont [14/16] %v1161, 128
        %1210 = vxpose.xlu0.b32.cont [15/16] %v1162, 128
        %1211 = vxpose.xlu0.b32.end [16/16] %v1163, 128
        %v1212 = vpop.trf.xlu0
        %v1213 = vpop.trf.xlu0
        %v1214 = vpop.trf.xlu0
        %v1215 = vpop.trf.xlu0
        %v1216 = vpop.trf.xlu0
        %v1217 = vpop.trf.xlu0
        %v1218 = vpop.trf.xlu0
        %v1219 = vpop.trf.xlu0
        %v1220 = vpop.trf.xlu0
        %v1221 = vpop.trf.xlu0
        %v1222 = vpop.trf.xlu0
        %v1223 = vpop.trf.xlu0
        %v1224 = vpop.trf.xlu0
        %v1225 = vpop.trf.xlu0
        %v1226 = vpop.trf.xlu0
        %v1227 = vpop.trf.xlu0
        %v1230 = vrot.slane %v1180, 4
        %v1231 = vrot.slane %v1212, 4
        %1234 = vst [vmem:[#allocation4 + $0x30] sm:$0xf0] %v1230
        %1235 = vst [vmem:[#allocation4 + $0x38] sm:$0xf0] %v1231
        %v1236 = vld [vmem:[%s1033 + $0x2] sm:$0xff]
        %v1237 = vld [vmem:[%s1033 + $0xa] sm:$0xff]
        %v1238 = vld [vmem:[%s1033 + $0x1a] sm:$0xff]
        %v1239 = vld [vmem:[%s1033 + $0x22] sm:$0xff]
        %v1240 = vld [vmem:[%s1033 + $0x32] sm:$0xff]
        %v1241 = vld [vmem:[%s1033 + $0x3a] sm:$0xff]
        %v1242 = vld [vmem:[%s1033 + $0x4a] sm:$0xff]
        %v1243 = vld [vmem:[%s1033 + $0x52] sm:$0xff]
        %v1244 = vld [vmem:[%s1033 + $0x62] sm:$0xff]
        %v1245 = vld [vmem:[%s1033 + $0x6a] sm:$0xff]
        %v1246 = vld [vmem:[%s1033 + $0x7a] sm:$0xff]
        %v1247 = vld [vmem:[%s1033 + $0x82] sm:$0xff]
        %v1248 = vld [vmem:[%s1033 + $0x92] sm:$0xff]
        %v1249 = vld [vmem:[%s1033 + $0x9a] sm:$0xff]
        %v1250 = vld [vmem:[%s1033 + $0xaa] sm:$0xff]
        %v1251 = vld [vmem:[%s1033 + $0xb2] sm:$0xff]
        %v1252 = vld [vmem:[%s1033 + $0xc2] sm:$0xff]
        %v1253 = vld [vmem:[%s1033 + $0xca] sm:$0xff]
        %v1254 = vld [vmem:[%s1033 + $0xda] sm:$0xff]
        %v1255 = vld [vmem:[%s1033 + $0xe2] sm:$0xff]
        %v1256 = vld [vmem:[%s1033 + $0xf2] sm:$0xff]
        %v1257 = vld [vmem:[%s1033 + $0xfa] sm:$0xff]
        %v1258 = vld [vmem:[%s1033 + $0x10a] sm:$0xff]
        %v1259 = vld [vmem:[%s1033 + $0x112] sm:$0xff]
        %v1260 = vld [vmem:[%s1033 + $0x122] sm:$0xff]
        %v1261 = vld [vmem:[%s1033 + $0x12a] sm:$0xff]
        %v1262 = vld [vmem:[%s1033 + $0x13a] sm:$0xff]
        %v1263 = vld [vmem:[%s1033 + $0x142] sm:$0xff]
        %v1264 = vld [vmem:[%s1033 + $0x152] sm:$0xff]
        %v1265 = vld [vmem:[%s1033 + $0x15a] sm:$0xff]
        %v1266 = vld [vmem:[%s1033 + $0x16a] sm:$0xff]
        %v1267 = vld [vmem:[%s1033 + $0x172] sm:$0xff]
        %1268 = vxpose.xlu0.b32.start [1/16] %v1236, 128
        %1269 = vxpose.xlu0.b32.cont [2/16] %v1237, 128
        %1270 = vxpose.xlu0.b32.cont [3/16] %v1238, 128
        %1271 = vxpose.xlu0.b32.cont [4/16] %v1239, 128
        %1272 = vxpose.xlu0.b32.cont [5/16] %v1240, 128
        %1273 = vxpose.xlu0.b32.cont [6/16] %v1241, 128
        %1274 = vxpose.xlu0.b32.cont [7/16] %v1242, 128
        %1275 = vxpose.xlu0.b32.cont [8/16] %v1243, 128
        %1276 = vxpose.xlu0.b32.cont [9/16] %v1244, 128
        %1277 = vxpose.xlu0.b32.cont [10/16] %v1245, 128
        %1278 = vxpose.xlu0.b32.cont [11/16] %v1246, 128
        %1279 = vxpose.xlu0.b32.cont [12/16] %v1247, 128
        %1280 = vxpose.xlu0.b32.cont [13/16] %v1248, 128
        %1281 = vxpose.xlu0.b32.cont [14/16] %v1249, 128
        %1282 = vxpose.xlu0.b32.cont [15/16] %v1250, 128
        %1283 = vxpose.xlu0.b32.end [16/16] %v1251, 128
        %v1284 = vpop.trf.xlu0
        %v1285 = vpop.trf.xlu0
        %v1286 = vpop.trf.xlu0
        %v1287 = vpop.trf.xlu0
        %v1288 = vpop.trf.xlu0
        %v1289 = vpop.trf.xlu0
        %v1290 = vpop.trf.xlu0
        %v1291 = vpop.trf.xlu0
        %v1292 = vpop.trf.xlu0
        %v1293 = vpop.trf.xlu0
        %v1294 = vpop.trf.xlu0
        %v1295 = vpop.trf.xlu0
        %v1296 = vpop.trf.xlu0
        %v1297 = vpop.trf.xlu0
        %v1298 = vpop.trf.xlu0
        %v1299 = vpop.trf.xlu0
        %1300 = vxpose.xlu0.b32.start [1/16] %v1252, 128
        %1301 = vxpose.xlu0.b32.cont [2/16] %v1253, 128
        %1302 = vxpose.xlu0.b32.cont [3/16] %v1254, 128
        %1303 = vxpose.xlu0.b32.cont [4/16] %v1255, 128
        %1304 = vxpose.xlu0.b32.cont [5/16] %v1256, 128
        %1305 = vxpose.xlu0.b32.cont [6/16] %v1257, 128
        %1306 = vxpose.xlu0.b32.cont [7/16] %v1258, 128
        %1307 = vxpose.xlu0.b32.cont [8/16] %v1259, 128
        %1308 = vxpose.xlu0.b32.cont [9/16] %v1260, 128
        %1309 = vxpose.xlu0.b32.cont [10/16] %v1261, 128
        %1310 = vxpose.xlu0.b32.cont [11/16] %v1262, 128
        %1311 = vxpose.xlu0.b32.cont [12/16] %v1263, 128
        %1312 = vxpose.xlu0.b32.cont [13/16] %v1264, 128
        %1313 = vxpose.xlu0.b32.cont [14/16] %v1265, 128
        %1314 = vxpose.xlu0.b32.cont [15/16] %v1266, 128
        %1315 = vxpose.xlu0.b32.end [16/16] %v1267, 128
        %v1316 = vpop.trf.xlu0
        %v1317 = vpop.trf.xlu0
        %v1318 = vpop.trf.xlu0
        %v1319 = vpop.trf.xlu0
        %v1320 = vpop.trf.xlu0
        %v1321 = vpop.trf.xlu0
        %v1322 = vpop.trf.xlu0
        %v1323 = vpop.trf.xlu0
        %v1324 = vpop.trf.xlu0
        %v1325 = vpop.trf.xlu0
        %v1326 = vpop.trf.xlu0
        %v1327 = vpop.trf.xlu0
        %v1328 = vpop.trf.xlu0
        %v1329 = vpop.trf.xlu0
        %v1330 = vpop.trf.xlu0
        %v1331 = vpop.trf.xlu0
        %1332 = vst [vmem:[#allocation4 + $0x40] sm:$0xf] %v1284
        %1333 = vst [vmem:[#allocation4 + $0x48] sm:$0xf] %v1316
        %v1334 = vld [vmem:[%s1] sm:$0xff]
        %v1335 = vld [vmem:[#allocation4] sm:$0xff]
        %v1336 = vld [vmem:[#allocation4 + $0x8] sm:$0xff]
        %v1337 = vld [vmem:[#allocation4 + $0x10] sm:$0xff]
        %v1338 = vld [vmem:[#allocation4 + $0x18] sm:$0xff]
        %v1339 = vld [vmem:[#allocation4 + $0x20] sm:$0xff]
        %v1340 = vld [vmem:[#allocation4 + $0x28] sm:$0xff]
        %v1341 = vld [vmem:[#allocation4 + $0x30] sm:$0xff]
        %v1342 = vld [vmem:[#allocation4 + $0x38] sm:$0xff]
        %v1343 = vld [vmem:[#allocation4 + $0x40] sm:$0xf]
        %v1344 = vld [vmem:[#allocation4 + $0x48] sm:$0xf]
        %vm1345 = vcmask 293888
        %v1347 = vsel %vm1345, %v1334, 0
        %vm1349 = vcmask 1043456
        %v1351 = vsel %vm1349, %v1343, 0
        %v1354 = vsel %vm1349, %v1344, 0
        %1356 = vmatpush.msra.mxu0 0.0
        %1357 = vmatpush.msra.mxu0 0.0
        %1358 = vmatpush.msra.mxu0 0.0
        %1359 = vmatpush.msra.mxu0 0.0
        %1360 = vmatpush.msra.mxu0 0.0
        %1361 = vmatpush.msra.mxu0 0.0
        %1362 = vmatpush.msra.mxu0 0.0
        %1363 = vmatpush.msra.mxu0 0.0
        %1364 = vmatpush.msra.mxu0 0.0
        %1365 = vmatpush.msra.mxu0 0.0
        %1366 = vmatpush.msra.mxu0 0.0
        %1367 = vmatpush.msra.mxu0 %v1351
        %1368 = vmatpush.msra.mxu0 %v1341
        %1369 = vmatpush.msra.mxu0 %v1339
        %1370 = vmatpush.msra.mxu0 %v1337
        %1371 = vmatpush.msra.mxu0 %v1335
        %1372 = vmatmul.f32.gmra.mxu0 %v1347
        %v1373 = vpop.f32.mrf.mxu0
        %v1374 = vadd.f32 0.0, %v1373
        %1375 = vdwg.mxu0
        %1376 = vmatpush.msra.mxu0 0.0
        %1377 = vmatpush.msra.mxu0 0.0
        %1378 = vmatpush.msra.mxu0 0.0
        %1379 = vmatpush.msra.mxu0 0.0
        %1380 = vmatpush.msra.mxu0 0.0
        %1381 = vmatpush.msra.mxu0 0.0
        %1382 = vmatpush.msra.mxu0 0.0
        %1383 = vmatpush.msra.mxu0 0.0
        %1384 = vmatpush.msra.mxu0 0.0
        %1385 = vmatpush.msra.mxu0 0.0
        %1386 = vmatpush.msra.mxu0 0.0
        %1387 = vmatpush.msra.mxu0 %v1354
        %1388 = vmatpush.msra.mxu0 %v1342
        %1389 = vmatpush.msra.mxu0 %v1340
        %1390 = vmatpush.msra.mxu0 %v1338
        %1391 = vmatpush.msra.mxu0 %v1336
        %1392 = vmatmul.f32.gmra.mxu0 %v1347
        %v1393 = vpop.f32.mrf.mxu0
        %v1394 = vadd.f32 0.0, %v1393
        %1395 = vdwg.mxu0
        %v1396 = vld [vmem:[%s2] sm:$0xff]
        %1398 = vset.pattern.permute.xlu0 0
        %1399 = vperm.xlu0 %1398, %v1396
        %v1400 = vpop.permute.xlu0 %1399
        %v1402 = vmul.f32 %v1374, %v1400
        %v1403 = vmul.f32 %v1394, %v1400
        %v1404 = vld [vmem:[%s3] sm:$0xff]
        %1406 = vset.pattern.permute.xlu0 0
        %1407 = vperm.xlu0 %1406, %v1404
        %v1408 = vpop.permute.xlu0 %1407
        %v1410 = vadd.f32 %v1402, %v1408
        %v1411 = vadd.f32 %v1403, %v1408
        %v1412 = vmax.f32 %v1410, 0.0
        %v1413 = vmax.f32 %v1411, 0.0
        %1414 = vxpose.xlu0.b32.start [1/16] %v1412, 128
        %1415 = vxpose.xlu0.b32.cont [2/16] 0.0, 128
        %1416 = vxpose.xlu0.b32.cont [3/16] 0.0, 128
        %1417 = vxpose.xlu0.b32.cont [4/16] 0.0, 128
        %1418 = vxpose.xlu0.b32.cont [5/16] 0.0, 128
        %1419 = vxpose.xlu0.b32.cont [6/16] 0.0, 128
        %1420 = vxpose.xlu0.b32.cont [7/16] 0.0, 128
        %1421 = vxpose.xlu0.b32.cont [8/16] 0.0, 128
        %1422 = vxpose.xlu0.b32.cont [9/16] 0.0, 128
        %1423 = vxpose.xlu0.b32.cont [10/16] 0.0, 128
        %1424 = vxpose.xlu0.b32.cont [11/16] 0.0, 128
        %1425 = vxpose.xlu0.b32.cont [12/16] 0.0, 128
        %1426 = vxpose.xlu0.b32.cont [13/16] 0.0, 128
        %1427 = vxpose.xlu0.b32.cont [14/16] 0.0, 128
        %1428 = vxpose.xlu0.b32.cont [15/16] 0.0, 128
        %1429 = vxpose.xlu0.b32.end [16/16] 0.0, 128
        %v1430 = vpop.trf.xlu0
        %v1431 = vpop.trf.xlu0
        %v1432 = vpop.trf.xlu0
        %v1433 = vpop.trf.xlu0
        %v1434 = vpop.trf.xlu0
        %v1435 = vpop.trf.xlu0
        %v1436 = vpop.trf.xlu0
        %v1437 = vpop.trf.xlu0
        %v1438 = vpop.trf.xlu0
        %v1439 = vpop.trf.xlu0
        %v1440 = vpop.trf.xlu0
        %v1441 = vpop.trf.xlu0
        %v1442 = vpop.trf.xlu0
        %v1443 = vpop.trf.xlu0
        %v1444 = vpop.trf.xlu0
        %v1445 = vpop.trf.xlu0
        %1446 = vxpose.xlu0.b32.start [1/16] %v1413, 128
        %1447 = vxpose.xlu0.b32.cont [2/16] 0.0, 128
        %1448 = vxpose.xlu0.b32.cont [3/16] 0.0, 128
        %1449 = vxpose.xlu0.b32.cont [4/16] 0.0, 128
        %1450 = vxpose.xlu0.b32.cont [5/16] 0.0, 128
        %1451 = vxpose.xlu0.b32.cont [6/16] 0.0, 128
        %1452 = vxpose.xlu0.b32.cont [7/16] 0.0, 128
        %1453 = vxpose.xlu0.b32.cont [8/16] 0.0, 128
        %1454 = vxpose.xlu0.b32.cont [9/16] 0.0, 128
        %1455 = vxpose.xlu0.b32.cont [10/16] 0.0, 128
        %1456 = vxpose.xlu0.b32.cont [11/16] 0.0, 128
        %1457 = vxpose.xlu0.b32.cont [12/16] 0.0, 128
        %1458 = vxpose.xlu0.b32.cont [13/16] 0.0, 128
        %1459 = vxpose.xlu0.b32.cont [14/16] 0.0, 128
        %1460 = vxpose.xlu0.b32.cont [15/16] 0.0, 128
        %1461 = vxpose.xlu0.b32.end [16/16] 0.0, 128
        %v1462 = vpop.trf.xlu0
        %v1463 = vpop.trf.xlu0
        %v1464 = vpop.trf.xlu0
        %v1465 = vpop.trf.xlu0
        %v1466 = vpop.trf.xlu0
        %v1467 = vpop.trf.xlu0
        %v1468 = vpop.trf.xlu0
        %v1469 = vpop.trf.xlu0
        %v1470 = vpop.trf.xlu0
        %v1471 = vpop.trf.xlu0
        %v1472 = vpop.trf.xlu0
        %v1473 = vpop.trf.xlu0
        %v1474 = vpop.trf.xlu0
        %v1475 = vpop.trf.xlu0
        %v1476 = vpop.trf.xlu0
        %v1477 = vpop.trf.xlu0
        %vm1478 = vcmask 64512
        %1479 = vst.msk [vmem:[#allocation3] sm:$0xff] %vm1478, 0.0
        %1480 = vst.msk [vmem:[#allocation3 + $0x8] sm:$0xff] %vm1478, 0.0
        %vm1481 = vcmask 58368
        %1482 = vst.msk [vmem:[#allocation3 + $0x10] sm:$0x3] %vm1481, 0.0
        %s1483 = scalar_lea.vmem [#allocation3], 408
        %1484 = vst.msk [vmem:[%s1483] sm:$0xff] %vm1478, 0.0
        %1485 = vst.msk [vmem:[%s1483 + $0x8] sm:$0xff] %vm1478, 0.0
        %1486 = vst.msk [vmem:[%s1483 + $0x10] sm:$0x3] %vm1481, 0.0
        %vm1487 = vcmask 57344
        %1488 = vst.msk [vmem:[#allocation3] sm:$0x1] %vm1487, 0.0
        %1489 = vst.msk [vmem:[#allocation3 + $0x18] sm:$0x1] %vm1487, 0.0
        %1490 = vst.msk [vmem:[#allocation3 + $0x30] sm:$0x1] %vm1487, 0.0
        %1491 = vst.msk [vmem:[#allocation3 + $0x48] sm:$0x1] %vm1487, 0.0
        %1492 = vst.msk [vmem:[#allocation3 + $0x60] sm:$0x1] %vm1487, 0.0
        %1493 = vst.msk [vmem:[#allocation3 + $0x78] sm:$0x1] %vm1487, 0.0
        %1494 = vst.msk [vmem:[#allocation3 + $0x90] sm:$0x1] %vm1487, 0.0
        %1495 = vst.msk [vmem:[#allocation3 + $0xa8] sm:$0x1] %vm1487, 0.0
        %1496 = vst.msk [vmem:[#allocation3 + $0xc0] sm:$0x1] %vm1487, 0.0
        %1497 = vst.msk [vmem:[#allocation3 + $0xd8] sm:$0x1] %vm1487, 0.0
        %1498 = vst.msk [vmem:[#allocation3 + $0xf0] sm:$0x1] %vm1487, 0.0
        %1499 = vst.msk [vmem:[#allocation3 + $0x108] sm:$0x1] %vm1487, 0.0
        %1500 = vst.msk [vmem:[#allocation3 + $0x120] sm:$0x1] %vm1487, 0.0
        %1501 = vst.msk [vmem:[#allocation3 + $0x138] sm:$0x1] %vm1487, 0.0
        %1502 = vst.msk [vmem:[#allocation3 + $0x150] sm:$0x1] %vm1487, 0.0
        %1503 = vst.msk [vmem:[#allocation3 + $0x168] sm:$0x1] %vm1487, 0.0
        %1504 = vst.msk [vmem:[#allocation3 + $0x180] sm:$0x1] %vm1487, 0.0
        %1505 = vst.msk [vmem:[#allocation3 + $0x198] sm:$0x1] %vm1487, 0.0
        %1506 = vst.msk [vmem:[#allocation3 + $0x11] sm:$0x1] %vm1487, 0.0
        %1507 = vst.msk [vmem:[#allocation3 + $0x29] sm:$0x1] %vm1487, 0.0
        %1508 = vst.msk [vmem:[#allocation3 + $0x41] sm:$0x1] %vm1487, 0.0
        %1509 = vst.msk [vmem:[#allocation3 + $0x59] sm:$0x1] %vm1487, 0.0
        %1510 = vst.msk [vmem:[#allocation3 + $0x71] sm:$0x1] %vm1487, 0.0
        %1511 = vst.msk [vmem:[#allocation3 + $0x89] sm:$0x1] %vm1487, 0.0
        %1512 = vst.msk [vmem:[#allocation3 + $0xa1] sm:$0x1] %vm1487, 0.0
        %1513 = vst.msk [vmem:[#allocation3 + $0xb9] sm:$0x1] %vm1487, 0.0
        %1514 = vst.msk [vmem:[#allocation3 + $0xd1] sm:$0x1] %vm1487, 0.0
        %1515 = vst.msk [vmem:[#allocation3 + $0xe9] sm:$0x1] %vm1487, 0.0
        %1516 = vst.msk [vmem:[#allocation3 + $0x101] sm:$0x1] %vm1487, 0.0
        %1517 = vst.msk [vmem:[#allocation3 + $0x119] sm:$0x1] %vm1487, 0.0
        %1518 = vst.msk [vmem:[#allocation3 + $0x131] sm:$0x1] %vm1487, 0.0
        %1519 = vst.msk [vmem:[#allocation3 + $0x149] sm:$0x1] %vm1487, 0.0
        %1520 = vst.msk [vmem:[#allocation3 + $0x161] sm:$0x1] %vm1487, 0.0
        %1521 = vst.msk [vmem:[#allocation3 + $0x179] sm:$0x1] %vm1487, 0.0
        %1522 = vst.msk [vmem:[#allocation3 + $0x191] sm:$0x1] %vm1487, 0.0
        %1523 = vst.msk [vmem:[#allocation3 + $0x1a9] sm:$0x1] %vm1487, 0.0
        %s1524 = scalar_lea.vmem [#allocation3], 24
        %1525 = vst.msk [vmem:[%s1524 + $0x1] sm:$0xff] %vm1478, %v1430
        %1526 = vst.msk [vmem:[%s1524 + $0x9] sm:$0xff] %vm1478, %v1431
        %1527 = vst.msk [vmem:[%s1524 + $0x19] sm:$0xff] %vm1478, %v1432
        %1528 = vst.msk [vmem:[%s1524 + $0x21] sm:$0xff] %vm1478, %v1433
        %1529 = vst.msk [vmem:[%s1524 + $0x31] sm:$0xff] %vm1478, %v1434
        %1530 = vst.msk [vmem:[%s1524 + $0x39] sm:$0xff] %vm1478, %v1435
        %1531 = vst.msk [vmem:[%s1524 + $0x49] sm:$0xff] %vm1478, %v1436
        %1532 = vst.msk [vmem:[%s1524 + $0x51] sm:$0xff] %vm1478, %v1437
        %1533 = vst.msk [vmem:[%s1524 + $0x61] sm:$0xff] %vm1478, %v1438
        %1534 = vst.msk [vmem:[%s1524 + $0x69] sm:$0xff] %vm1478, %v1439
        %1535 = vst.msk [vmem:[%s1524 + $0x79] sm:$0xff] %vm1478, %v1440
        %1536 = vst.msk [vmem:[%s1524 + $0x81] sm:$0xff] %vm1478, %v1441
        %1537 = vst.msk [vmem:[%s1524 + $0x91] sm:$0xff] %vm1478, %v1442
        %1538 = vst.msk [vmem:[%s1524 + $0x99] sm:$0xff] %vm1478, %v1443
        %1539 = vst.msk [vmem:[%s1524 + $0xa9] sm:$0xff] %vm1478, %v1444
        %1540 = vst.msk [vmem:[%s1524 + $0xb1] sm:$0xff] %vm1478, %v1445
        %1541 = vst.msk [vmem:[%s1524 + $0xc1] sm:$0xff] %vm1478, %v1462
        %1542 = vst.msk [vmem:[%s1524 + $0xc9] sm:$0xff] %vm1478, %v1463
        %1543 = vst.msk [vmem:[%s1524 + $0xd9] sm:$0xff] %vm1478, %v1464
        %1544 = vst.msk [vmem:[%s1524 + $0xe1] sm:$0xff] %vm1478, %v1465
        %1545 = vst.msk [vmem:[%s1524 + $0xf1] sm:$0xff] %vm1478, %v1466
        %1546 = vst.msk [vmem:[%s1524 + $0xf9] sm:$0xff] %vm1478, %v1467
        %1547 = vst.msk [vmem:[%s1524 + $0x109] sm:$0xff] %vm1478, %v1468
        %1548 = vst.msk [vmem:[%s1524 + $0x111] sm:$0xff] %vm1478, %v1469
        %1549 = vst.msk [vmem:[%s1524 + $0x121] sm:$0xff] %vm1478, %v1470
        %1550 = vst.msk [vmem:[%s1524 + $0x129] sm:$0xff] %vm1478, %v1471
        %1551 = vst.msk [vmem:[%s1524 + $0x139] sm:$0xff] %vm1478, %v1472
        %1552 = vst.msk [vmem:[%s1524 + $0x141] sm:$0xff] %vm1478, %v1473
        %1553 = vst.msk [vmem:[%s1524 + $0x151] sm:$0xff] %vm1478, %v1474
        %1554 = vst.msk [vmem:[%s1524 + $0x159] sm:$0xff] %vm1478, %v1475
        %1555 = vst.msk [vmem:[%s1524 + $0x169] sm:$0xff] %vm1478, %v1476
        %1556 = vst.msk [vmem:[%s1524 + $0x171] sm:$0xff] %vm1478, %v1477
        %v1557 = vld [vmem:[#allocation3] sm:$0xff]
        %v1558 = vld [vmem:[#allocation3 + $0x8] sm:$0xff]
        %v1559 = vld [vmem:[#allocation3 + $0x18] sm:$0xff]
        %v1560 = vld [vmem:[#allocation3 + $0x20] sm:$0xff]
        %v1561 = vld [vmem:[#allocation3 + $0x30] sm:$0xff]
        %v1562 = vld [vmem:[#allocation3 + $0x38] sm:$0xff]
        %v1563 = vld [vmem:[#allocation3 + $0x48] sm:$0xff]
        %v1564 = vld [vmem:[#allocation3 + $0x50] sm:$0xff]
        %v1565 = vld [vmem:[#allocation3 + $0x60] sm:$0xff]
        %v1566 = vld [vmem:[#allocation3 + $0x68] sm:$0xff]
        %v1567 = vld [vmem:[#allocation3 + $0x78] sm:$0xff]
        %v1568 = vld [vmem:[#allocation3 + $0x80] sm:$0xff]
        %v1569 = vld [vmem:[#allocation3 + $0x90] sm:$0xff]
        %v1570 = vld [vmem:[#allocation3 + $0x98] sm:$0xff]
        %v1571 = vld [vmem:[#allocation3 + $0xa8] sm:$0xff]
        %v1572 = vld [vmem:[#allocation3 + $0xb0] sm:$0xff]
        %v1573 = vld [vmem:[#allocation3 + $0xc0] sm:$0xff]
        %v1574 = vld [vmem:[#allocation3 + $0xc8] sm:$0xff]
        %v1575 = vld [vmem:[#allocation3 + $0xd8] sm:$0xff]
        %v1576 = vld [vmem:[#allocation3 + $0xe0] sm:$0xff]
        %v1577 = vld [vmem:[#allocation3 + $0xf0] sm:$0xff]
        %v1578 = vld [vmem:[#allocation3 + $0xf8] sm:$0xff]
        %v1579 = vld [vmem:[#allocation3 + $0x108] sm:$0xff]
        %v1580 = vld [vmem:[#allocation3 + $0x110] sm:$0xff]
        %v1581 = vld [vmem:[#allocation3 + $0x120] sm:$0xff]
        %v1582 = vld [vmem:[#allocation3 + $0x128] sm:$0xff]
        %v1583 = vld [vmem:[#allocation3 + $0x138] sm:$0xff]
        %v1584 = vld [vmem:[#allocation3 + $0x140] sm:$0xff]
        %v1585 = vld [vmem:[#allocation3 + $0x150] sm:$0xff]
        %v1586 = vld [vmem:[#allocation3 + $0x158] sm:$0xff]
        %v1587 = vld [vmem:[#allocation3 + $0x168] sm:$0xff]
        %v1588 = vld [vmem:[#allocation3 + $0x170] sm:$0xff]
        %1589 = vxpose.xlu0.b32.start [1/16] %v1557, 128
        %1590 = vxpose.xlu0.b32.cont [2/16] %v1558, 128
        %1591 = vxpose.xlu0.b32.cont [3/16] %v1559, 128
        %1592 = vxpose.xlu0.b32.cont [4/16] %v1560, 128
        %1593 = vxpose.xlu0.b32.cont [5/16] %v1561, 128
        %1594 = vxpose.xlu0.b32.cont [6/16] %v1562, 128
        %1595 = vxpose.xlu0.b32.cont [7/16] %v1563, 128
        %1596 = vxpose.xlu0.b32.cont [8/16] %v1564, 128
        %1597 = vxpose.xlu0.b32.cont [9/16] %v1565, 128
        %1598 = vxpose.xlu0.b32.cont [10/16] %v1566, 128
        %1599 = vxpose.xlu0.b32.cont [11/16] %v1567, 128
        %1600 = vxpose.xlu0.b32.cont [12/16] %v1568, 128
        %1601 = vxpose.xlu0.b32.cont [13/16] %v1569, 128
        %1602 = vxpose.xlu0.b32.cont [14/16] %v1570, 128
        %1603 = vxpose.xlu0.b32.cont [15/16] %v1571, 128
        %1604 = vxpose.xlu0.b32.end [16/16] %v1572, 128
        %v1605 = vpop.trf.xlu0
        %v1606 = vpop.trf.xlu0
        %v1607 = vpop.trf.xlu0
        %v1608 = vpop.trf.xlu0
        %v1609 = vpop.trf.xlu0
        %v1610 = vpop.trf.xlu0
        %v1611 = vpop.trf.xlu0
        %v1612 = vpop.trf.xlu0
        %v1613 = vpop.trf.xlu0
        %v1614 = vpop.trf.xlu0
        %v1615 = vpop.trf.xlu0
        %v1616 = vpop.trf.xlu0
        %v1617 = vpop.trf.xlu0
        %v1618 = vpop.trf.xlu0
        %v1619 = vpop.trf.xlu0
        %v1620 = vpop.trf.xlu0
        %1621 = vxpose.xlu0.b32.start [1/16] %v1573, 128
        %1622 = vxpose.xlu0.b32.cont [2/16] %v1574, 128
        %1623 = vxpose.xlu0.b32.cont [3/16] %v1575, 128
        %1624 = vxpose.xlu0.b32.cont [4/16] %v1576, 128
        %1625 = vxpose.xlu0.b32.cont [5/16] %v1577, 128
        %1626 = vxpose.xlu0.b32.cont [6/16] %v1578, 128
        %1627 = vxpose.xlu0.b32.cont [7/16] %v1579, 128
        %1628 = vxpose.xlu0.b32.cont [8/16] %v1580, 128
        %1629 = vxpose.xlu0.b32.cont [9/16] %v1581, 128
        %1630 = vxpose.xlu0.b32.cont [10/16] %v1582, 128
        %1631 = vxpose.xlu0.b32.cont [11/16] %v1583, 128
        %1632 = vxpose.xlu0.b32.cont [12/16] %v1584, 128
        %1633 = vxpose.xlu0.b32.cont [13/16] %v1585, 128
        %1634 = vxpose.xlu0.b32.cont [14/16] %v1586, 128
        %1635 = vxpose.xlu0.b32.cont [15/16] %v1587, 128
        %1636 = vxpose.xlu0.b32.end [16/16] %v1588, 128
        %v1637 = vpop.trf.xlu0
        %v1638 = vpop.trf.xlu0
        %v1639 = vpop.trf.xlu0
        %v1640 = vpop.trf.xlu0
        %v1641 = vpop.trf.xlu0
        %v1642 = vpop.trf.xlu0
        %v1643 = vpop.trf.xlu0
        %v1644 = vpop.trf.xlu0
        %v1645 = vpop.trf.xlu0
        %v1646 = vpop.trf.xlu0
        %v1647 = vpop.trf.xlu0
        %v1648 = vpop.trf.xlu0
        %v1649 = vpop.trf.xlu0
        %v1650 = vpop.trf.xlu0
        %v1651 = vpop.trf.xlu0
        %v1652 = vpop.trf.xlu0
        %1653 = vst [vmem:[#allocation5] sm:$0xff] %v1605
        %1654 = vst [vmem:[#allocation5 + $0x8] sm:$0xff] %v1637
        %v1655 = vld [vmem:[#allocation3 + $0x1] sm:$0xff]
        %v1656 = vld [vmem:[#allocation3 + $0x9] sm:$0xff]
        %v1657 = vld [vmem:[#allocation3 + $0x19] sm:$0xff]
        %v1658 = vld [vmem:[#allocation3 + $0x21] sm:$0xff]
        %v1659 = vld [vmem:[#allocation3 + $0x31] sm:$0xff]
        %v1660 = vld [vmem:[#allocation3 + $0x39] sm:$0xff]
        %v1661 = vld [vmem:[#allocation3 + $0x49] sm:$0xff]
        %v1662 = vld [vmem:[#allocation3 + $0x51] sm:$0xff]
        %v1663 = vld [vmem:[#allocation3 + $0x61] sm:$0xff]
        %v1664 = vld [vmem:[#allocation3 + $0x69] sm:$0xff]
        %v1665 = vld [vmem:[#allocation3 + $0x79] sm:$0xff]
        %v1666 = vld [vmem:[#allocation3 + $0x81] sm:$0xff]
        %v1667 = vld [vmem:[#allocation3 + $0x91] sm:$0xff]
        %v1668 = vld [vmem:[#allocation3 + $0x99] sm:$0xff]
        %v1669 = vld [vmem:[#allocation3 + $0xa9] sm:$0xff]
        %v1670 = vld [vmem:[#allocation3 + $0xb1] sm:$0xff]
        %v1671 = vld [vmem:[#allocation3 + $0xc1] sm:$0xff]
        %v1672 = vld [vmem:[#allocation3 + $0xc9] sm:$0xff]
        %v1673 = vld [vmem:[#allocation3 + $0xd9] sm:$0xff]
        %v1674 = vld [vmem:[#allocation3 + $0xe1] sm:$0xff]
        %v1675 = vld [vmem:[#allocation3 + $0xf1] sm:$0xff]
        %v1676 = vld [vmem:[#allocation3 + $0xf9] sm:$0xff]
        %v1677 = vld [vmem:[#allocation3 + $0x109] sm:$0xff]
        %v1678 = vld [vmem:[#allocation3 + $0x111] sm:$0xff]
        %v1679 = vld [vmem:[#allocation3 + $0x121] sm:$0xff]
        %v1680 = vld [vmem:[#allocation3 + $0x129] sm:$0xff]
        %v1681 = vld [vmem:[#allocation3 + $0x139] sm:$0xff]
        %v1682 = vld [vmem:[#allocation3 + $0x141] sm:$0xff]
        %v1683 = vld [vmem:[#allocation3 + $0x151] sm:$0xff]
        %v1684 = vld [vmem:[#allocation3 + $0x159] sm:$0xff]
        %v1685 = vld [vmem:[#allocation3 + $0x169] sm:$0xff]
        %v1686 = vld [vmem:[#allocation3 + $0x171] sm:$0xff]
        %1687 = vxpose.xlu0.b32.start [1/16] %v1655, 128
        %1688 = vxpose.xlu0.b32.cont [2/16] %v1656, 128
        %1689 = vxpose.xlu0.b32.cont [3/16] %v1657, 128
        %1690 = vxpose.xlu0.b32.cont [4/16] %v1658, 128
        %1691 = vxpose.xlu0.b32.cont [5/16] %v1659, 128
        %1692 = vxpose.xlu0.b32.cont [6/16] %v1660, 128
        %1693 = vxpose.xlu0.b32.cont [7/16] %v1661, 128
        %1694 = vxpose.xlu0.b32.cont [8/16] %v1662, 128
        %1695 = vxpose.xlu0.b32.cont [9/16] %v1663, 128
        %1696 = vxpose.xlu0.b32.cont [10/16] %v1664, 128
        %1697 = vxpose.xlu0.b32.cont [11/16] %v1665, 128
        %1698 = vxpose.xlu0.b32.cont [12/16] %v1666, 128
        %1699 = vxpose.xlu0.b32.cont [13/16] %v1667, 128
        %1700 = vxpose.xlu0.b32.cont [14/16] %v1668, 128
        %1701 = vxpose.xlu0.b32.cont [15/16] %v1669, 128
        %1702 = vxpose.xlu0.b32.end [16/16] %v1670, 128
        %v1703 = vpop.trf.xlu0
        %v1704 = vpop.trf.xlu0
        %v1705 = vpop.trf.xlu0
        %v1706 = vpop.trf.xlu0
        %v1707 = vpop.trf.xlu0
        %v1708 = vpop.trf.xlu0
        %v1709 = vpop.trf.xlu0
        %v1710 = vpop.trf.xlu0
        %v1711 = vpop.trf.xlu0
        %v1712 = vpop.trf.xlu0
        %v1713 = vpop.trf.xlu0
        %v1714 = vpop.trf.xlu0
        %v1715 = vpop.trf.xlu0
        %v1716 = vpop.trf.xlu0
        %v1717 = vpop.trf.xlu0
        %v1718 = vpop.trf.xlu0
        %1719 = vxpose.xlu0.b32.start [1/16] %v1671, 128
        %1720 = vxpose.xlu0.b32.cont [2/16] %v1672, 128
        %1721 = vxpose.xlu0.b32.cont [3/16] %v1673, 128
        %1722 = vxpose.xlu0.b32.cont [4/16] %v1674, 128
        %1723 = vxpose.xlu0.b32.cont [5/16] %v1675, 128
        %1724 = vxpose.xlu0.b32.cont [6/16] %v1676, 128
        %1725 = vxpose.xlu0.b32.cont [7/16] %v1677, 128
        %1726 = vxpose.xlu0.b32.cont [8/16] %v1678, 128
        %1727 = vxpose.xlu0.b32.cont [9/16] %v1679, 128
        %1728 = vxpose.xlu0.b32.cont [10/16] %v1680, 128
        %1729 = vxpose.xlu0.b32.cont [11/16] %v1681, 128
        %1730 = vxpose.xlu0.b32.cont [12/16] %v1682, 128
        %1731 = vxpose.xlu0.b32.cont [13/16] %v1683, 128
        %1732 = vxpose.xlu0.b32.cont [14/16] %v1684, 128
        %1733 = vxpose.xlu0.b32.cont [15/16] %v1685, 128
        %1734 = vxpose.xlu0.b32.end [16/16] %v1686, 128
        %v1735 = vpop.trf.xlu0
        %v1736 = vpop.trf.xlu0
        %v1737 = vpop.trf.xlu0
        %v1738 = vpop.trf.xlu0
        %v1739 = vpop.trf.xlu0
        %v1740 = vpop.trf.xlu0
        %v1741 = vpop.trf.xlu0
        %v1742 = vpop.trf.xlu0
        %v1743 = vpop.trf.xlu0
        %v1744 = vpop.trf.xlu0
        %v1745 = vpop.trf.xlu0
        %v1746 = vpop.trf.xlu0
        %v1747 = vpop.trf.xlu0
        %v1748 = vpop.trf.xlu0
        %v1749 = vpop.trf.xlu0
        %v1750 = vpop.trf.xlu0
        %1751 = vst [vmem:[#allocation5 + $0x10] sm:$0xff] %v1703
        %1752 = vst [vmem:[#allocation5 + $0x18] sm:$0xff] %v1735
        %v1753 = vld [vmem:[#allocation3 + $0x2] sm:$0xff]
        %v1754 = vld [vmem:[#allocation3 + $0xa] sm:$0xff]
        %v1755 = vld [vmem:[#allocation3 + $0x1a] sm:$0xff]
        %v1756 = vld [vmem:[#allocation3 + $0x22] sm:$0xff]
        %v1757 = vld [vmem:[#allocation3 + $0x32] sm:$0xff]
        %v1758 = vld [vmem:[#allocation3 + $0x3a] sm:$0xff]
        %v1759 = vld [vmem:[#allocation3 + $0x4a] sm:$0xff]
        %v1760 = vld [vmem:[#allocation3 + $0x52] sm:$0xff]
        %v1761 = vld [vmem:[#allocation3 + $0x62] sm:$0xff]
        %v1762 = vld [vmem:[#allocation3 + $0x6a] sm:$0xff]
        %v1763 = vld [vmem:[#allocation3 + $0x7a] sm:$0xff]
        %v1764 = vld [vmem:[#allocation3 + $0x82] sm:$0xff]
        %v1765 = vld [vmem:[#allocation3 + $0x92] sm:$0xff]
        %v1766 = vld [vmem:[#allocation3 + $0x9a] sm:$0xff]
        %v1767 = vld [vmem:[#allocation3 + $0xaa] sm:$0xff]
        %v1768 = vld [vmem:[#allocation3 + $0xb2] sm:$0xff]
        %v1769 = vld [vmem:[#allocation3 + $0xc2] sm:$0xff]
        %v1770 = vld [vmem:[#allocation3 + $0xca] sm:$0xff]
        %v1771 = vld [vmem:[#allocation3 + $0xda] sm:$0xff]
        %v1772 = vld [vmem:[#allocation3 + $0xe2] sm:$0xff]
        %v1773 = vld [vmem:[#allocation3 + $0xf2] sm:$0xff]
        %v1774 = vld [vmem:[#allocation3 + $0xfa] sm:$0xff]
        %v1775 = vld [vmem:[#allocation3 + $0x10a] sm:$0xff]
        %v1776 = vld [vmem:[#allocation3 + $0x112] sm:$0xff]
        %v1777 = vld [vmem:[#allocation3 + $0x122] sm:$0xff]
        %v1778 = vld [vmem:[#allocation3 + $0x12a] sm:$0xff]
        %v1779 = vld [vmem:[#allocation3 + $0x13a] sm:$0xff]
        %v1780 = vld [vmem:[#allocation3 + $0x142] sm:$0xff]
        %v1781 = vld [vmem:[#allocation3 + $0x152] sm:$0xff]
        %v1782 = vld [vmem:[#allocation3 + $0x15a] sm:$0xff]
        %v1783 = vld [vmem:[#allocation3 + $0x16a] sm:$0xff]
        %v1784 = vld [vmem:[#allocation3 + $0x172] sm:$0xff]
        %1785 = vxpose.xlu0.b32.start [1/16] %v1753, 128
        %1786 = vxpose.xlu0.b32.cont [2/16] %v1754, 128
        %1787 = vxpose.xlu0.b32.cont [3/16] %v1755, 128
        %1788 = vxpose.xlu0.b32.cont [4/16] %v1756, 128
        %1789 = vxpose.xlu0.b32.cont [5/16] %v1757, 128
        %1790 = vxpose.xlu0.b32.cont [6/16] %v1758, 128
        %1791 = vxpose.xlu0.b32.cont [7/16] %v1759, 128
        %1792 = vxpose.xlu0.b32.cont [8/16] %v1760, 128
        %1793 = vxpose.xlu0.b32.cont [9/16] %v1761, 128
        %1794 = vxpose.xlu0.b32.cont [10/16] %v1762, 128
        %1795 = vxpose.xlu0.b32.cont [11/16] %v1763, 128
        %1796 = vxpose.xlu0.b32.cont [12/16] %v1764, 128
        %1797 = vxpose.xlu0.b32.cont [13/16] %v1765, 128
        %1798 = vxpose.xlu0.b32.cont [14/16] %v1766, 128
        %1799 = vxpose.xlu0.b32.cont [15/16] %v1767, 128
        %1800 = vxpose.xlu0.b32.end [16/16] %v1768, 128
        %v1801 = vpop.trf.xlu0
        %v1802 = vpop.trf.xlu0
        %v1803 = vpop.trf.xlu0
        %v1804 = vpop.trf.xlu0
        %v1805 = vpop.trf.xlu0
        %v1806 = vpop.trf.xlu0
        %v1807 = vpop.trf.xlu0
        %v1808 = vpop.trf.xlu0
        %v1809 = vpop.trf.xlu0
        %v1810 = vpop.trf.xlu0
        %v1811 = vpop.trf.xlu0
        %v1812 = vpop.trf.xlu0
        %v1813 = vpop.trf.xlu0
        %v1814 = vpop.trf.xlu0
        %v1815 = vpop.trf.xlu0
        %v1816 = vpop.trf.xlu0
        %1817 = vxpose.xlu0.b32.start [1/16] %v1769, 128
        %1818 = vxpose.xlu0.b32.cont [2/16] %v1770, 128
        %1819 = vxpose.xlu0.b32.cont [3/16] %v1771, 128
        %1820 = vxpose.xlu0.b32.cont [4/16] %v1772, 128
        %1821 = vxpose.xlu0.b32.cont [5/16] %v1773, 128
        %1822 = vxpose.xlu0.b32.cont [6/16] %v1774, 128
        %1823 = vxpose.xlu0.b32.cont [7/16] %v1775, 128
        %1824 = vxpose.xlu0.b32.cont [8/16] %v1776, 128
        %1825 = vxpose.xlu0.b32.cont [9/16] %v1777, 128
        %1826 = vxpose.xlu0.b32.cont [10/16] %v1778, 128
        %1827 = vxpose.xlu0.b32.cont [11/16] %v1779, 128
        %1828 = vxpose.xlu0.b32.cont [12/16] %v1780, 128
        %1829 = vxpose.xlu0.b32.cont [13/16] %v1781, 128
        %1830 = vxpose.xlu0.b32.cont [14/16] %v1782, 128
        %1831 = vxpose.xlu0.b32.cont [15/16] %v1783, 128
        %1832 = vxpose.xlu0.b32.end [16/16] %v1784, 128
        %v1833 = vpop.trf.xlu0
        %v1834 = vpop.trf.xlu0
        %v1835 = vpop.trf.xlu0
        %v1836 = vpop.trf.xlu0
        %v1837 = vpop.trf.xlu0
        %v1838 = vpop.trf.xlu0
        %v1839 = vpop.trf.xlu0
        %v1840 = vpop.trf.xlu0
        %v1841 = vpop.trf.xlu0
        %v1842 = vpop.trf.xlu0
        %v1843 = vpop.trf.xlu0
        %v1844 = vpop.trf.xlu0
        %v1845 = vpop.trf.xlu0
        %v1846 = vpop.trf.xlu0
        %v1847 = vpop.trf.xlu0
        %v1848 = vpop.trf.xlu0
        %1849 = vst [vmem:[#allocation5 + $0x20] sm:$0xff] %v1801
        %1850 = vst [vmem:[#allocation5 + $0x28] sm:$0xff] %v1833
        %v1851 = vld [vmem:[%s1524] sm:$0xff]
        %v1852 = vld [vmem:[%s1524 + $0x8] sm:$0xff]
        %v1853 = vld [vmem:[%s1524 + $0x18] sm:$0xff]
        %v1854 = vld [vmem:[%s1524 + $0x20] sm:$0xff]
        %v1855 = vld [vmem:[%s1524 + $0x30] sm:$0xff]
        %v1856 = vld [vmem:[%s1524 + $0x38] sm:$0xff]
        %v1857 = vld [vmem:[%s1524 + $0x48] sm:$0xff]
        %v1858 = vld [vmem:[%s1524 + $0x50] sm:$0xff]
        %v1859 = vld [vmem:[%s1524 + $0x60] sm:$0xff]
        %v1860 = vld [vmem:[%s1524 + $0x68] sm:$0xff]
        %v1861 = vld [vmem:[%s1524 + $0x78] sm:$0xff]
        %v1862 = vld [vmem:[%s1524 + $0x80] sm:$0xff]
        %v1863 = vld [vmem:[%s1524 + $0x90] sm:$0xff]
        %v1864 = vld [vmem:[%s1524 + $0x98] sm:$0xff]
        %v1865 = vld [vmem:[%s1524 + $0xa8] sm:$0xff]
        %v1866 = vld [vmem:[%s1524 + $0xb0] sm:$0xff]
        %v1867 = vld [vmem:[%s1524 + $0xc0] sm:$0xff]
        %v1868 = vld [vmem:[%s1524 + $0xc8] sm:$0xff]
        %v1869 = vld [vmem:[%s1524 + $0xd8] sm:$0xff]
        %v1870 = vld [vmem:[%s1524 + $0xe0] sm:$0xff]
        %v1871 = vld [vmem:[%s1524 + $0xf0] sm:$0xff]
        %v1872 = vld [vmem:[%s1524 + $0xf8] sm:$0xff]
        %v1873 = vld [vmem:[%s1524 + $0x108] sm:$0xff]
        %v1874 = vld [vmem:[%s1524 + $0x110] sm:$0xff]
        %v1875 = vld [vmem:[%s1524 + $0x120] sm:$0xff]
        %v1876 = vld [vmem:[%s1524 + $0x128] sm:$0xff]
        %v1877 = vld [vmem:[%s1524 + $0x138] sm:$0xff]
        %v1878 = vld [vmem:[%s1524 + $0x140] sm:$0xff]
        %v1879 = vld [vmem:[%s1524 + $0x150] sm:$0xff]
        %v1880 = vld [vmem:[%s1524 + $0x158] sm:$0xff]
        %v1881 = vld [vmem:[%s1524 + $0x168] sm:$0xff]
        %v1882 = vld [vmem:[%s1524 + $0x170] sm:$0xff]
        %1883 = vxpose.xlu0.b32.start [1/16] %v1851, 128
        %1884 = vxpose.xlu0.b32.cont [2/16] %v1852, 128
        %1885 = vxpose.xlu0.b32.cont [3/16] %v1853, 128
        %1886 = vxpose.xlu0.b32.cont [4/16] %v1854, 128
        %1887 = vxpose.xlu0.b32.cont [5/16] %v1855, 128
        %1888 = vxpose.xlu0.b32.cont [6/16] %v1856, 128
        %1889 = vxpose.xlu0.b32.cont [7/16] %v1857, 128
        %1890 = vxpose.xlu0.b32.cont [8/16] %v1858, 128
        %1891 = vxpose.xlu0.b32.cont [9/16] %v1859, 128
        %1892 = vxpose.xlu0.b32.cont [10/16] %v1860, 128
        %1893 = vxpose.xlu0.b32.cont [11/16] %v1861, 128
        %1894 = vxpose.xlu0.b32.cont [12/16] %v1862, 128
        %1895 = vxpose.xlu0.b32.cont [13/16] %v1863, 128
        %1896 = vxpose.xlu0.b32.cont [14/16] %v1864, 128
        %1897 = vxpose.xlu0.b32.cont [15/16] %v1865, 128
        %1898 = vxpose.xlu0.b32.end [16/16] %v1866, 128
        %v1899 = vpop.trf.xlu0
        %v1900 = vpop.trf.xlu0
        %v1901 = vpop.trf.xlu0
        %v1902 = vpop.trf.xlu0
        %v1903 = vpop.trf.xlu0
        %v1904 = vpop.trf.xlu0
        %v1905 = vpop.trf.xlu0
        %v1906 = vpop.trf.xlu0
        %v1907 = vpop.trf.xlu0
        %v1908 = vpop.trf.xlu0
        %v1909 = vpop.trf.xlu0
        %v1910 = vpop.trf.xlu0
        %v1911 = vpop.trf.xlu0
        %v1912 = vpop.trf.xlu0
        %v1913 = vpop.trf.xlu0
        %v1914 = vpop.trf.xlu0
        %1915 = vxpose.xlu0.b32.start [1/16] %v1867, 128
        %1916 = vxpose.xlu0.b32.cont [2/16] %v1868, 128
        %1917 = vxpose.xlu0.b32.cont [3/16] %v1869, 128
        %1918 = vxpose.xlu0.b32.cont [4/16] %v1870, 128
        %1919 = vxpose.xlu0.b32.cont [5/16] %v1871, 128
        %1920 = vxpose.xlu0.b32.cont [6/16] %v1872, 128
        %1921 = vxpose.xlu0.b32.cont [7/16] %v1873, 128
        %1922 = vxpose.xlu0.b32.cont [8/16] %v1874, 128
        %1923 = vxpose.xlu0.b32.cont [9/16] %v1875, 128
        %1924 = vxpose.xlu0.b32.cont [10/16] %v1876, 128
        %1925 = vxpose.xlu0.b32.cont [11/16] %v1877, 128
        %1926 = vxpose.xlu0.b32.cont [12/16] %v1878, 128
        %1927 = vxpose.xlu0.b32.cont [13/16] %v1879, 128
        %1928 = vxpose.xlu0.b32.cont [14/16] %v1880, 128
        %1929 = vxpose.xlu0.b32.cont [15/16] %v1881, 128
        %1930 = vxpose.xlu0.b32.end [16/16] %v1882, 128
        %v1931 = vpop.trf.xlu0
        %v1932 = vpop.trf.xlu0
        %v1933 = vpop.trf.xlu0
        %v1934 = vpop.trf.xlu0
        %v1935 = vpop.trf.xlu0
        %v1936 = vpop.trf.xlu0
        %v1937 = vpop.trf.xlu0
        %v1938 = vpop.trf.xlu0
        %v1939 = vpop.trf.xlu0
        %v1940 = vpop.trf.xlu0
        %v1941 = vpop.trf.xlu0
        %v1942 = vpop.trf.xlu0
        %v1943 = vpop.trf.xlu0
        %v1944 = vpop.trf.xlu0
        %v1945 = vpop.trf.xlu0
        %v1946 = vpop.trf.xlu0
        %1947 = vst [vmem:[#allocation5 + $0x30] sm:$0xff] %v1899
        %1948 = vst [vmem:[#allocation5 + $0x38] sm:$0xff] %v1931
        %v1949 = vld [vmem:[%s1524 + $0x1] sm:$0xff]
        %v1950 = vld [vmem:[%s1524 + $0x9] sm:$0xff]
        %v1951 = vld [vmem:[%s1524 + $0x19] sm:$0xff]
        %v1952 = vld [vmem:[%s1524 + $0x21] sm:$0xff]
        %v1953 = vld [vmem:[%s1524 + $0x31] sm:$0xff]
        %v1954 = vld [vmem:[%s1524 + $0x39] sm:$0xff]
        %v1955 = vld [vmem:[%s1524 + $0x49] sm:$0xff]
        %v1956 = vld [vmem:[%s1524 + $0x51] sm:$0xff]
        %v1957 = vld [vmem:[%s1524 + $0x61] sm:$0xff]
        %v1958 = vld [vmem:[%s1524 + $0x69] sm:$0xff]
        %v1959 = vld [vmem:[%s1524 + $0x79] sm:$0xff]
        %v1960 = vld [vmem:[%s1524 + $0x81] sm:$0xff]
        %v1961 = vld [vmem:[%s1524 + $0x91] sm:$0xff]
        %v1962 = vld [vmem:[%s1524 + $0x99] sm:$0xff]
        %v1963 = vld [vmem:[%s1524 + $0xa9] sm:$0xff]
        %v1964 = vld [vmem:[%s1524 + $0xb1] sm:$0xff]
        %v1965 = vld [vmem:[%s1524 + $0xc1] sm:$0xff]
        %v1966 = vld [vmem:[%s1524 + $0xc9] sm:$0xff]
        %v1967 = vld [vmem:[%s1524 + $0xd9] sm:$0xff]
        %v1968 = vld [vmem:[%s1524 + $0xe1] sm:$0xff]
        %v1969 = vld [vmem:[%s1524 + $0xf1] sm:$0xff]
        %v1970 = vld [vmem:[%s1524 + $0xf9] sm:$0xff]
        %v1971 = vld [vmem:[%s1524 + $0x109] sm:$0xff]
        %v1972 = vld [vmem:[%s1524 + $0x111] sm:$0xff]
        %v1973 = vld [vmem:[%s1524 + $0x121] sm:$0xff]
        %v1974 = vld [vmem:[%s1524 + $0x129] sm:$0xff]
        %v1975 = vld [vmem:[%s1524 + $0x139] sm:$0xff]
        %v1976 = vld [vmem:[%s1524 + $0x141] sm:$0xff]
        %v1977 = vld [vmem:[%s1524 + $0x151] sm:$0xff]
        %v1978 = vld [vmem:[%s1524 + $0x159] sm:$0xff]
        %v1979 = vld [vmem:[%s1524 + $0x169] sm:$0xff]
        %v1980 = vld [vmem:[%s1524 + $0x171] sm:$0xff]
        %1981 = vxpose.xlu0.b32.start [1/16] %v1949, 128
        %1982 = vxpose.xlu0.b32.cont [2/16] %v1950, 128
        %1983 = vxpose.xlu0.b32.cont [3/16] %v1951, 128
        %1984 = vxpose.xlu0.b32.cont [4/16] %v1952, 128
        %1985 = vxpose.xlu0.b32.cont [5/16] %v1953, 128
        %1986 = vxpose.xlu0.b32.cont [6/16] %v1954, 128
        %1987 = vxpose.xlu0.b32.cont [7/16] %v1955, 128
        %1988 = vxpose.xlu0.b32.cont [8/16] %v1956, 128
        %1989 = vxpose.xlu0.b32.cont [9/16] %v1957, 128
        %1990 = vxpose.xlu0.b32.cont [10/16] %v1958, 128
        %1991 = vxpose.xlu0.b32.cont [11/16] %v1959, 128
        %1992 = vxpose.xlu0.b32.cont [12/16] %v1960, 128
        %1993 = vxpose.xlu0.b32.cont [13/16] %v1961, 128
        %1994 = vxpose.xlu0.b32.cont [14/16] %v1962, 128
        %1995 = vxpose.xlu0.b32.cont [15/16] %v1963, 128
        %1996 = vxpose.xlu0.b32.end [16/16] %v1964, 128
        %v1997 = vpop.trf.xlu0
        %v1998 = vpop.trf.xlu0
        %v1999 = vpop.trf.xlu0
        %v2000 = vpop.trf.xlu0
        %v2001 = vpop.trf.xlu0
        %v2002 = vpop.trf.xlu0
        %v2003 = vpop.trf.xlu0
        %v2004 = vpop.trf.xlu0
        %v2005 = vpop.trf.xlu0
        %v2006 = vpop.trf.xlu0
        %v2007 = vpop.trf.xlu0
        %v2008 = vpop.trf.xlu0
        %v2009 = vpop.trf.xlu0
        %v2010 = vpop.trf.xlu0
        %v2011 = vpop.trf.xlu0
        %v2012 = vpop.trf.xlu0
        %2013 = vxpose.xlu0.b32.start [1/16] %v1965, 128
        %2014 = vxpose.xlu0.b32.cont [2/16] %v1966, 128
        %2015 = vxpose.xlu0.b32.cont [3/16] %v1967, 128
        %2016 = vxpose.xlu0.b32.cont [4/16] %v1968, 128
        %2017 = vxpose.xlu0.b32.cont [5/16] %v1969, 128
        %2018 = vxpose.xlu0.b32.cont [6/16] %v1970, 128
        %2019 = vxpose.xlu0.b32.cont [7/16] %v1971, 128
        %2020 = vxpose.xlu0.b32.cont [8/16] %v1972, 128
        %2021 = vxpose.xlu0.b32.cont [9/16] %v1973, 128
        %2022 = vxpose.xlu0.b32.cont [10/16] %v1974, 128
        %2023 = vxpose.xlu0.b32.cont [11/16] %v1975, 128
        %2024 = vxpose.xlu0.b32.cont [12/16] %v1976, 128
        %2025 = vxpose.xlu0.b32.cont [13/16] %v1977, 128
        %2026 = vxpose.xlu0.b32.cont [14/16] %v1978, 128
        %2027 = vxpose.xlu0.b32.cont [15/16] %v1979, 128
        %2028 = vxpose.xlu0.b32.end [16/16] %v1980, 128
        %v2029 = vpop.trf.xlu0
        %v2030 = vpop.trf.xlu0
        %v2031 = vpop.trf.xlu0
        %v2032 = vpop.trf.xlu0
        %v2033 = vpop.trf.xlu0
        %v2034 = vpop.trf.xlu0
        %v2035 = vpop.trf.xlu0
        %v2036 = vpop.trf.xlu0
        %v2037 = vpop.trf.xlu0
        %v2038 = vpop.trf.xlu0
        %v2039 = vpop.trf.xlu0
        %v2040 = vpop.trf.xlu0
        %v2041 = vpop.trf.xlu0
        %v2042 = vpop.trf.xlu0
        %v2043 = vpop.trf.xlu0
        %v2044 = vpop.trf.xlu0
        %2045 = vst [vmem:[#allocation5 + $0x40] sm:$0xff] %v1997
        %2046 = vst [vmem:[#allocation5 + $0x48] sm:$0xff] %v2029
        %v2047 = vld [vmem:[%s1524 + $0x2] sm:$0xff]
        %v2048 = vld [vmem:[%s1524 + $0xa] sm:$0xff]
        %v2049 = vld [vmem:[%s1524 + $0x1a] sm:$0xff]
        %v2050 = vld [vmem:[%s1524 + $0x22] sm:$0xff]
        %v2051 = vld [vmem:[%s1524 + $0x32] sm:$0xff]
        %v2052 = vld [vmem:[%s1524 + $0x3a] sm:$0xff]
        %v2053 = vld [vmem:[%s1524 + $0x4a] sm:$0xff]
        %v2054 = vld [vmem:[%s1524 + $0x52] sm:$0xff]
        %v2055 = vld [vmem:[%s1524 + $0x62] sm:$0xff]
        %v2056 = vld [vmem:[%s1524 + $0x6a] sm:$0xff]
        %v2057 = vld [vmem:[%s1524 + $0x7a] sm:$0xff]
        %v2058 = vld [vmem:[%s1524 + $0x82] sm:$0xff]
        %v2059 = vld [vmem:[%s1524 + $0x92] sm:$0xff]
        %v2060 = vld [vmem:[%s1524 + $0x9a] sm:$0xff]
        %v2061 = vld [vmem:[%s1524 + $0xaa] sm:$0xff]
        %v2062 = vld [vmem:[%s1524 + $0xb2] sm:$0xff]
        %v2063 = vld [vmem:[%s1524 + $0xc2] sm:$0xff]
        %v2064 = vld [vmem:[%s1524 + $0xca] sm:$0xff]
        %v2065 = vld [vmem:[%s1524 + $0xda] sm:$0xff]
        %v2066 = vld [vmem:[%s1524 + $0xe2] sm:$0xff]
        %v2067 = vld [vmem:[%s1524 + $0xf2] sm:$0xff]
        %v2068 = vld [vmem:[%s1524 + $0xfa] sm:$0xff]
        %v2069 = vld [vmem:[%s1524 + $0x10a] sm:$0xff]
        %v2070 = vld [vmem:[%s1524 + $0x112] sm:$0xff]
        %v2071 = vld [vmem:[%s1524 + $0x122] sm:$0xff]
        %v2072 = vld [vmem:[%s1524 + $0x12a] sm:$0xff]
        %v2073 = vld [vmem:[%s1524 + $0x13a] sm:$0xff]
        %v2074 = vld [vmem:[%s1524 + $0x142] sm:$0xff]
        %v2075 = vld [vmem:[%s1524 + $0x152] sm:$0xff]
        %v2076 = vld [vmem:[%s1524 + $0x15a] sm:$0xff]
        %v2077 = vld [vmem:[%s1524 + $0x16a] sm:$0xff]
        %v2078 = vld [vmem:[%s1524 + $0x172] sm:$0xff]
        %2079 = vxpose.xlu0.b32.start [1/16] %v2047, 128
        %2080 = vxpose.xlu0.b32.cont [2/16] %v2048, 128
        %2081 = vxpose.xlu0.b32.cont [3/16] %v2049, 128
        %2082 = vxpose.xlu0.b32.cont [4/16] %v2050, 128
        %2083 = vxpose.xlu0.b32.cont [5/16] %v2051, 128
        %2084 = vxpose.xlu0.b32.cont [6/16] %v2052, 128
        %2085 = vxpose.xlu0.b32.cont [7/16] %v2053, 128
        %2086 = vxpose.xlu0.b32.cont [8/16] %v2054, 128
        %2087 = vxpose.xlu0.b32.cont [9/16] %v2055, 128
        %2088 = vxpose.xlu0.b32.cont [10/16] %v2056, 128
        %2089 = vxpose.xlu0.b32.cont [11/16] %v2057, 128
        %2090 = vxpose.xlu0.b32.cont [12/16] %v2058, 128
        %2091 = vxpose.xlu0.b32.cont [13/16] %v2059, 128
        %2092 = vxpose.xlu0.b32.cont [14/16] %v2060, 128
        %2093 = vxpose.xlu0.b32.cont [15/16] %v2061, 128
        %2094 = vxpose.xlu0.b32.end [16/16] %v2062, 128
        %v2095 = vpop.trf.xlu0
        %v2096 = vpop.trf.xlu0
        %v2097 = vpop.trf.xlu0
        %v2098 = vpop.trf.xlu0
        %v2099 = vpop.trf.xlu0
        %v2100 = vpop.trf.xlu0
        %v2101 = vpop.trf.xlu0
        %v2102 = vpop.trf.xlu0
        %v2103 = vpop.trf.xlu0
        %v2104 = vpop.trf.xlu0
        %v2105 = vpop.trf.xlu0
        %v2106 = vpop.trf.xlu0
        %v2107 = vpop.trf.xlu0
        %v2108 = vpop.trf.xlu0
        %v2109 = vpop.trf.xlu0
        %v2110 = vpop.trf.xlu0
        %2111 = vxpose.xlu0.b32.start [1/16] %v2063, 128
        %2112 = vxpose.xlu0.b32.cont [2/16] %v2064, 128
        %2113 = vxpose.xlu0.b32.cont [3/16] %v2065, 128
        %2114 = vxpose.xlu0.b32.cont [4/16] %v2066, 128
        %2115 = vxpose.xlu0.b32.cont [5/16] %v2067, 128
        %2116 = vxpose.xlu0.b32.cont [6/16] %v2068, 128
        %2117 = vxpose.xlu0.b32.cont [7/16] %v2069, 128
        %2118 = vxpose.xlu0.b32.cont [8/16] %v2070, 128
        %2119 = vxpose.xlu0.b32.cont [9/16] %v2071, 128
        %2120 = vxpose.xlu0.b32.cont [10/16] %v2072, 128
        %2121 = vxpose.xlu0.b32.cont [11/16] %v2073, 128
        %2122 = vxpose.xlu0.b32.cont [12/16] %v2074, 128
        %2123 = vxpose.xlu0.b32.cont [13/16] %v2075, 128
        %2124 = vxpose.xlu0.b32.cont [14/16] %v2076, 128
        %2125 = vxpose.xlu0.b32.cont [15/16] %v2077, 128
        %2126 = vxpose.xlu0.b32.end [16/16] %v2078, 128
        %v2127 = vpop.trf.xlu0
        %v2128 = vpop.trf.xlu0
        %v2129 = vpop.trf.xlu0
        %v2130 = vpop.trf.xlu0
        %v2131 = vpop.trf.xlu0
        %v2132 = vpop.trf.xlu0
        %v2133 = vpop.trf.xlu0
        %v2134 = vpop.trf.xlu0
        %v2135 = vpop.trf.xlu0
        %v2136 = vpop.trf.xlu0
        %v2137 = vpop.trf.xlu0
        %v2138 = vpop.trf.xlu0
        %v2139 = vpop.trf.xlu0
        %v2140 = vpop.trf.xlu0
        %v2141 = vpop.trf.xlu0
        %v2142 = vpop.trf.xlu0
        %2143 = vst [vmem:[#allocation5 + $0x50] sm:$0xff] %v2095
        %2144 = vst [vmem:[#allocation5 + $0x58] sm:$0xff] %v2127
        %s2145 = scalar_lea.vmem [#allocation3], 48
        %v2146 = vld [vmem:[%s2145] sm:$0xff]
        %v2147 = vld [vmem:[%s2145 + $0x8] sm:$0xff]
        %v2148 = vld [vmem:[%s2145 + $0x18] sm:$0xff]
        %v2149 = vld [vmem:[%s2145 + $0x20] sm:$0xff]
        %v2150 = vld [vmem:[%s2145 + $0x30] sm:$0xff]
        %v2151 = vld [vmem:[%s2145 + $0x38] sm:$0xff]
        %v2152 = vld [vmem:[%s2145 + $0x48] sm:$0xff]
        %v2153 = vld [vmem:[%s2145 + $0x50] sm:$0xff]
        %v2154 = vld [vmem:[%s2145 + $0x60] sm:$0xff]
        %v2155 = vld [vmem:[%s2145 + $0x68] sm:$0xff]
        %v2156 = vld [vmem:[%s2145 + $0x78] sm:$0xff]
        %v2157 = vld [vmem:[%s2145 + $0x80] sm:$0xff]
        %v2158 = vld [vmem:[%s2145 + $0x90] sm:$0xff]
        %v2159 = vld [vmem:[%s2145 + $0x98] sm:$0xff]
        %v2160 = vld [vmem:[%s2145 + $0xa8] sm:$0xff]
        %v2161 = vld [vmem:[%s2145 + $0xb0] sm:$0xff]
        %v2162 = vld [vmem:[%s2145 + $0xc0] sm:$0xff]
        %v2163 = vld [vmem:[%s2145 + $0xc8] sm:$0xff]
        %v2164 = vld [vmem:[%s2145 + $0xd8] sm:$0xff]
        %v2165 = vld [vmem:[%s2145 + $0xe0] sm:$0xff]
        %v2166 = vld [vmem:[%s2145 + $0xf0] sm:$0xff]
        %v2167 = vld [vmem:[%s2145 + $0xf8] sm:$0xff]
        %v2168 = vld [vmem:[%s2145 + $0x108] sm:$0xff]
        %v2169 = vld [vmem:[%s2145 + $0x110] sm:$0xff]
        %v2170 = vld [vmem:[%s2145 + $0x120] sm:$0xff]
        %v2171 = vld [vmem:[%s2145 + $0x128] sm:$0xff]
        %v2172 = vld [vmem:[%s2145 + $0x138] sm:$0xff]
        %v2173 = vld [vmem:[%s2145 + $0x140] sm:$0xff]
        %v2174 = vld [vmem:[%s2145 + $0x150] sm:$0xff]
        %v2175 = vld [vmem:[%s2145 + $0x158] sm:$0xff]
        %v2176 = vld [vmem:[%s2145 + $0x168] sm:$0xff]
        %v2177 = vld [vmem:[%s2145 + $0x170] sm:$0xff]
        %2178 = vxpose.xlu0.b32.start [1/16] %v2146, 128
        %2179 = vxpose.xlu0.b32.cont [2/16] %v2147, 128
        %2180 = vxpose.xlu0.b32.cont [3/16] %v2148, 128
        %2181 = vxpose.xlu0.b32.cont [4/16] %v2149, 128
        %2182 = vxpose.xlu0.b32.cont [5/16] %v2150, 128
        %2183 = vxpose.xlu0.b32.cont [6/16] %v2151, 128
        %2184 = vxpose.xlu0.b32.cont [7/16] %v2152, 128
        %2185 = vxpose.xlu0.b32.cont [8/16] %v2153, 128
        %2186 = vxpose.xlu0.b32.cont [9/16] %v2154, 128
        %2187 = vxpose.xlu0.b32.cont [10/16] %v2155, 128
        %2188 = vxpose.xlu0.b32.cont [11/16] %v2156, 128
        %2189 = vxpose.xlu0.b32.cont [12/16] %v2157, 128
        %2190 = vxpose.xlu0.b32.cont [13/16] %v2158, 128
        %2191 = vxpose.xlu0.b32.cont [14/16] %v2159, 128
        %2192 = vxpose.xlu0.b32.cont [15/16] %v2160, 128
        %2193 = vxpose.xlu0.b32.end [16/16] %v2161, 128
        %v2194 = vpop.trf.xlu0
        %v2195 = vpop.trf.xlu0
        %v2196 = vpop.trf.xlu0
        %v2197 = vpop.trf.xlu0
        %v2198 = vpop.trf.xlu0
        %v2199 = vpop.trf.xlu0
        %v2200 = vpop.trf.xlu0
        %v2201 = vpop.trf.xlu0
        %v2202 = vpop.trf.xlu0
        %v2203 = vpop.trf.xlu0
        %v2204 = vpop.trf.xlu0
        %v2205 = vpop.trf.xlu0
        %v2206 = vpop.trf.xlu0
        %v2207 = vpop.trf.xlu0
        %v2208 = vpop.trf.xlu0
        %v2209 = vpop.trf.xlu0
        %2210 = vxpose.xlu0.b32.start [1/16] %v2162, 128
        %2211 = vxpose.xlu0.b32.cont [2/16] %v2163, 128
        %2212 = vxpose.xlu0.b32.cont [3/16] %v2164, 128
        %2213 = vxpose.xlu0.b32.cont [4/16] %v2165, 128
        %2214 = vxpose.xlu0.b32.cont [5/16] %v2166, 128
        %2215 = vxpose.xlu0.b32.cont [6/16] %v2167, 128
        %2216 = vxpose.xlu0.b32.cont [7/16] %v2168, 128
        %2217 = vxpose.xlu0.b32.cont [8/16] %v2169, 128
        %2218 = vxpose.xlu0.b32.cont [9/16] %v2170, 128
        %2219 = vxpose.xlu0.b32.cont [10/16] %v2171, 128
        %2220 = vxpose.xlu0.b32.cont [11/16] %v2172, 128
        %2221 = vxpose.xlu0.b32.cont [12/16] %v2173, 128
        %2222 = vxpose.xlu0.b32.cont [13/16] %v2174, 128
        %2223 = vxpose.xlu0.b32.cont [14/16] %v2175, 128
        %2224 = vxpose.xlu0.b32.cont [15/16] %v2176, 128
        %2225 = vxpose.xlu0.b32.end [16/16] %v2177, 128
        %v2226 = vpop.trf.xlu0
        %v2227 = vpop.trf.xlu0
        %v2228 = vpop.trf.xlu0
        %v2229 = vpop.trf.xlu0
        %v2230 = vpop.trf.xlu0
        %v2231 = vpop.trf.xlu0
        %v2232 = vpop.trf.xlu0
        %v2233 = vpop.trf.xlu0
        %v2234 = vpop.trf.xlu0
        %v2235 = vpop.trf.xlu0
        %v2236 = vpop.trf.xlu0
        %v2237 = vpop.trf.xlu0
        %v2238 = vpop.trf.xlu0
        %v2239 = vpop.trf.xlu0
        %v2240 = vpop.trf.xlu0
        %v2241 = vpop.trf.xlu0
        %2242 = vst [vmem:[#allocation5 + $0x60] sm:$0xff] %v2194
        %2243 = vst [vmem:[#allocation5 + $0x68] sm:$0xff] %v2226
        %v2244 = vld [vmem:[%s2145 + $0x1] sm:$0xff]
        %v2245 = vld [vmem:[%s2145 + $0x9] sm:$0xff]
        %v2246 = vld [vmem:[%s2145 + $0x19] sm:$0xff]
        %v2247 = vld [vmem:[%s2145 + $0x21] sm:$0xff]
        %v2248 = vld [vmem:[%s2145 + $0x31] sm:$0xff]
        %v2249 = vld [vmem:[%s2145 + $0x39] sm:$0xff]
        %v2250 = vld [vmem:[%s2145 + $0x49] sm:$0xff]
        %v2251 = vld [vmem:[%s2145 + $0x51] sm:$0xff]
        %v2252 = vld [vmem:[%s2145 + $0x61] sm:$0xff]
        %v2253 = vld [vmem:[%s2145 + $0x69] sm:$0xff]
        %v2254 = vld [vmem:[%s2145 + $0x79] sm:$0xff]
        %v2255 = vld [vmem:[%s2145 + $0x81] sm:$0xff]
        %v2256 = vld [vmem:[%s2145 + $0x91] sm:$0xff]
        %v2257 = vld [vmem:[%s2145 + $0x99] sm:$0xff]
        %v2258 = vld [vmem:[%s2145 + $0xa9] sm:$0xff]
        %v2259 = vld [vmem:[%s2145 + $0xb1] sm:$0xff]
        %v2260 = vld [vmem:[%s2145 + $0xc1] sm:$0xff]
        %v2261 = vld [vmem:[%s2145 + $0xc9] sm:$0xff]
        %v2262 = vld [vmem:[%s2145 + $0xd9] sm:$0xff]
        %v2263 = vld [vmem:[%s2145 + $0xe1] sm:$0xff]
        %v2264 = vld [vmem:[%s2145 + $0xf1] sm:$0xff]
        %v2265 = vld [vmem:[%s2145 + $0xf9] sm:$0xff]
        %v2266 = vld [vmem:[%s2145 + $0x109] sm:$0xff]
        %v2267 = vld [vmem:[%s2145 + $0x111] sm:$0xff]
        %v2268 = vld [vmem:[%s2145 + $0x121] sm:$0xff]
        %v2269 = vld [vmem:[%s2145 + $0x129] sm:$0xff]
        %v2270 = vld [vmem:[%s2145 + $0x139] sm:$0xff]
        %v2271 = vld [vmem:[%s2145 + $0x141] sm:$0xff]
        %v2272 = vld [vmem:[%s2145 + $0x151] sm:$0xff]
        %v2273 = vld [vmem:[%s2145 + $0x159] sm:$0xff]
        %v2274 = vld [vmem:[%s2145 + $0x169] sm:$0xff]
        %v2275 = vld [vmem:[%s2145 + $0x171] sm:$0xff]
        %2276 = vxpose.xlu0.b32.start [1/16] %v2244, 128
        %2277 = vxpose.xlu0.b32.cont [2/16] %v2245, 128
        %2278 = vxpose.xlu0.b32.cont [3/16] %v2246, 128
        %2279 = vxpose.xlu0.b32.cont [4/16] %v2247, 128
        %2280 = vxpose.xlu0.b32.cont [5/16] %v2248, 128
        %2281 = vxpose.xlu0.b32.cont [6/16] %v2249, 128
        %2282 = vxpose.xlu0.b32.cont [7/16] %v2250, 128
        %2283 = vxpose.xlu0.b32.cont [8/16] %v2251, 128
        %2284 = vxpose.xlu0.b32.cont [9/16] %v2252, 128
        %2285 = vxpose.xlu0.b32.cont [10/16] %v2253, 128
        %2286 = vxpose.xlu0.b32.cont [11/16] %v2254, 128
        %2287 = vxpose.xlu0.b32.cont [12/16] %v2255, 128
        %2288 = vxpose.xlu0.b32.cont [13/16] %v2256, 128
        %2289 = vxpose.xlu0.b32.cont [14/16] %v2257, 128
        %2290 = vxpose.xlu0.b32.cont [15/16] %v2258, 128
        %2291 = vxpose.xlu0.b32.end [16/16] %v2259, 128
        %v2292 = vpop.trf.xlu0
        %v2293 = vpop.trf.xlu0
        %v2294 = vpop.trf.xlu0
        %v2295 = vpop.trf.xlu0
        %v2296 = vpop.trf.xlu0
        %v2297 = vpop.trf.xlu0
        %v2298 = vpop.trf.xlu0
        %v2299 = vpop.trf.xlu0
        %v2300 = vpop.trf.xlu0
        %v2301 = vpop.trf.xlu0
        %v2302 = vpop.trf.xlu0
        %v2303 = vpop.trf.xlu0
        %v2304 = vpop.trf.xlu0
        %v2305 = vpop.trf.xlu0
        %v2306 = vpop.trf.xlu0
        %v2307 = vpop.trf.xlu0
        %2308 = vxpose.xlu0.b32.start [1/16] %v2260, 128
        %2309 = vxpose.xlu0.b32.cont [2/16] %v2261, 128
        %2310 = vxpose.xlu0.b32.cont [3/16] %v2262, 128
        %2311 = vxpose.xlu0.b32.cont [4/16] %v2263, 128
        %2312 = vxpose.xlu0.b32.cont [5/16] %v2264, 128
        %2313 = vxpose.xlu0.b32.cont [6/16] %v2265, 128
        %2314 = vxpose.xlu0.b32.cont [7/16] %v2266, 128
        %2315 = vxpose.xlu0.b32.cont [8/16] %v2267, 128
        %2316 = vxpose.xlu0.b32.cont [9/16] %v2268, 128
        %2317 = vxpose.xlu0.b32.cont [10/16] %v2269, 128
        %2318 = vxpose.xlu0.b32.cont [11/16] %v2270, 128
        %2319 = vxpose.xlu0.b32.cont [12/16] %v2271, 128
        %2320 = vxpose.xlu0.b32.cont [13/16] %v2272, 128
        %2321 = vxpose.xlu0.b32.cont [14/16] %v2273, 128
        %2322 = vxpose.xlu0.b32.cont [15/16] %v2274, 128
        %2323 = vxpose.xlu0.b32.end [16/16] %v2275, 128
        %v2324 = vpop.trf.xlu0
        %v2325 = vpop.trf.xlu0
        %v2326 = vpop.trf.xlu0
        %v2327 = vpop.trf.xlu0
        %v2328 = vpop.trf.xlu0
        %v2329 = vpop.trf.xlu0
        %v2330 = vpop.trf.xlu0
        %v2331 = vpop.trf.xlu0
        %v2332 = vpop.trf.xlu0
        %v2333 = vpop.trf.xlu0
        %v2334 = vpop.trf.xlu0
        %v2335 = vpop.trf.xlu0
        %v2336 = vpop.trf.xlu0
        %v2337 = vpop.trf.xlu0
        %v2338 = vpop.trf.xlu0
        %v2339 = vpop.trf.xlu0
        %2340 = vst [vmem:[#allocation5 + $0x70] sm:$0xff] %v2292
        %2341 = vst [vmem:[#allocation5 + $0x78] sm:$0xff] %v2324
        %v2342 = vld [vmem:[%s2145 + $0x2] sm:$0xff]
        %v2343 = vld [vmem:[%s2145 + $0xa] sm:$0xff]
        %v2344 = vld [vmem:[%s2145 + $0x1a] sm:$0xff]
        %v2345 = vld [vmem:[%s2145 + $0x22] sm:$0xff]
        %v2346 = vld [vmem:[%s2145 + $0x32] sm:$0xff]
        %v2347 = vld [vmem:[%s2145 + $0x3a] sm:$0xff]
        %v2348 = vld [vmem:[%s2145 + $0x4a] sm:$0xff]
        %v2349 = vld [vmem:[%s2145 + $0x52] sm:$0xff]
        %v2350 = vld [vmem:[%s2145 + $0x62] sm:$0xff]
        %v2351 = vld [vmem:[%s2145 + $0x6a] sm:$0xff]
        %v2352 = vld [vmem:[%s2145 + $0x7a] sm:$0xff]
        %v2353 = vld [vmem:[%s2145 + $0x82] sm:$0xff]
        %v2354 = vld [vmem:[%s2145 + $0x92] sm:$0xff]
        %v2355 = vld [vmem:[%s2145 + $0x9a] sm:$0xff]
        %v2356 = vld [vmem:[%s2145 + $0xaa] sm:$0xff]
        %v2357 = vld [vmem:[%s2145 + $0xb2] sm:$0xff]
        %v2358 = vld [vmem:[%s2145 + $0xc2] sm:$0xff]
        %v2359 = vld [vmem:[%s2145 + $0xca] sm:$0xff]
        %v2360 = vld [vmem:[%s2145 + $0xda] sm:$0xff]
        %v2361 = vld [vmem:[%s2145 + $0xe2] sm:$0xff]
        %v2362 = vld [vmem:[%s2145 + $0xf2] sm:$0xff]
        %v2363 = vld [vmem:[%s2145 + $0xfa] sm:$0xff]
        %v2364 = vld [vmem:[%s2145 + $0x10a] sm:$0xff]
        %v2365 = vld [vmem:[%s2145 + $0x112] sm:$0xff]
        %v2366 = vld [vmem:[%s2145 + $0x122] sm:$0xff]
        %v2367 = vld [vmem:[%s2145 + $0x12a] sm:$0xff]
        %v2368 = vld [vmem:[%s2145 + $0x13a] sm:$0xff]
        %v2369 = vld [vmem:[%s2145 + $0x142] sm:$0xff]
        %v2370 = vld [vmem:[%s2145 + $0x152] sm:$0xff]
        %v2371 = vld [vmem:[%s2145 + $0x15a] sm:$0xff]
        %v2372 = vld [vmem:[%s2145 + $0x16a] sm:$0xff]
        %v2373 = vld [vmem:[%s2145 + $0x172] sm:$0xff]
        %2374 = vxpose.xlu0.b32.start [1/16] %v2342, 128
        %2375 = vxpose.xlu0.b32.cont [2/16] %v2343, 128
        %2376 = vxpose.xlu0.b32.cont [3/16] %v2344, 128
        %2377 = vxpose.xlu0.b32.cont [4/16] %v2345, 128
        %2378 = vxpose.xlu0.b32.cont [5/16] %v2346, 128
        %2379 = vxpose.xlu0.b32.cont [6/16] %v2347, 128
        %2380 = vxpose.xlu0.b32.cont [7/16] %v2348, 128
        %2381 = vxpose.xlu0.b32.cont [8/16] %v2349, 128
        %2382 = vxpose.xlu0.b32.cont [9/16] %v2350, 128
        %2383 = vxpose.xlu0.b32.cont [10/16] %v2351, 128
        %2384 = vxpose.xlu0.b32.cont [11/16] %v2352, 128
        %2385 = vxpose.xlu0.b32.cont [12/16] %v2353, 128
        %2386 = vxpose.xlu0.b32.cont [13/16] %v2354, 128
        %2387 = vxpose.xlu0.b32.cont [14/16] %v2355, 128
        %2388 = vxpose.xlu0.b32.cont [15/16] %v2356, 128
        %2389 = vxpose.xlu0.b32.end [16/16] %v2357, 128
        %v2390 = vpop.trf.xlu0
        %v2391 = vpop.trf.xlu0
        %v2392 = vpop.trf.xlu0
        %v2393 = vpop.trf.xlu0
        %v2394 = vpop.trf.xlu0
        %v2395 = vpop.trf.xlu0
        %v2396 = vpop.trf.xlu0
        %v2397 = vpop.trf.xlu0
        %v2398 = vpop.trf.xlu0
        %v2399 = vpop.trf.xlu0
        %v2400 = vpop.trf.xlu0
        %v2401 = vpop.trf.xlu0
        %v2402 = vpop.trf.xlu0
        %v2403 = vpop.trf.xlu0
        %v2404 = vpop.trf.xlu0
        %v2405 = vpop.trf.xlu0
        %2406 = vxpose.xlu0.b32.start [1/16] %v2358, 128
        %2407 = vxpose.xlu0.b32.cont [2/16] %v2359, 128
        %2408 = vxpose.xlu0.b32.cont [3/16] %v2360, 128
        %2409 = vxpose.xlu0.b32.cont [4/16] %v2361, 128
        %2410 = vxpose.xlu0.b32.cont [5/16] %v2362, 128
        %2411 = vxpose.xlu0.b32.cont [6/16] %v2363, 128
        %2412 = vxpose.xlu0.b32.cont [7/16] %v2364, 128
        %2413 = vxpose.xlu0.b32.cont [8/16] %v2365, 128
        %2414 = vxpose.xlu0.b32.cont [9/16] %v2366, 128
        %2415 = vxpose.xlu0.b32.cont [10/16] %v2367, 128
        %2416 = vxpose.xlu0.b32.cont [11/16] %v2368, 128
        %2417 = vxpose.xlu0.b32.cont [12/16] %v2369, 128
        %2418 = vxpose.xlu0.b32.cont [13/16] %v2370, 128
        %2419 = vxpose.xlu0.b32.cont [14/16] %v2371, 128
        %2420 = vxpose.xlu0.b32.cont [15/16] %v2372, 128
        %2421 = vxpose.xlu0.b32.end [16/16] %v2373, 128
        %v2422 = vpop.trf.xlu0
        %v2423 = vpop.trf.xlu0
        %v2424 = vpop.trf.xlu0
        %v2425 = vpop.trf.xlu0
        %v2426 = vpop.trf.xlu0
        %v2427 = vpop.trf.xlu0
        %v2428 = vpop.trf.xlu0
        %v2429 = vpop.trf.xlu0
        %v2430 = vpop.trf.xlu0
        %v2431 = vpop.trf.xlu0
        %v2432 = vpop.trf.xlu0
        %v2433 = vpop.trf.xlu0
        %v2434 = vpop.trf.xlu0
        %v2435 = vpop.trf.xlu0
        %v2436 = vpop.trf.xlu0
        %v2437 = vpop.trf.xlu0
        %2438 = vst [vmem:[#allocation5 + $0x80] sm:$0xff] %v2390
        %2439 = vst [vmem:[#allocation5 + $0x88] sm:$0xff] %v2422
        %v2440 = vld [vmem:[%s4] sm:$0xff]
        %v2441 = vld [vmem:[#allocation5] sm:$0xff]
        %v2442 = vld [vmem:[#allocation5 + $0x8] sm:$0xff]
        %v2443 = vld [vmem:[#allocation5 + $0x10] sm:$0xff]
        %v2444 = vld [vmem:[#allocation5 + $0x18] sm:$0xff]
        %v2445 = vld [vmem:[#allocation5 + $0x20] sm:$0xff]
        %v2446 = vld [vmem:[#allocation5 + $0x28] sm:$0xff]
        %v2447 = vld [vmem:[#allocation5 + $0x30] sm:$0xff]
        %v2448 = vld [vmem:[#allocation5 + $0x38] sm:$0xff]
        %v2449 = vld [vmem:[#allocation5 + $0x40] sm:$0xff]
        %v2450 = vld [vmem:[#allocation5 + $0x48] sm:$0xff]
        %v2451 = vld [vmem:[#allocation5 + $0x50] sm:$0xff]
        %v2452 = vld [vmem:[#allocation5 + $0x58] sm:$0xff]
        %v2453 = vld [vmem:[#allocation5 + $0x60] sm:$0xff]
        %v2454 = vld [vmem:[#allocation5 + $0x68] sm:$0xff]
        %v2455 = vld [vmem:[#allocation5 + $0x70] sm:$0xff]
        %v2456 = vld [vmem:[#allocation5 + $0x78] sm:$0xff]
        %v2457 = vld [vmem:[#allocation5 + $0x80] sm:$0xff]
        %v2458 = vld [vmem:[#allocation5 + $0x88] sm:$0xff]
        %vm2459 = vcmask 588800
        %v2461 = vsel %vm2459, %v2440, 0
        %2463 = vmatpush.msra.mxu0 0.0
        %2464 = vmatpush.msra.mxu0 0.0
        %2465 = vmatpush.msra.mxu0 0.0
        %2466 = vmatpush.msra.mxu0 0.0
        %2467 = vmatpush.msra.mxu0 0.0
        %2468 = vmatpush.msra.mxu0 0.0
        %2469 = vmatpush.msra.mxu0 0.0
        %2470 = vmatpush.msra.mxu0 %v2457
        %2471 = vmatpush.msra.mxu0 %v2455
        %2472 = vmatpush.msra.mxu0 %v2453
        %2473 = vmatpush.msra.mxu0 %v2451
        %2474 = vmatpush.msra.mxu0 %v2449
        %2475 = vmatpush.msra.mxu0 %v2447
        %2476 = vmatpush.msra.mxu0 %v2445
        %2477 = vmatpush.msra.mxu0 %v2443
        %2478 = vmatpush.msra.mxu0 %v2441
        %2479 = vmatmul.f32.gmra.mxu0 %v2461
        %v2480 = vpop.f32.mrf.mxu0
        %v2481 = vadd.f32 0.0, %v2480
        %2482 = vdwg.mxu0
        %2483 = vmatpush.msra.mxu0 0.0
        %2484 = vmatpush.msra.mxu0 0.0
        %2485 = vmatpush.msra.mxu0 0.0
        %2486 = vmatpush.msra.mxu0 0.0
        %2487 = vmatpush.msra.mxu0 0.0
        %2488 = vmatpush.msra.mxu0 0.0
        %2489 = vmatpush.msra.mxu0 0.0
        %2490 = vmatpush.msra.mxu0 %v2458
        %2491 = vmatpush.msra.mxu0 %v2456
        %2492 = vmatpush.msra.mxu0 %v2454
        %2493 = vmatpush.msra.mxu0 %v2452
        %2494 = vmatpush.msra.mxu0 %v2450
        %2495 = vmatpush.msra.mxu0 %v2448
        %2496 = vmatpush.msra.mxu0 %v2446
        %2497 = vmatpush.msra.mxu0 %v2444
        %2498 = vmatpush.msra.mxu0 %v2442
        %2499 = vmatmul.f32.gmra.mxu0 %v2461
        %v2500 = vpop.f32.mrf.mxu0
        %v2501 = vadd.f32 0.0, %v2500
        %2502 = vdwg.mxu0
        %v2503 = vld [vmem:[%s5] sm:$0xff]
        %2505 = vset.pattern.permute.xlu0 0
        %2506 = vperm.xlu0 %2505, %v2503
        %v2507 = vpop.permute.xlu0 %2506
        %v2509 = vmul.f32 %v2481, %v2507
        %v2510 = vmul.f32 %v2501, %v2507
        %v2511 = vld [vmem:[%s6] sm:$0xff]
        %2513 = vset.pattern.permute.xlu0 0
        %2514 = vperm.xlu0 %2513, %v2511
        %v2515 = vpop.permute.xlu0 %2514
        %v2517 = vadd.f32 %v2509, %v2515
        %v2518 = vadd.f32 %v2510, %v2515
        %v2519 = vmax.f32 %v2517, 0.0
        %v2520 = vmax.f32 %v2518, 0.0
        %2521 = vst [vmem:[%s271] sm:$0xff] %v2519
        %2522 = vst [vmem:[%s271 + $0x8] sm:$0xff] %v2520
        %s2523 = sand.u32 %s181, 1
        %s2524 = scalar_lea.sflag [#allocation7], %s2523
        %s2525 = sand.u32 %s181, 1
        %s2526 = smul.addr %s2525, 16
        %s2527 = scalar_lea.vmem [#allocation6], %s2526
        // Predicated region
        $region49: #{tpu_custom_call.1} parent=47 // pred_check
          %p2528 = pneg %p191
        $region50: #{tpu_custom_call.1} parent=47 // pred_check_branch
          %2530 = sbr.rel (%p2528) target = $region52
        $region51: #{tpu_custom_call.1} parent=47 // pred_region
          %2532 = vsyncadd %s2524, 0
          %s2533 = smul.addr %s21, 2
          %s2534 = smul.addr %s2533, 8
          %s2535 = scalar_lea.hbm %s7, %s2534
          %s2537 = sshll.u32 %s2527, 4
          %s2538 = int_to_ptr.vmem [resolvable:$true] %s2537
          %s2539 = sshll.u32 %s2535, 4
          %s2540 = int_to_ptr.hbm [resolvable:$true] %s2539
          %2542 = dma.vmem_to_hbm [thread:$0]  %s2538, 256, %s2540, %s2524
        $region52: #{tpu_custom_call.1} parent=47 // pred_fallthru
          _
      $region48: #{tpu_custom_call.1} parent=5 // pred_fallthru
        _
      %p2543 = scmp.le.s32.totalorder 2, %s16
      // Predicated region
      $region53: #{tpu_custom_call.1} parent=5 // pred_check
        %p2544 = pneg %p2543
      $region54: #{tpu_custom_call.1} parent=5 // pred_check_branch
        %2546 = sbr.rel (%p2544) target = $region56
      $region55: #{tpu_custom_call.1} parent=5 // pred_region
        %s2547 = ssub.s32 %s16, 2
        // Predicated region
        $region57: #{tpu_custom_call.1} parent=55 // pred_check
          %p2548 = pneg %p197
        $region58: #{tpu_custom_call.1} parent=55 // pred_check_branch
          %2550 = sbr.rel (%p2548) target = $region60
        $region59: #{tpu_custom_call.1} parent=55 // pred_region
          %s2551 = sand.u32 %s182, 1
          %s2552 = scalar_lea.sflag [#allocation7], %s2551
          %s2553 = sand.u32 %s182, 1
          %s2554 = smul.addr %s2553, 16
          %s2555 = scalar_lea.vmem [#allocation6], %s2554
          %2557 = dma.done %s2552, 256
        $region60: #{tpu_custom_call.1} parent=55 // pred_fallthru
          _
      $region56: #{tpu_custom_call.1} parent=5 // pred_fallthru
        _
    $region6: #{tpu_custom_call.1} parent=1 // loop_footer
      %s20 = sadd.s32 1, %s16
    $region7: #{tpu_custom_call.1} parent=1 // loop_footer_branch
      %15 = sbr.rel target = $region3
    $region8: #{tpu_custom_call.1} parent=1 // loop_exit
      _
    %2558 = vsyncpa [#allocation7], 1
    %s2559 = scalar_lea.sflag [#allocation7], 1
    %2560 = vsyncpa %s2559, 1

</llo_original>
